<compile_context>
chip_gen: v7x
topology: tpu7x:2x2x1
jax: 0.10.0
libtpu: 0.0.40
codegen_flags: <defaults>
</compile_context>

<pallas_src>
import jax
import jax.numpy as jnp
import numpy as np
from jax.experimental import pallas as pl
from jax.experimental.pallas import tpu as pltpu

EPS = 1e-5


def _make_kernel(N, D, H, W, C):
    OUTCOL = H * W * C                 # lane-dense activation width (c fastest)
    PADCOL = (H + 2) * (W + 2) * C     # padded (h, w, c) width
    WPC = (W + 2) * C
    WC = W * C
    inv_count = 1.0 / float(N * D * H * W)

    def kernel(x_ref, wb1_ref, b1_ref, g1_ref, be1_ref,
               wb2_ref, b2_ref, g2_ref, be2_ref, sel_ref, selt_ref,
               o_ref, pad_ref):
        f32 = jnp.float32

        def fill_interior(src):
            # src: (N*D, H*W*C) f32 value -> interior of padded scratch.
            for h in range(H):
                blk = src[:, h * WC:(h + 1) * WC].reshape(N, D, WC)
                cs = (1 + h) * WPC + C          # skip h halo row + w halo cols
                pad_ref[:, 1:1 + D, cs:cs + WC] = blk

        def conv(wb_ref, bias_col):
            # 3 deep banded matmuls (one per d-tap), bf16 operands, f32 acc.
            acc = jnp.zeros((N * D, OUTCOL), f32)
            for kd in range(3):
                slab = pad_ref[:, kd:kd + D, :].reshape(N * D, PADCOL)
                acc = acc + jnp.dot(slab.astype(jnp.bfloat16), wb_ref[kd],
                                    preferred_element_type=f32)
            return acc + bias_col

        def batchnorm(y, g_col, be_col):
            # one-pass fused stats: per-channel sum & sum-of-squares
            rowsum = jnp.sum(y, axis=0, keepdims=True)            # (1, OUTCOL)
            rowsq = jnp.sum(y * y, axis=0, keepdims=True)
            csum = jnp.dot(rowsum, selt_ref[...], preferred_element_type=f32)
            csq = jnp.dot(rowsq, selt_ref[...], preferred_element_type=f32)
            mean = csum * inv_count                               # (1, C)
            var = csq * inv_count - mean * mean                   # biased var
            rstd = jax.lax.rsqrt(var + EPS)
            mean_col = jnp.dot(mean, sel_ref[...], preferred_element_type=f32)
            rstd_col = jnp.dot(rstd, sel_ref[...], preferred_element_type=f32)
            return (y - mean_col) * (rstd_col * g_col) + be_col

        x = x_ref[...]                           # (N*D, H*W*C), lane-dense

        # Zero the padded scratch ONCE; the halo stays zero for both convs
        # because only the interior is rewritten afterwards.
        pad_ref[...] = jnp.zeros(pad_ref.shape, f32)

        # conv1 -> bn1 -> relu
        fill_interior(x)
        y = conv(wb1_ref, b1_ref[...])
        y = jnp.maximum(batchnorm(y, g1_ref[...], be1_ref[...]), 0.0)

        # conv2 -> bn2
        fill_interior(y)
        y = conv(wb2_ref, b2_ref[...])
        y = batchnorm(y, g2_ref[...], be2_ref[...])

        # residual add + final relu (lane-dense, unmasked store)
        o_ref[...] = jnp.maximum(y + x, 0.0)

    return kernel


def _band_weights(w, H, W):
    """(Cout, Cin, 3, 3, 3) conv weight -> (3, (H+2)*(W+2)*C, H*W*C) banded
    matrices so that conv(x) = sum_kd  x_pad_slab[kd] @ band[kd] in the
    flattened (n*d, (hp,wp,ci)) x ((hp,wp,ci), (h,w,co)) layout."""
    C = w.shape[0]
    wt = jnp.transpose(w, (2, 3, 4, 1, 0)).astype(jnp.float32)  # (kd,kh,kw,ci,co)
    hp = np.arange(H + 2)[:, None]
    hh = np.arange(H)[None, :]
    kh = hp - hh                                   # (H+2, H)
    vh = (kh >= 0) & (kh < 3)
    wp = np.arange(W + 2)[:, None]
    ww = np.arange(W)[None, :]
    kw = wp - ww                                   # (W+2, W)
    vw = (kw >= 0) & (kw < 3)
    b = wt[:, np.clip(kh, 0, 2)]                   # (3, H+2, H, 3, C, C)
    b = b[:, :, :, np.clip(kw, 0, 2)]              # (3, H+2, H, W+2, W, C, C)
    mask = (vh[:, :, None, None] & vw[None, None, :, :]).astype(np.float32)
    b = b * jnp.asarray(mask)[None, :, :, :, :, None, None]
    b = jnp.transpose(b, (0, 1, 3, 5, 2, 4, 6))    # (kd, hp, wp, ci, h, w, co)
    return b.reshape(3, (H + 2) * (W + 2) * C, H * W * C).astype(jnp.bfloat16)


def res_double_conv(x_ncdhw, w1, b1, g1, be1, w2, b2, g2, be2):
    """x_ncdhw: (N, C, D, H, W); conv weights in PyTorch OIDHW layout."""
    N, C, D, H, W = x_ncdhw.shape
    OUTCOL = H * W * C
    PADCOL = (H + 2) * (W + 2) * C

    # NDHWC, flattened lane-dense as (N*D, H*W*C)
    x_flat = jnp.transpose(x_ncdhw, (0, 2, 3, 4, 1)).astype(jnp.float32)
    x_flat = x_flat.reshape(N * D, OUTCOL)

    def tile_c(v):  # per-channel (C,) -> per-column (1, H*W*C), c fastest
        return jnp.tile(v.astype(jnp.float32), H * W).reshape(1, OUTCOL)

    # selector matrices: column j belongs to channel j % C
    cols = np.arange(OUTCOL)
    sel_np = (np.arange(C)[:, None] == (cols[None, :] % C)).astype(np.float32)
    sel = jnp.asarray(sel_np)        # (C, OUTCOL)  channel -> columns
    selt = jnp.asarray(sel_np.T)     # (OUTCOL, C)  columns -> channel

    args = (x_flat,
            _band_weights(w1, H, W), tile_c(b1), tile_c(g1), tile_c(be1),
            _band_weights(w2, H, W), tile_c(b2), tile_c(g2), tile_c(be2),
            sel, selt)

    out_flat = pl.pallas_call(
        _make_kernel(N, D, H, W, C),
        out_shape=jax.ShapeDtypeStruct((N * D, OUTCOL), jnp.float32),
        in_specs=[pl.BlockSpec(memory_space=pltpu.MemorySpace.VMEM)] * len(args),
        out_specs=pl.BlockSpec(memory_space=pltpu.MemorySpace.VMEM),
        scratch_shapes=[pltpu.VMEM((N, D + 2, PADCOL), jnp.float32)],
    )(*args)

    out = out_flat.reshape(N, D, H, W, C)
    return jnp.transpose(out, (0, 4, 1, 2, 3))     # back to NCDHW


def reference(x, w1, b1, g1, be1, w2, b2, g2, be2):
    """Pure-JAX f32 reference in NCDHW, mirroring the PyTorch forward."""
    def conv(x, w, b):
        y = jax.lax.conv_general_dilated(
            x, w, window_strides=(1, 1, 1),
            padding=((1, 1), (1, 1), (1, 1)),
            dimension_numbers=('NCDHW', 'OIDHW', 'NCDHW'),
            precision=jax.lax.Precision.HIGHEST)
        return y + b[None, :, None, None, None]

    def bn(x, g, be):
        mean = jnp.mean(x, axis=(0, 2, 3, 4), keepdims=True)
        var = jnp.mean(jnp.square(x - mean), axis=(0, 2, 3, 4), keepdims=True)
        return ((x - mean) * jax.lax.rsqrt(var + EPS)
                * g[None, :, None, None, None] + be[None, :, None, None, None])

    y = jax.nn.relu(bn(conv(x, w1, b1), g1, be1))
    y = bn(conv(y, w2, b2), g2, be2)
    return jax.nn.relu(y + x)


if __name__ == "__main__":
    N, C, D, H, W = 2, 4, 8, 8, 8  # input NCDHW
    key = jax.random.PRNGKey(0)
    keys = jax.random.split(key, 9)

    x = jax.random.normal(keys[0], (N, C, D, H, W), jnp.float32)
    # Conv3d(in_d, in_d, 3): weight (C, C, 3, 3, 3), bias (C,)
    w1 = jax.random.normal(keys[1], (C, C, 3, 3, 3), jnp.float32) * 0.1
    b1 = jax.random.normal(keys[2], (C,), jnp.float32) * 0.1
    w2 = jax.random.normal(keys[3], (C, C, 3, 3, 3), jnp.float32) * 0.1
    b2 = jax.random.normal(keys[4], (C,), jnp.float32) * 0.1
    # BatchNorm3d(in_d): gamma/beta (C,) (randomized but deterministic)
    g1 = 1.0 + 0.1 * jax.random.normal(keys[5], (C,), jnp.float32)
    be1 = 0.1 * jax.random.normal(keys[6], (C,), jnp.float32)
    g2 = 1.0 + 0.1 * jax.random.normal(keys[7], (C,), jnp.float32)
    be2 = 0.1 * jax.random.normal(keys[8], (C,), jnp.float32)

    out = res_double_conv(x, w1, b1, g1, be1, w2, b2, g2, be2)
    out = jax.block_until_ready(out)

    ref = jax.block_until_ready(reference(x, w1, b1, g1, be1, w2, b2, g2, be2))
    # Tolerance reflects bf16 MXU operands (accumulation stays f32); logic bugs
    # would produce O(0.1-1) errors, far above this bound.
    np.testing.assert_allclose(np.asarray(out), np.asarray(ref),
                               atol=2e-2, rtol=2e-2)
    print("KERNEL_OK")
</pallas_src>

<mosaic_0001>
module attributes {stable_mosaic.version = 11 : i64} {
  func.func @kernel(%arg0: memref<16x256xf32, #tpu.memory_space<vmem>>, %arg1: memref<3x400x256xbf16, #tpu.memory_space<vmem>>, %arg2: memref<1x256xf32, #tpu.memory_space<vmem>>, %arg3: memref<1x256xf32, #tpu.memory_space<vmem>>, %arg4: memref<1x256xf32, #tpu.memory_space<vmem>>, %arg5: memref<3x400x256xbf16, #tpu.memory_space<vmem>>, %arg6: memref<1x256xf32, #tpu.memory_space<vmem>>, %arg7: memref<1x256xf32, #tpu.memory_space<vmem>>, %arg8: memref<1x256xf32, #tpu.memory_space<vmem>>, %arg9: memref<4x256xf32, #tpu.memory_space<vmem>>, %arg10: memref<256x4xf32, #tpu.memory_space<vmem>>, %arg11: memref<16x256xf32, #tpu.memory_space<vmem>>, %arg12: memref<2x10x400xf32, #tpu.memory_space<vmem>>) attributes {dimension_semantics = [], scalar_prefetch = 0 : i64, scratch_operands = 1 : i64, tpu.core_type = #tpu.core_type<tc>} {
    %c0 = arith.constant 0 : index
    %c0_0 = arith.constant 0 : index
    %0 = vector.load %arg0[%c0, %c0_0] : memref<16x256xf32, #tpu.memory_space<vmem>>, vector<16x256xf32>
    %cst = arith.constant 0.000000e+00 : f32
    %1 = vector.broadcast %cst : f32 to vector<2x10x400xf32>
    %c0_1 = arith.constant 0 : index
    %c0_2 = arith.constant 0 : index
    %c0_3 = arith.constant 0 : index
    %2 = vector.load %arg12[%c0_1, %c0_2, %c0_3] : memref<2x10x400xf32, #tpu.memory_space<vmem>>, vector<2x10x400xf32>
    tpu.vector_store %arg12[%c0_1, %c0_2, %c0_3], %1 {strides = array<i32>} : memref<2x10x400xf32, #tpu.memory_space<vmem>>, vector<2x10x400xf32>,
    %3 = vector.extract_strided_slice %0 {offsets = [0, 0], sizes = [16, 32], strides = [1, 1]} : vector<16x256xf32> to vector<16x32xf32>
    %4 = vector.shape_cast %3 : vector<16x32xf32> to vector<2x8x32xf32>
    %c0_4 = arith.constant 0 : index
    %c1 = arith.constant 1 : index
    %c44 = arith.constant 44 : index
    %5 = vector.load %arg12[%c0_4, %c1, %c44] : memref<2x10x400xf32, #tpu.memory_space<vmem>>, vector<2x8x32xf32>
    tpu.vector_store %arg12[%c0_4, %c1, %c44], %4 {strides = array<i32>} : memref<2x10x400xf32, #tpu.memory_space<vmem>>, vector<2x8x32xf32>,
    %6 = vector.extract_strided_slice %0 {offsets = [0, 32], sizes = [16, 32], strides = [1, 1]} : vector<16x256xf32> to vector<16x32xf32>
    %7 = vector.shape_cast %6 : vector<16x32xf32> to vector<2x8x32xf32>
    %c0_5 = arith.constant 0 : index
    %c1_6 = arith.constant 1 : index
    %c84 = arith.constant 84 : index
    %8 = vector.load %arg12[%c0_5, %c1_6, %c84] : memref<2x10x400xf32, #tpu.memory_space<vmem>>, vector<2x8x32xf32>
    tpu.vector_store %arg12[%c0_5, %c1_6, %c84], %7 {strides = array<i32>} : memref<2x10x400xf32, #tpu.memory_space<vmem>>, vector<2x8x32xf32>,
    %9 = vector.extract_strided_slice %0 {offsets = [0, 64], sizes = [16, 32], strides = [1, 1]} : vector<16x256xf32> to vector<16x32xf32>
    %10 = vector.shape_cast %9 : vector<16x32xf32> to vector<2x8x32xf32>
    %c0_7 = arith.constant 0 : index
    %c1_8 = arith.constant 1 : index
    %c124 = arith.constant 124 : index
    %11 = vector.load %arg12[%c0_7, %c1_8, %c124] : memref<2x10x400xf32, #tpu.memory_space<vmem>>, vector<2x8x32xf32>
    tpu.vector_store %arg12[%c0_7, %c1_8, %c124], %10 {strides = array<i32>} : memref<2x10x400xf32, #tpu.memory_space<vmem>>, vector<2x8x32xf32>,
    %12 = vector.extract_strided_slice %0 {offsets = [0, 96], sizes = [16, 32], strides = [1, 1]} : vector<16x256xf32> to vector<16x32xf32>
    %13 = vector.shape_cast %12 : vector<16x32xf32> to vector<2x8x32xf32>
    %c0_9 = arith.constant 0 : index
    %c1_10 = arith.constant 1 : index
    %c164 = arith.constant 164 : index
    %14 = vector.load %arg12[%c0_9, %c1_10, %c164] : memref<2x10x400xf32, #tpu.memory_space<vmem>>, vector<2x8x32xf32>
    tpu.vector_store %arg12[%c0_9, %c1_10, %c164], %13 {strides = array<i32>} : memref<2x10x400xf32, #tpu.memory_space<vmem>>, vector<2x8x32xf32>,
    %15 = vector.extract_strided_slice %0 {offsets = [0, 128], sizes = [16, 32], strides = [1, 1]} : vector<16x256xf32> to vector<16x32xf32>
    %16 = vector.shape_cast %15 : vector<16x32xf32> to vector<2x8x32xf32>
    %c0_11 = arith.constant 0 : index
    %c1_12 = arith.constant 1 : index
    %c204 = arith.constant 204 : index
    %17 = vector.load %arg12[%c0_11, %c1_12, %c204] : memref<2x10x400xf32, #tpu.memory_space<vmem>>, vector<2x8x32xf32>
    tpu.vector_store %arg12[%c0_11, %c1_12, %c204], %16 {strides = array<i32>} : memref<2x10x400xf32, #tpu.memory_space<vmem>>, vector<2x8x32xf32>,
    %18 = vector.extract_strided_slice %0 {offsets = [0, 160], sizes = [16, 32], strides = [1, 1]} : vector<16x256xf32> to vector<16x32xf32>
    %19 = vector.shape_cast %18 : vector<16x32xf32> to vector<2x8x32xf32>
    %c0_13 = arith.constant 0 : index
    %c1_14 = arith.constant 1 : index
    %c244 = arith.constant 244 : index
    %20 = vector.load %arg12[%c0_13, %c1_14, %c244] : memref<2x10x400xf32, #tpu.memory_space<vmem>>, vector<2x8x32xf32>
    tpu.vector_store %arg12[%c0_13, %c1_14, %c244], %19 {strides = array<i32>} : memref<2x10x400xf32, #tpu.memory_space<vmem>>, vector<2x8x32xf32>,
    %21 = vector.extract_strided_slice %0 {offsets = [0, 192], sizes = [16, 32], strides = [1, 1]} : vector<16x256xf32> to vector<16x32xf32>
    %22 = vector.shape_cast %21 : vector<16x32xf32> to vector<2x8x32xf32>
    %c0_15 = arith.constant 0 : index
    %c1_16 = arith.constant 1 : index
    %c284 = arith.constant 284 : index
    %23 = vector.load %arg12[%c0_15, %c1_16, %c284] : memref<2x10x400xf32, #tpu.memory_space<vmem>>, vector<2x8x32xf32>
    tpu.vector_store %arg12[%c0_15, %c1_16, %c284], %22 {strides = array<i32>} : memref<2x10x400xf32, #tpu.memory_space<vmem>>, vector<2x8x32xf32>,
    %24 = vector.extract_strided_slice %0 {offsets = [0, 224], sizes = [16, 32], strides = [1, 1]} : vector<16x256xf32> to vector<16x32xf32>
    %25 = vector.shape_cast %24 : vector<16x32xf32> to vector<2x8x32xf32>
    %c0_17 = arith.constant 0 : index
    %c1_18 = arith.constant 1 : index
    %c324 = arith.constant 324 : index
    %26 = vector.load %arg12[%c0_17, %c1_18, %c324] : memref<2x10x400xf32, #tpu.memory_space<vmem>>, vector<2x8x32xf32>
    tpu.vector_store %arg12[%c0_17, %c1_18, %c324], %25 {strides = array<i32>} : memref<2x10x400xf32, #tpu.memory_space<vmem>>, vector<2x8x32xf32>,
    %c0_19 = arith.constant 0 : index
    %c0_20 = arith.constant 0 : index
    %27 = vector.load %arg2[%c0_19, %c0_20] : memref<1x256xf32, #tpu.memory_space<vmem>>, vector<1x256xf32>
    %cst_21 = arith.constant 0.000000e+00 : f32
    %28 = vector.broadcast %cst_21 : f32 to vector<16x256xf32>
    %c0_22 = arith.constant 0 : index
    %c0_23 = arith.constant 0 : index
    %c0_24 = arith.constant 0 : index
    %29 = vector.load %arg12[%c0_22, %c0_23, %c0_24] : memref<2x10x400xf32, #tpu.memory_space<vmem>>, vector<2x8x400xf32>
    %30 = vector.shape_cast %29 : vector<2x8x400xf32> to vector<16x400xf32>
    %31 = arith.truncf %30 : vector<16x400xf32> to vector<16x400xbf16>
    %c0_25 = arith.constant 0 : index
    %c0_26 = arith.constant 0 : index
    %c0_27 = arith.constant 0 : index
    %32 = vector.load %arg1[%c0_25, %c0_26, %c0_27] : memref<3x400x256xbf16, #tpu.memory_space<vmem>>, vector<1x400x256xbf16>
    %33 = vector.shape_cast %32 : vector<1x400x256xbf16> to vector<400x256xbf16>
    %cst_28 = arith.constant dense<0.000000e+00> : vector<16x256xf32>
    %34 = tpu.matmul %31, %33, %cst_28 {dimension_numbers = #tpu.dot_dimension_numbers<[1], [0], [0], [1], [0, 0, 1, 1], [], []>} : vector<16x400xbf16>, vector<400x256xbf16>, vector<16x256xf32> -> vector<16x256xf32>
    %35 = arith.addf %28, %34 : vector<16x256xf32>
    %c0_29 = arith.constant 0 : index
    %c1_30 = arith.constant 1 : index
    %c0_31 = arith.constant 0 : index
    %36 = vector.load %arg12[%c0_29, %c1_30, %c0_31] : memref<2x10x400xf32, #tpu.memory_space<vmem>>, vector<2x8x400xf32>
    %37 = vector.shape_cast %36 : vector<2x8x400xf32> to vector<16x400xf32>
    %38 = arith.truncf %37 : vector<16x400xf32> to vector<16x400xbf16>
    %c1_32 = arith.constant 1 : index
    %c0_33 = arith.constant 0 : index
    %c0_34 = arith.constant 0 : index
    %39 = vector.load %arg1[%c1_32, %c0_33, %c0_34] : memref<3x400x256xbf16, #tpu.memory_space<vmem>>, vector<1x400x256xbf16>
    %40 = vector.shape_cast %39 : vector<1x400x256xbf16> to vector<400x256xbf16>
    %cst_35 = arith.constant dense<0.000000e+00> : vector<16x256xf32>
    %41 = tpu.matmul %38, %40, %cst_35 {dimension_numbers = #tpu.dot_dimension_numbers<[1], [0], [0], [1], [0, 0, 1, 1], [], []>} : vector<16x400xbf16>, vector<400x256xbf16>, vector<16x256xf32> -> vector<16x256xf32>
    %42 = arith.addf %35, %41 : vector<16x256xf32>
    %c0_36 = arith.constant 0 : index
    %c2 = arith.constant 2 : index
    %c0_37 = arith.constant 0 : index
    %43 = vector.load %arg12[%c0_36, %c2, %c0_37] : memref<2x10x400xf32, #tpu.memory_space<vmem>>, vector<2x8x400xf32>
    %44 = vector.shape_cast %43 : vector<2x8x400xf32> to vector<16x400xf32>
    %45 = arith.truncf %44 : vector<16x400xf32> to vector<16x400xbf16>
    %c2_38 = arith.constant 2 : index
    %c0_39 = arith.constant 0 : index
    %c0_40 = arith.constant 0 : index
    %46 = vector.load %arg1[%c2_38, %c0_39, %c0_40] : memref<3x400x256xbf16, #tpu.memory_space<vmem>>, vector<1x400x256xbf16>
    %47 = vector.shape_cast %46 : vector<1x400x256xbf16> to vector<400x256xbf16>
    %cst_41 = arith.constant dense<0.000000e+00> : vector<16x256xf32>
    %48 = tpu.matmul %45, %47, %cst_41 {dimension_numbers = #tpu.dot_dimension_numbers<[1], [0], [0], [1], [0, 0, 1, 1], [], []>} : vector<16x400xbf16>, vector<400x256xbf16>, vector<16x256xf32> -> vector<16x256xf32>
    %49 = arith.addf %42, %48 : vector<16x256xf32>
    %50 = vector.broadcast %27 : vector<1x256xf32> to vector<16x256xf32>
    %51 = arith.addf %49, %50 : vector<16x256xf32>
    %c0_42 = arith.constant 0 : index
    %c0_43 = arith.constant 0 : index
    %52 = vector.load %arg3[%c0_42, %c0_43] : memref<1x256xf32, #tpu.memory_space<vmem>>, vector<1x256xf32>
    %c0_44 = arith.constant 0 : index
    %c0_45 = arith.constant 0 : index
    %53 = vector.load %arg4[%c0_44, %c0_45] : memref<1x256xf32, #tpu.memory_space<vmem>>, vector<1x256xf32>
    %cst_46 = arith.constant dense<0.000000e+00> : vector<256xf32>
    %54 = vector.multi_reduction <add>, %51, %cst_46 [0] : vector<16x256xf32> to vector<256xf32>
    %55 = vector.shape_cast %54 : vector<256xf32> to vector<1x256xf32>
    %56 = arith.mulf %51, %51 : vector<16x256xf32>
    %cst_47 = arith.constant dense<0.000000e+00> : vector<256xf32>
    %57 = vector.multi_reduction <add>, %56, %cst_47 [0] : vector<16x256xf32> to vector<256xf32>
    %58 = vector.shape_cast %57 : vector<256xf32> to vector<1x256xf32>
    %c0_48 = arith.constant 0 : index
    %c0_49 = arith.constant 0 : index
    %59 = vector.load %arg10[%c0_48, %c0_49] : memref<256x4xf32, #tpu.memory_space<vmem>>, vector<256x4xf32>
    %cst_50 = arith.constant dense<0.000000e+00> : vector<1x4xf32>
    %60 = tpu.matmul %55, %59, %cst_50 {dimension_numbers = #tpu.dot_dimension_numbers<[1], [0], [0], [1], [0, 0, 1, 1], [], []>} : vector<1x256xf32>, vector<256x4xf32>, vector<1x4xf32> -> vector<1x4xf32>
    %c0_51 = arith.constant 0 : index
    %c0_52 = arith.constant 0 : index
    %61 = vector.load %arg10[%c0_51, %c0_52] : memref<256x4xf32, #tpu.memory_space<vmem>>, vector<256x4xf32>
    %cst_53 = arith.constant dense<0.000000e+00> : vector<1x4xf32>
    %62 = tpu.matmul %58, %61, %cst_53 {dimension_numbers = #tpu.dot_dimension_numbers<[1], [0], [0], [1], [0, 0, 1, 1], [], []>} : vector<1x256xf32>, vector<256x4xf32>, vector<1x4xf32> -> vector<1x4xf32>
    %cst_54 = arith.constant 9.765625E-4 : f32
    %63 = vector.broadcast %cst_54 : f32 to vector<1x4xf32>
    %64 = arith.mulf %60, %63 : vector<1x4xf32>
    %cst_55 = arith.constant 9.765625E-4 : f32
    %65 = vector.broadcast %cst_55 : f32 to vector<1x4xf32>
    %66 = arith.mulf %62, %65 : vector<1x4xf32>
    %67 = arith.mulf %64, %64 : vector<1x4xf32>
    %68 = arith.subf %66, %67 : vector<1x4xf32>
    %cst_56 = arith.constant 9.99999974E-6 : f32
    %69 = vector.broadcast %cst_56 : f32 to vector<1x4xf32>
    %70 = arith.addf %68, %69 : vector<1x4xf32>
    %71 = math.rsqrt %70 : vector<1x4xf32>
    %c0_57 = arith.constant 0 : index
    %c0_58 = arith.constant 0 : index
    %72 = vector.load %arg9[%c0_57, %c0_58] : memref<4x256xf32, #tpu.memory_space<vmem>>, vector<4x256xf32>
    %cst_59 = arith.constant dense<0.000000e+00> : vector<1x256xf32>
    %73 = tpu.matmul %64, %72, %cst_59 {dimension_numbers = #tpu.dot_dimension_numbers<[1], [0], [0], [1], [0, 0, 1, 1], [], []>} : vector<1x4xf32>, vector<4x256xf32>, vector<1x256xf32> -> vector<1x256xf32>
    %c0_60 = arith.constant 0 : index
    %c0_61 = arith.constant 0 : index
    %74 = vector.load %arg9[%c0_60, %c0_61] : memref<4x256xf32, #tpu.memory_space<vmem>>, vector<4x256xf32>
    %cst_62 = arith.constant dense<0.000000e+00> : vector<1x256xf32>
    %75 = tpu.matmul %71, %74, %cst_62 {dimension_numbers = #tpu.dot_dimension_numbers<[1], [0], [0], [1], [0, 0, 1, 1], [], []>} : vector<1x4xf32>, vector<4x256xf32>, vector<1x256xf32> -> vector<1x256xf32>
    %76 = vector.broadcast %73 : vector<1x256xf32> to vector<16x256xf32>
    %77 = arith.subf %51, %76 : vector<16x256xf32>
    %78 = arith.mulf %75, %52 : vector<1x256xf32>
    %79 = vector.broadcast %78 : vector<1x256xf32> to vector<16x256xf32>
    %80 = arith.mulf %77, %79 : vector<16x256xf32>
    %81 = vector.broadcast %53 : vector<1x256xf32> to vector<16x256xf32>
    %82 = arith.addf %80, %81 : vector<16x256xf32>
    %cst_63 = arith.constant 0.000000e+00 : f32
    %83 = vector.broadcast %cst_63 : f32 to vector<16x256xf32>
    %84 = arith.maximumf %82, %83 : vector<16x256xf32>
    %85 = vector.extract_strided_slice %84 {offsets = [0, 0], sizes = [16, 32], strides = [1, 1]} : vector<16x256xf32> to vector<16x32xf32>
    %86 = vector.shape_cast %85 : vector<16x32xf32> to vector<2x8x32xf32>
    %c0_64 = arith.constant 0 : index
    %c1_65 = arith.constant 1 : index
    %c44_66 = arith.constant 44 : index
    %87 = vector.load %arg12[%c0_64, %c1_65, %c44_66] : memref<2x10x400xf32, #tpu.memory_space<vmem>>, vector<2x8x32xf32>
    tpu.vector_store %arg12[%c0_64, %c1_65, %c44_66], %86 {strides = array<i32>} : memref<2x10x400xf32, #tpu.memory_space<vmem>>, vector<2x8x32xf32>,
    %88 = vector.extract_strided_slice %84 {offsets = [0, 32], sizes = [16, 32], strides = [1, 1]} : vector<16x256xf32> to vector<16x32xf32>
    %89 = vector.shape_cast %88 : vector<16x32xf32> to vector<2x8x32xf32>
    %c0_67 = arith.constant 0 : index
    %c1_68 = arith.constant 1 : index
    %c84_69 = arith.constant 84 : index
    %90 = vector.load %arg12[%c0_67, %c1_68, %c84_69] : memref<2x10x400xf32, #tpu.memory_space<vmem>>, vector<2x8x32xf32>
    tpu.vector_store %arg12[%c0_67, %c1_68, %c84_69], %89 {strides = array<i32>} : memref<2x10x400xf32, #tpu.memory_space<vmem>>, vector<2x8x32xf32>,
    %91 = vector.extract_strided_slice %84 {offsets = [0, 64], sizes = [16, 32], strides = [1, 1]} : vector<16x256xf32> to vector<16x32xf32>
    %92 = vector.shape_cast %91 : vector<16x32xf32> to vector<2x8x32xf32>
    %c0_70 = arith.constant 0 : index
    %c1_71 = arith.constant 1 : index
    %c124_72 = arith.constant 124 : index
    %93 = vector.load %arg12[%c0_70, %c1_71, %c124_72] : memref<2x10x400xf32, #tpu.memory_space<vmem>>, vector<2x8x32xf32>
    tpu.vector_store %arg12[%c0_70, %c1_71, %c124_72], %92 {strides = array<i32>} : memref<2x10x400xf32, #tpu.memory_space<vmem>>, vector<2x8x32xf32>,
    %94 = vector.extract_strided_slice %84 {offsets = [0, 96], sizes = [16, 32], strides = [1, 1]} : vector<16x256xf32> to vector<16x32xf32>
    %95 = vector.shape_cast %94 : vector<16x32xf32> to vector<2x8x32xf32>
    %c0_73 = arith.constant 0 : index
    %c1_74 = arith.constant 1 : index
    %c164_75 = arith.constant 164 : index
    %96 = vector.load %arg12[%c0_73, %c1_74, %c164_75] : memref<2x10x400xf32, #tpu.memory_space<vmem>>, vector<2x8x32xf32>
    tpu.vector_store %arg12[%c0_73, %c1_74, %c164_75], %95 {strides = array<i32>} : memref<2x10x400xf32, #tpu.memory_space<vmem>>, vector<2x8x32xf32>,
    %97 = vector.extract_strided_slice %84 {offsets = [0, 128], sizes = [16, 32], strides = [1, 1]} : vector<16x256xf32> to vector<16x32xf32>
    %98 = vector.shape_cast %97 : vector<16x32xf32> to vector<2x8x32xf32>
    %c0_76 = arith.constant 0 : index
    %c1_77 = arith.constant 1 : index
    %c204_78 = arith.constant 204 : index
    %99 = vector.load %arg12[%c0_76, %c1_77, %c204_78] : memref<2x10x400xf32, #tpu.memory_space<vmem>>, vector<2x8x32xf32>
    tpu.vector_store %arg12[%c0_76, %c1_77, %c204_78], %98 {strides = array<i32>} : memref<2x10x400xf32, #tpu.memory_space<vmem>>, vector<2x8x32xf32>,
    %100 = vector.extract_strided_slice %84 {offsets = [0, 160], sizes = [16, 32], strides = [1, 1]} : vector<16x256xf32> to vector<16x32xf32>
    %101 = vector.shape_cast %100 : vector<16x32xf32> to vector<2x8x32xf32>
    %c0_79 = arith.constant 0 : index
    %c1_80 = arith.constant 1 : index
    %c244_81 = arith.constant 244 : index
    %102 = vector.load %arg12[%c0_79, %c1_80, %c244_81] : memref<2x10x400xf32, #tpu.memory_space<vmem>>, vector<2x8x32xf32>
    tpu.vector_store %arg12[%c0_79, %c1_80, %c244_81], %101 {strides = array<i32>} : memref<2x10x400xf32, #tpu.memory_space<vmem>>, vector<2x8x32xf32>,
    %103 = vector.extract_strided_slice %84 {offsets = [0, 192], sizes = [16, 32], strides = [1, 1]} : vector<16x256xf32> to vector<16x32xf32>
    %104 = vector.shape_cast %103 : vector<16x32xf32> to vector<2x8x32xf32>
    %c0_82 = arith.constant 0 : index
    %c1_83 = arith.constant 1 : index
    %c284_84 = arith.constant 284 : index
    %105 = vector.load %arg12[%c0_82, %c1_83, %c284_84] : memref<2x10x400xf32, #tpu.memory_space<vmem>>, vector<2x8x32xf32>
    tpu.vector_store %arg12[%c0_82, %c1_83, %c284_84], %104 {strides = array<i32>} : memref<2x10x400xf32, #tpu.memory_space<vmem>>, vector<2x8x32xf32>,
    %106 = vector.extract_strided_slice %84 {offsets = [0, 224], sizes = [16, 32], strides = [1, 1]} : vector<16x256xf32> to vector<16x32xf32>
    %107 = vector.shape_cast %106 : vector<16x32xf32> to vector<2x8x32xf32>
    %c0_85 = arith.constant 0 : index
    %c1_86 = arith.constant 1 : index
    %c324_87 = arith.constant 324 : index
    %108 = vector.load %arg12[%c0_85, %c1_86, %c324_87] : memref<2x10x400xf32, #tpu.memory_space<vmem>>, vector<2x8x32xf32>
    tpu.vector_store %arg12[%c0_85, %c1_86, %c324_87], %107 {strides = array<i32>} : memref<2x10x400xf32, #tpu.memory_space<vmem>>, vector<2x8x32xf32>,
    %c0_88 = arith.constant 0 : index
    %c0_89 = arith.constant 0 : index
    %109 = vector.load %arg6[%c0_88, %c0_89] : memref<1x256xf32, #tpu.memory_space<vmem>>, vector<1x256xf32>
    %cst_90 = arith.constant 0.000000e+00 : f32
    %110 = vector.broadcast %cst_90 : f32 to vector<16x256xf32>
    %c0_91 = arith.constant 0 : index
    %c0_92 = arith.constant 0 : index
    %c0_93 = arith.constant 0 : index
    %111 = vector.load %arg12[%c0_91, %c0_92, %c0_93] : memref<2x10x400xf32, #tpu.memory_space<vmem>>, vector<2x8x400xf32>
    %112 = vector.shape_cast %111 : vector<2x8x400xf32> to vector<16x400xf32>
    %113 = arith.truncf %112 : vector<16x400xf32> to vector<16x400xbf16>
    %c0_94 = arith.constant 0 : index
    %c0_95 = arith.constant 0 : index
    %c0_96 = arith.constant 0 : index
    %114 = vector.load %arg5[%c0_94, %c0_95, %c0_96] : memref<3x400x256xbf16, #tpu.memory_space<vmem>>, vector<1x400x256xbf16>
    %115 = vector.shape_cast %114 : vector<1x400x256xbf16> to vector<400x256xbf16>
    %cst_97 = arith.constant dense<0.000000e+00> : vector<16x256xf32>
    %116 = tpu.matmul %113, %115, %cst_97 {dimension_numbers = #tpu.dot_dimension_numbers<[1], [0], [0], [1], [0, 0, 1, 1], [], []>} : vector<16x400xbf16>, vector<400x256xbf16>, vector<16x256xf32> -> vector<16x256xf32>
    %117 = arith.addf %110, %116 : vector<16x256xf32>
    %c0_98 = arith.constant 0 : index
    %c1_99 = arith.constant 1 : index
    %c0_100 = arith.constant 0 : index
    %118 = vector.load %arg12[%c0_98, %c1_99, %c0_100] : memref<2x10x400xf32, #tpu.memory_space<vmem>>, vector<2x8x400xf32>
    %119 = vector.shape_cast %118 : vector<2x8x400xf32> to vector<16x400xf32>
    %120 = arith.truncf %119 : vector<16x400xf32> to vector<16x400xbf16>
    %c1_101 = arith.constant 1 : index
    %c0_102 = arith.constant 0 : index
    %c0_103 = arith.constant 0 : index
    %121 = vector.load %arg5[%c1_101, %c0_102, %c0_103] : memref<3x400x256xbf16, #tpu.memory_space<vmem>>, vector<1x400x256xbf16>
    %122 = vector.shape_cast %121 : vector<1x400x256xbf16> to vector<400x256xbf16>
    %cst_104 = arith.constant dense<0.000000e+00> : vector<16x256xf32>
    %123 = tpu.matmul %120, %122, %cst_104 {dimension_numbers = #tpu.dot_dimension_numbers<[1], [0], [0], [1], [0, 0, 1, 1], [], []>} : vector<16x400xbf16>, vector<400x256xbf16>, vector<16x256xf32> -> vector<16x256xf32>
    %124 = arith.addf %117, %123 : vector<16x256xf32>
    %c0_105 = arith.constant 0 : index
    %c2_106 = arith.constant 2 : index
    %c0_107 = arith.constant 0 : index
    %125 = vector.load %arg12[%c0_105, %c2_106, %c0_107] : memref<2x10x400xf32, #tpu.memory_space<vmem>>, vector<2x8x400xf32>
    %126 = vector.shape_cast %125 : vector<2x8x400xf32> to vector<16x400xf32>
    %127 = arith.truncf %126 : vector<16x400xf32> to vector<16x400xbf16>
    %c2_108 = arith.constant 2 : index
    %c0_109 = arith.constant 0 : index
    %c0_110 = arith.constant 0 : index
    %128 = vector.load %arg5[%c2_108, %c0_109, %c0_110] : memref<3x400x256xbf16, #tpu.memory_space<vmem>>, vector<1x400x256xbf16>
    %129 = vector.shape_cast %128 : vector<1x400x256xbf16> to vector<400x256xbf16>
    %cst_111 = arith.constant dense<0.000000e+00> : vector<16x256xf32>
    %130 = tpu.matmul %127, %129, %cst_111 {dimension_numbers = #tpu.dot_dimension_numbers<[1], [0], [0], [1], [0, 0, 1, 1], [], []>} : vector<16x400xbf16>, vector<400x256xbf16>, vector<16x256xf32> -> vector<16x256xf32>
    %131 = arith.addf %124, %130 : vector<16x256xf32>
    %132 = vector.broadcast %109 : vector<1x256xf32> to vector<16x256xf32>
    %133 = arith.addf %131, %132 : vector<16x256xf32>
    %c0_112 = arith.constant 0 : index
    %c0_113 = arith.constant 0 : index
    %134 = vector.load %arg7[%c0_112, %c0_113] : memref<1x256xf32, #tpu.memory_space<vmem>>, vector<1x256xf32>
    %c0_114 = arith.constant 0 : index
    %c0_115 = arith.constant 0 : index
    %135 = vector.load %arg8[%c0_114, %c0_115] : memref<1x256xf32, #tpu.memory_space<vmem>>, vector<1x256xf32>
    %cst_116 = arith.constant dense<0.000000e+00> : vector<256xf32>
    %136 = vector.multi_reduction <add>, %133, %cst_116 [0] : vector<16x256xf32> to vector<256xf32>
    %137 = vector.shape_cast %136 : vector<256xf32> to vector<1x256xf32>
    %138 = arith.mulf %133, %133 : vector<16x256xf32>
    %cst_117 = arith.constant dense<0.000000e+00> : vector<256xf32>
    %139 = vector.multi_reduction <add>, %138, %cst_117 [0] : vector<16x256xf32> to vector<256xf32>
    %140 = vector.shape_cast %139 : vector<256xf32> to vector<1x256xf32>
    %c0_118 = arith.constant 0 : index
    %c0_119 = arith.constant 0 : index
    %141 = vector.load %arg10[%c0_118, %c0_119] : memref<256x4xf32, #tpu.memory_space<vmem>>, vector<256x4xf32>
    %cst_120 = arith.constant dense<0.000000e+00> : vector<1x4xf32>
    %142 = tpu.matmul %137, %141, %cst_120 {dimension_numbers = #tpu.dot_dimension_numbers<[1], [0], [0], [1], [0, 0, 1, 1], [], []>} : vector<1x256xf32>, vector<256x4xf32>, vector<1x4xf32> -> vector<1x4xf32>
    %c0_121 = arith.constant 0 : index
    %c0_122 = arith.constant 0 : index
    %143 = vector.load %arg10[%c0_121, %c0_122] : memref<256x4xf32, #tpu.memory_space<vmem>>, vector<256x4xf32>
    %cst_123 = arith.constant dense<0.000000e+00> : vector<1x4xf32>
    %144 = tpu.matmul %140, %143, %cst_123 {dimension_numbers = #tpu.dot_dimension_numbers<[1], [0], [0], [1], [0, 0, 1, 1], [], []>} : vector<1x256xf32>, vector<256x4xf32>, vector<1x4xf32> -> vector<1x4xf32>
    %cst_124 = arith.constant 9.765625E-4 : f32
    %145 = vector.broadcast %cst_124 : f32 to vector<1x4xf32>
    %146 = arith.mulf %142, %145 : vector<1x4xf32>
    %cst_125 = arith.constant 9.765625E-4 : f32
    %147 = vector.broadcast %cst_125 : f32 to vector<1x4xf32>
    %148 = arith.mulf %144, %147 : vector<1x4xf32>
    %149 = arith.mulf %146, %146 : vector<1x4xf32>
    %150 = arith.subf %148, %149 : vector<1x4xf32>
    %cst_126 = arith.constant 9.99999974E-6 : f32
    %151 = vector.broadcast %cst_126 : f32 to vector<1x4xf32>
    %152 = arith.addf %150, %151 : vector<1x4xf32>
    %153 = math.rsqrt %152 : vector<1x4xf32>
    %c0_127 = arith.constant 0 : index
    %c0_128 = arith.constant 0 : index
    %154 = vector.load %arg9[%c0_127, %c0_128] : memref<4x256xf32, #tpu.memory_space<vmem>>, vector<4x256xf32>
    %cst_129 = arith.constant dense<0.000000e+00> : vector<1x256xf32>
    %155 = tpu.matmul %146, %154, %cst_129 {dimension_numbers = #tpu.dot_dimension_numbers<[1], [0], [0], [1], [0, 0, 1, 1], [], []>} : vector<1x4xf32>, vector<4x256xf32>, vector<1x256xf32> -> vector<1x256xf32>
    %c0_130 = arith.constant 0 : index
    %c0_131 = arith.constant 0 : index
    %156 = vector.load %arg9[%c0_130, %c0_131] : memref<4x256xf32, #tpu.memory_space<vmem>>, vector<4x256xf32>
    %cst_132 = arith.constant dense<0.000000e+00> : vector<1x256xf32>
    %157 = tpu.matmul %153, %156, %cst_132 {dimension_numbers = #tpu.dot_dimension_numbers<[1], [0], [0], [1], [0, 0, 1, 1], [], []>} : vector<1x4xf32>, vector<4x256xf32>, vector<1x256xf32> -> vector<1x256xf32>
    %158 = vector.broadcast %155 : vector<1x256xf32> to vector<16x256xf32>
    %159 = arith.subf %133, %158 : vector<16x256xf32>
    %160 = arith.mulf %157, %134 : vector<1x256xf32>
    %161 = vector.broadcast %160 : vector<1x256xf32> to vector<16x256xf32>
    %162 = arith.mulf %159, %161 : vector<16x256xf32>
    %163 = vector.broadcast %135 : vector<1x256xf32> to vector<16x256xf32>
    %164 = arith.addf %162, %163 : vector<16x256xf32>
    %165 = arith.addf %164, %0 : vector<16x256xf32>
    %cst_133 = arith.constant 0.000000e+00 : f32
    %166 = vector.broadcast %cst_133 : f32 to vector<16x256xf32>
    %167 = arith.maximumf %165, %166 : vector<16x256xf32>
    %c0_134 = arith.constant 0 : index
    %c0_135 = arith.constant 0 : index
    %168 = vector.load %arg11[%c0_134, %c0_135] : memref<16x256xf32, #tpu.memory_space<vmem>>, vector<16x256xf32>
    tpu.vector_store %arg11[%c0_134, %c0_135], %167 {strides = array<i32>} : memref<16x256xf32, #tpu.memory_space<vmem>>, vector<16x256xf32>,
    return
  }
}

</mosaic_0001>

<llo_original>
// kernel: tpu_custom_call.1
$region0: #{tpu_custom_call.1}
  #allocation0 [shape = 'u32[]', space=smem, size = 0x4, offset = 0x4, fixed_abs, tag = 'smem constant byte address 0x4 - core index']
  #allocation1 [shape = 'u32[144,128]{1,0:T(1,128)}', space=vmem, size = 0x12000, scoped, tag = 'internal scratch']
  #allocation2 [shape = 'f32[2,10,400]{2,1,0:T(8,128)}', space=vmem, size = 0x10000, scoped, tag = 'scratch operand']
  %s0 = inlined_call_operand.vmem [shape: f32[16,256], index: 0, kind: input, shape index: {}]
  %s1 = inlined_call_operand.hbm [shape: bf16[3,400,256], index: 1, kind: input, shape index: {}]
  %s2 = inlined_call_operand.vmem [shape: f32[1,256], index: 2, kind: input, shape index: {}]
  %s3 = inlined_call_operand.vmem [shape: f32[1,256], index: 3, kind: input, shape index: {}]
  %s4 = inlined_call_operand.vmem [shape: f32[1,256], index: 4, kind: input, shape index: {}]
  %s5 = inlined_call_operand.hbm [shape: bf16[3,400,256], index: 5, kind: input, shape index: {}]
  %s6 = inlined_call_operand.vmem [shape: f32[1,256], index: 6, kind: input, shape index: {}]
  %s7 = inlined_call_operand.vmem [shape: f32[1,256], index: 7, kind: input, shape index: {}]
  %s8 = inlined_call_operand.vmem [shape: f32[1,256], index: 8, kind: input, shape index: {}]
  %s9 = inlined_call_operand.vmem [shape: f32[4,256], index: 9, kind: input, shape index: {}]
  %s10 = inlined_call_operand.vmem [shape: f32[256,4], index: 10, kind: input, shape index: {}]
  %s11 = inlined_call_operand.hbm [shape: f32[16,256], index: 11, kind: output, shape index: {}]
  %s12 = sld [smem:[#allocation0]]
  $region62: #{tpu_custom_call.1} parent=0
    _
  %s14 = ssub.s32 1, %s12
  %s15 = scalar_select 0, %s14, %s12
  $region1: #{tpu_custom_call.1} parent=0
    #allocation3 [shape = 'u8[614400]{0}', space=vmem, size = 0x96000, scoped, tag = 'input window, operand 1, single buffered']
    #allocation4 [shape = 's32[1]{0}', space=sflag, size = 0x4, scoped, tag = 'scoped memory for tpu_custom_call.1']
    #allocation5 [shape = 's32[1]{0}', space=sflag, size = 0x4, scoped, tag = 'scoped memory for tpu_custom_call.1']
    #allocation6 [shape = 'u8[614400]{0}', space=vmem, size = 0x96000, scoped, tag = 'input window, operand 5, single buffered']
    #allocation7 [shape = 's32[1]{0}', space=sflag, size = 0x4, scoped, tag = 'scoped memory for tpu_custom_call.1']
    #allocation8 [shape = 'u8[16384]{0}', space=vmem, size = 0x4000, scoped, tag = 'output window, operand 0, single buffered']
    %16 = vsyncpa [#allocation4], 0
    %17 = vsyncpa [#allocation7], 0
    %18 = vsyncpa [#allocation5], 0
    // Predicated region
    $region2: #{tpu_custom_call.1} parent=1 // pred_check
      _
    $region3: #{tpu_custom_call.1} parent=1 // pred_check_branch
      %20 = sbr.rel (0) target = $region5
    $region4: #{tpu_custom_call.1} parent=1 // pred_region
      _
    $region5: #{tpu_custom_call.1} parent=1 // pred_fallthru
      _
    // Predicated region
    $region6: #{tpu_custom_call.1} parent=1 // pred_check
      _
    $region7: #{tpu_custom_call.1} parent=1 // pred_check_branch
      %22 = sbr.rel (0) target = $region9
    $region8: #{tpu_custom_call.1} parent=1 // pred_region
      %s24 = ssub.s32 19200, 19200
      %25 = vsyncadd [#allocation4], %s24
      %s26 = sshll.u32 [#allocation3], 4
      %s27 = int_to_ptr.vmem [resolvable:$true] %s26
      %32 = dma.hbm_to_vmem [thread:$0]  %s1, 19200, %s27, [#allocation4], 128, 128, 8
    $region9: #{tpu_custom_call.1} parent=1 // pred_fallthru
      _
    // Predicated region
    $region10: #{tpu_custom_call.1} parent=1 // pred_check
      _
    $region11: #{tpu_custom_call.1} parent=1 // pred_check_branch
      %34 = sbr.rel (0) target = $region13
    $region12: #{tpu_custom_call.1} parent=1 // pred_region
      _
    $region13: #{tpu_custom_call.1} parent=1 // pred_fallthru
      _
    // Predicated region
    $region14: #{tpu_custom_call.1} parent=1 // pred_check
      _
    $region15: #{tpu_custom_call.1} parent=1 // pred_check_branch
      %36 = sbr.rel (0) target = $region17
    $region16: #{tpu_custom_call.1} parent=1 // pred_region
      _
    $region17: #{tpu_custom_call.1} parent=1 // pred_fallthru
      _
    // Predicated region
    $region18: #{tpu_custom_call.1} parent=1 // pred_check
      _
    $region19: #{tpu_custom_call.1} parent=1 // pred_check_branch
      %38 = sbr.rel (0) target = $region21
    $region20: #{tpu_custom_call.1} parent=1 // pred_region
      _
    $region21: #{tpu_custom_call.1} parent=1 // pred_fallthru
      _
    // Predicated region
    $region22: #{tpu_custom_call.1} parent=1 // pred_check
      _
    $region23: #{tpu_custom_call.1} parent=1 // pred_check_branch
      %40 = sbr.rel (0) target = $region25
    $region24: #{tpu_custom_call.1} parent=1 // pred_region
      %s42 = ssub.s32 19200, 19200
      %43 = vsyncadd [#allocation7], %s42
      %s44 = sshll.u32 [#allocation6], 4
      %s45 = int_to_ptr.vmem [resolvable:$true] %s44
      %50 = dma.hbm_to_vmem [thread:$0]  %s5, 19200, %s45, [#allocation7], 128, 128, 8
    $region25: #{tpu_custom_call.1} parent=1 // pred_fallthru
      _
    // Predicated region
    $region26: #{tpu_custom_call.1} parent=1 // pred_check
      _
    $region27: #{tpu_custom_call.1} parent=1 // pred_check_branch
      %52 = sbr.rel (0) target = $region29
    $region28: #{tpu_custom_call.1} parent=1 // pred_region
      _
    $region29: #{tpu_custom_call.1} parent=1 // pred_fallthru
      _
    // Predicated region
    $region30: #{tpu_custom_call.1} parent=1 // pred_check
      _
    $region31: #{tpu_custom_call.1} parent=1 // pred_check_branch
      %54 = sbr.rel (0) target = $region33
    $region32: #{tpu_custom_call.1} parent=1 // pred_region
      _
    $region33: #{tpu_custom_call.1} parent=1 // pred_fallthru
      _
    // Predicated region
    $region34: #{tpu_custom_call.1} parent=1 // pred_check
      _
    $region35: #{tpu_custom_call.1} parent=1 // pred_check_branch
      %56 = sbr.rel (0) target = $region37
    $region36: #{tpu_custom_call.1} parent=1 // pred_region
      _
    $region37: #{tpu_custom_call.1} parent=1 // pred_fallthru
      _
    // Predicated region
    $region38: #{tpu_custom_call.1} parent=1 // pred_check
      _
    $region39: #{tpu_custom_call.1} parent=1 // pred_check_branch
      %58 = sbr.rel (0) target = $region41
    $region40: #{tpu_custom_call.1} parent=1 // pred_region
      _
    $region41: #{tpu_custom_call.1} parent=1 // pred_fallthru
      _
    // Predicated region
    $region42: #{tpu_custom_call.1} parent=1 // pred_check
      _
    $region43: #{tpu_custom_call.1} parent=1 // pred_check_branch
      %60 = sbr.rel (0) target = $region45
    $region44: #{tpu_custom_call.1} parent=1 // pred_region
      _
    $region45: #{tpu_custom_call.1} parent=1 // pred_fallthru
      _
    // Predicated region
    $region46: #{tpu_custom_call.1} parent=1 // pred_check
      _
    $region47: #{tpu_custom_call.1} parent=1 // pred_check_branch
      %62 = sbr.rel (0) target = $region49
    $region48: #{tpu_custom_call.1} parent=1 // pred_region
      %63 = dma.done [#allocation4], 19200
    $region49: #{tpu_custom_call.1} parent=1 // pred_fallthru
      _
    // Predicated region
    $region50: #{tpu_custom_call.1} parent=1 // pred_check
      _
    $region51: #{tpu_custom_call.1} parent=1 // pred_check_branch
      %65 = sbr.rel (0) target = $region53
    $region52: #{tpu_custom_call.1} parent=1 // pred_region
      %66 = dma.done [#allocation7], 19200
    $region53: #{tpu_custom_call.1} parent=1 // pred_fallthru
      _
    %v68 = vld [vmem:[%s0] sm:$0xff]
    %v69 = vld [vmem:[%s0 + $0x8] sm:$0xff]
    %v70 = vld [vmem:[%s0 + $0x10] sm:$0xff]
    %v71 = vld [vmem:[%s0 + $0x18] sm:$0xff]
    %72 = vst [vmem:[#allocation2] sm:$0xff] 0.0
    %73 = vst [vmem:[#allocation2 + $0x8] sm:$0xff] 0.0
    %74 = vst [vmem:[#allocation2 + $0x10] sm:$0xff] 0.0
    %vm75 = vcmask 130048
    %76 = vst.msk [vmem:[#allocation2 + $0x18] sm:$0xff] %vm75, 0.0
    %77 = vst [vmem:[#allocation2 + $0x20] sm:$0x3] 0.0
    %78 = vst [vmem:[#allocation2 + $0x28] sm:$0x3] 0.0
    %79 = vst [vmem:[#allocation2 + $0x30] sm:$0x3] 0.0
    %vm80 = vcmask 123904
    %81 = vst.msk [vmem:[#allocation2 + $0x38] sm:$0x3] %vm80, 0.0
    %82 = vst [vmem:[#allocation2 + $0x40] sm:$0xff] 0.0
    %83 = vst [vmem:[#allocation2 + $0x48] sm:$0xff] 0.0
    %84 = vst [vmem:[#allocation2 + $0x50] sm:$0xff] 0.0
    %85 = vst.msk [vmem:[#allocation2 + $0x58] sm:$0xff] %vm75, 0.0
    %86 = vst [vmem:[#allocation2 + $0x60] sm:$0x3] 0.0
    %87 = vst [vmem:[#allocation2 + $0x68] sm:$0x3] 0.0
    %88 = vst [vmem:[#allocation2 + $0x70] sm:$0x3] 0.0
    %89 = vst.msk [vmem:[#allocation2 + $0x78] sm:$0x3] %vm80, 0.0
    %v92 = vrot.slane %v68, 7
    %v93 = vrot.slane %v70, 7
    %94 = vrot.lane.b32.xlu0 %v92, 44
    %v95 = vpop.permute.xlu0 %94
    %96 = vrot.lane.b32.xlu0 %v93, 44
    %v97 = vpop.permute.xlu0 %96
    %vm100 = vcmask 621921
    %101 = vst.msk [vmem:[#allocation2] sm:$0xfe] %vm100, %v95
    %vm102 = vcmask 614752
    %103 = vst.msk [vmem:[#allocation2 + $0x20] sm:$0x1] %vm102, %v95
    %104 = vst.msk [vmem:[#allocation2 + $0x40] sm:$0xfe] %vm100, %v97
    %105 = vst.msk [vmem:[#allocation2 + $0x60] sm:$0x1] %vm102, %v97
    %106 = vrot.lane.b32.xlu0 %v92, 52
    %v107 = vpop.permute.xlu0 %106
    %108 = vrot.lane.b32.xlu0 %v93, 52
    %v109 = vpop.permute.xlu0 %108
    %vm112 = vcmask 949921
    %113 = vst.msk [vmem:[#allocation2] sm:$0xfe] %vm112, %v107
    %vm114 = vcmask 942752
    %115 = vst.msk [vmem:[#allocation2 + $0x20] sm:$0x1] %vm114, %v107
    %116 = vst.msk [vmem:[#allocation2 + $0x40] sm:$0xfe] %vm112, %v109
    %117 = vst.msk [vmem:[#allocation2 + $0x60] sm:$0x1] %vm114, %v109
    %118 = vrot.lane.b32.xlu0 %v92, 60
    %v119 = vpop.permute.xlu0 %118
    %120 = vrot.lane.b32.xlu0 %v93, 60
    %v121 = vpop.permute.xlu0 %120
    %vm124 = vcmask 1048545
    %125 = vst.msk [vmem:[#allocation2] sm:$0xfe] %vm124, %v119
    %vm126 = vcmask 228353
    %127 = vst.msk [vmem:[#allocation2 + $0x8] sm:$0xfe] %vm126, %v119
    %vm128 = vcmask 1041376
    %129 = vst.msk [vmem:[#allocation2 + $0x20] sm:$0x1] %vm128, %v119
    %vm130 = vcmask 221184
    %131 = vst.msk [vmem:[#allocation2 + $0x28] sm:$0x1] %vm130, %v119
    %132 = vst.msk [vmem:[#allocation2 + $0x40] sm:$0xfe] %vm124, %v121
    %133 = vst.msk [vmem:[#allocation2 + $0x48] sm:$0xfe] %vm126, %v121
    %134 = vst.msk [vmem:[#allocation2 + $0x60] sm:$0x1] %vm128, %v121
    %135 = vst.msk [vmem:[#allocation2 + $0x68] sm:$0x1] %vm130, %v121
    %136 = vrot.lane.b32.xlu0 %v92, 68
    %v137 = vpop.permute.xlu0 %136
    %138 = vrot.lane.b32.xlu0 %v93, 68
    %v139 = vpop.permute.xlu0 %138
    %vm142 = vcmask 556321
    %143 = vst.msk [vmem:[#allocation2 + $0x8] sm:$0xfe] %vm142, %v137
    %vm144 = vcmask 549152
    %145 = vst.msk [vmem:[#allocation2 + $0x28] sm:$0x1] %vm144, %v137
    %146 = vst.msk [vmem:[#allocation2 + $0x48] sm:$0xfe] %vm142, %v139
    %147 = vst.msk [vmem:[#allocation2 + $0x68] sm:$0x1] %vm144, %v139
    %v150 = vrot.slane %v69, 7
    %v151 = vrot.slane %v71, 7
    %152 = vrot.lane.b32.xlu0 %v150, 76
    %v153 = vpop.permute.xlu0 %152
    %154 = vrot.lane.b32.xlu0 %v151, 76
    %v155 = vpop.permute.xlu0 %154
    %vm158 = vcmask 884321
    %159 = vst.msk [vmem:[#allocation2 + $0x8] sm:$0xfe] %vm158, %v153
    %vm160 = vcmask 877152
    %161 = vst.msk [vmem:[#allocation2 + $0x28] sm:$0x1] %vm160, %v153
    %162 = vst.msk [vmem:[#allocation2 + $0x48] sm:$0xfe] %vm158, %v155
    %163 = vst.msk [vmem:[#allocation2 + $0x68] sm:$0x1] %vm160, %v155
    %164 = vrot.lane.b32.xlu0 %v150, 84
    %v165 = vpop.permute.xlu0 %164
    %166 = vrot.lane.b32.xlu0 %v151, 84
    %v167 = vpop.permute.xlu0 %166
    %vm170 = vcmask 1048481
    %171 = vst.msk [vmem:[#allocation2 + $0x8] sm:$0xfe] %vm170, %v165
    %vm172 = vcmask 162817
    %173 = vst.msk [vmem:[#allocation2 + $0x10] sm:$0xfe] %vm172, %v165
    %vm174 = vcmask 1041312
    %175 = vst.msk [vmem:[#allocation2 + $0x28] sm:$0x1] %vm174, %v165
    %vm176 = vcmask 155648
    %177 = vst.msk [vmem:[#allocation2 + $0x30] sm:$0x1] %vm176, %v165
    %178 = vst.msk [vmem:[#allocation2 + $0x48] sm:$0xfe] %vm170, %v167
    %179 = vst.msk [vmem:[#allocation2 + $0x50] sm:$0xfe] %vm172, %v167
    %180 = vst.msk [vmem:[#allocation2 + $0x68] sm:$0x1] %vm174, %v167
    %181 = vst.msk [vmem:[#allocation2 + $0x70] sm:$0x1] %vm176, %v167
    %182 = vrot.lane.b32.xlu0 %v150, 92
    %v183 = vpop.permute.xlu0 %182
    %184 = vrot.lane.b32.xlu0 %v151, 92
    %v185 = vpop.permute.xlu0 %184
    %vm188 = vcmask 490721
    %189 = vst.msk [vmem:[#allocation2 + $0x10] sm:$0xfe] %vm188, %v183
    %vm190 = vcmask 483552
    %191 = vst.msk [vmem:[#allocation2 + $0x30] sm:$0x1] %vm190, %v183
    %192 = vst.msk [vmem:[#allocation2 + $0x50] sm:$0xfe] %vm188, %v185
    %193 = vst.msk [vmem:[#allocation2 + $0x70] sm:$0x1] %vm190, %v185
    %194 = vrot.lane.b32.xlu0 %v150, 100
    %v195 = vpop.permute.xlu0 %194
    %196 = vrot.lane.b32.xlu0 %v151, 100
    %v197 = vpop.permute.xlu0 %196
    %vm200 = vcmask 818721
    %201 = vst.msk [vmem:[#allocation2 + $0x10] sm:$0xfe] %vm200, %v195
    %vm202 = vcmask 811552
    %203 = vst.msk [vmem:[#allocation2 + $0x30] sm:$0x1] %vm202, %v195
    %204 = vst.msk [vmem:[#allocation2 + $0x50] sm:$0xfe] %vm200, %v197
    %205 = vst.msk [vmem:[#allocation2 + $0x70] sm:$0x1] %vm202, %v197
    %v206 = vld [vmem:[%s2] sm:$0x3]
    %v207 = vld [vmem:[#allocation2] sm:$0xff]
    %v208 = vld [vmem:[#allocation2 + $0x8] sm:$0xff]
    %v209 = vld [vmem:[#allocation2 + $0x10] sm:$0xff]
    %v210 = vld [vmem:[#allocation2 + $0x18] sm:$0xff]
    %v211 = vld [vmem:[#allocation2 + $0x40] sm:$0xff]
    %v212 = vld [vmem:[#allocation2 + $0x48] sm:$0xff]
    %v213 = vld [vmem:[#allocation2 + $0x50] sm:$0xff]
    %v214 = vld [vmem:[#allocation2 + $0x58] sm:$0xff]
    %v215 = vpack.c.bf16 %v211, %v207
    %v216 = vpack.c.bf16 %v212, %v208
    %v217 = vpack.c.bf16 %v213, %v209
    %v218 = vpack.c.bf16 %v214, %v210
    %v219 = vld [vmem:[#allocation3] sm:$0xff]
    %v220 = vld [vmem:[#allocation3 + $0x8] sm:$0xff]
    %v221 = vld [vmem:[#allocation3 + $0x10] sm:$0xff]
    %v222 = vld [vmem:[#allocation3 + $0x18] sm:$0xff]
    %v223 = vld [vmem:[#allocation3 + $0x20] sm:$0xff]
    %v224 = vld [vmem:[#allocation3 + $0x28] sm:$0xff]
    %v225 = vld [vmem:[#allocation3 + $0x30] sm:$0xff]
    %v226 = vld [vmem:[#allocation3 + $0x38] sm:$0xff]
    %v227 = vld [vmem:[#allocation3 + $0x40] sm:$0xff]
    %v228 = vld [vmem:[#allocation3 + $0x48] sm:$0xff]
    %v229 = vld [vmem:[#allocation3 + $0x50] sm:$0xff]
    %v230 = vld [vmem:[#allocation3 + $0x58] sm:$0xff]
    %v231 = vld [vmem:[#allocation3 + $0x60] sm:$0xff]
    %v232 = vld [vmem:[#allocation3 + $0x68] sm:$0xff]
    %v233 = vld [vmem:[#allocation3 + $0x70] sm:$0xff]
    %v234 = vld [vmem:[#allocation3 + $0x78] sm:$0xff]
    %v235 = vld [vmem:[#allocation3 + $0x80] sm:$0xff]
    %v236 = vld [vmem:[#allocation3 + $0x88] sm:$0xff]
    %v237 = vld [vmem:[#allocation3 + $0x90] sm:$0xff]
    %v238 = vld [vmem:[#allocation3 + $0x98] sm:$0xff]
    %v239 = vld [vmem:[#allocation3 + $0xa0] sm:$0xff]
    %v240 = vld [vmem:[#allocation3 + $0xa8] sm:$0xff]
    %v241 = vld [vmem:[#allocation3 + $0xb0] sm:$0xff]
    %v242 = vld [vmem:[#allocation3 + $0xb8] sm:$0xff]
    %v243 = vld [vmem:[#allocation3 + $0xc0] sm:$0xff]
    %v244 = vld [vmem:[#allocation3 + $0xc8] sm:$0xff]
    %v245 = vld [vmem:[#allocation3 + $0xd0] sm:$0xff]
    %v246 = vld [vmem:[#allocation3 + $0xd8] sm:$0xff]
    %v247 = vld [vmem:[#allocation3 + $0xe0] sm:$0xff]
    %v248 = vld [vmem:[#allocation3 + $0xe8] sm:$0xff]
    %v249 = vld [vmem:[#allocation3 + $0xf0] sm:$0xff]
    %v250 = vld [vmem:[#allocation3 + $0xf8] sm:$0xff]
    %v251 = vld [vmem:[#allocation3 + $0x100] sm:$0xff]
    %v252 = vld [vmem:[#allocation3 + $0x108] sm:$0xff]
    %v253 = vld [vmem:[#allocation3 + $0x110] sm:$0xff]
    %v254 = vld [vmem:[#allocation3 + $0x118] sm:$0xff]
    %v255 = vld [vmem:[#allocation3 + $0x120] sm:$0xff]
    %v256 = vld [vmem:[#allocation3 + $0x128] sm:$0xff]
    %v257 = vld [vmem:[#allocation3 + $0x130] sm:$0xff]
    %v258 = vld [vmem:[#allocation3 + $0x138] sm:$0xff]
    %v259 = vld [vmem:[#allocation3 + $0x140] sm:$0xff]
    %v260 = vld [vmem:[#allocation3 + $0x148] sm:$0xff]
    %v261 = vld [vmem:[#allocation3 + $0x150] sm:$0xff]
    %v262 = vld [vmem:[#allocation3 + $0x158] sm:$0xff]
    %v263 = vld [vmem:[#allocation3 + $0x160] sm:$0xff]
    %v264 = vld [vmem:[#allocation3 + $0x168] sm:$0xff]
    %v265 = vld [vmem:[#allocation3 + $0x170] sm:$0xff]
    %v266 = vld [vmem:[#allocation3 + $0x178] sm:$0xff]
    %v267 = vld [vmem:[#allocation3 + $0x180] sm:$0xff]
    %v268 = vld [vmem:[#allocation3 + $0x188] sm:$0xff]
    %v269 = vld [vmem:[#allocation2] sm:$0xfe]
    %v270 = vld [vmem:[#allocation2 + $0x8] sm:$0xfe]
    %v271 = vld [vmem:[#allocation2 + $0x10] sm:$0xfe]
    %v272 = vld [vmem:[#allocation2 + $0x18] sm:$0xfe]
    %v273 = vld [vmem:[#allocation2 + $0x20] sm:$0x1]
    %v274 = vld [vmem:[#allocation2 + $0x28] sm:$0x1]
    %v275 = vld [vmem:[#allocation2 + $0x30] sm:$0x1]
    %v276 = vld [vmem:[#allocation2 + $0x38] sm:$0x1]
    %v277 = vld [vmem:[#allocation2 + $0x40] sm:$0xfe]
    %v278 = vld [vmem:[#allocation2 + $0x48] sm:$0xfe]
    %v279 = vld [vmem:[#allocation2 + $0x50] sm:$0xfe]
    %v280 = vld [vmem:[#allocation2 + $0x58] sm:$0xfe]
    %v281 = vld [vmem:[#allocation2 + $0x60] sm:$0x1]
    %v282 = vld [vmem:[#allocation2 + $0x68] sm:$0x1]
    %v283 = vld [vmem:[#allocation2 + $0x70] sm:$0x1]
    %v284 = vld [vmem:[#allocation2 + $0x78] sm:$0x1]
    %vm301 = vcmask 1046528
    %v302 = vrot.slane %v269, 1
    %v303 = vrot.slane %v273, 1
    %v304 = vsel %vm301, %v302, %v303
    %v305 = vrot.slane %v270, 1
    %v306 = vrot.slane %v274, 1
    %v307 = vsel %vm301, %v305, %v306
    %v308 = vrot.slane %v271, 1
    %v309 = vrot.slane %v275, 1
    %v310 = vsel %vm301, %v308, %v309
    %v311 = vrot.slane %v272, 1
    %v312 = vrot.slane %v276, 1
    %v313 = vsel %vm301, %v311, %v312
    %v314 = vrot.slane %v277, 1
    %v315 = vrot.slane %v281, 1
    %v316 = vsel %vm301, %v314, %v315
    %v317 = vrot.slane %v278, 1
    %v318 = vrot.slane %v282, 1
    %v319 = vsel %vm301, %v317, %v318
    %v320 = vrot.slane %v279, 1
    %v321 = vrot.slane %v283, 1
    %v322 = vsel %vm301, %v320, %v321
    %v323 = vrot.slane %v280, 1
    %v324 = vrot.slane %v284, 1
    %v325 = vsel %vm301, %v323, %v324
    %v334 = vpack.c.bf16 %v316, %v304
    %v335 = vpack.c.bf16 %v319, %v307
    %v336 = vpack.c.bf16 %v322, %v310
    %v337 = vpack.c.bf16 %v325, %v313
    %s338 = scalar_lea.vmem [#allocation3], 400
    %v339 = vld [vmem:[%s338] sm:$0xff]
    %v340 = vld [vmem:[%s338 + $0x8] sm:$0xff]
    %v341 = vld [vmem:[%s338 + $0x10] sm:$0xff]
    %v342 = vld [vmem:[%s338 + $0x18] sm:$0xff]
    %v343 = vld [vmem:[%s338 + $0x20] sm:$0xff]
    %v344 = vld [vmem:[%s338 + $0x28] sm:$0xff]
    %v345 = vld [vmem:[%s338 + $0x30] sm:$0xff]
    %v346 = vld [vmem:[%s338 + $0x38] sm:$0xff]
    %v347 = vld [vmem:[%s338 + $0x40] sm:$0xff]
    %v348 = vld [vmem:[%s338 + $0x48] sm:$0xff]
    %v349 = vld [vmem:[%s338 + $0x50] sm:$0xff]
    %v350 = vld [vmem:[%s338 + $0x58] sm:$0xff]
    %v351 = vld [vmem:[%s338 + $0x60] sm:$0xff]
    %v352 = vld [vmem:[%s338 + $0x68] sm:$0xff]
    %v353 = vld [vmem:[%s338 + $0x70] sm:$0xff]
    %v354 = vld [vmem:[%s338 + $0x78] sm:$0xff]
    %v355 = vld [vmem:[%s338 + $0x80] sm:$0xff]
    %v356 = vld [vmem:[%s338 + $0x88] sm:$0xff]
    %v357 = vld [vmem:[%s338 + $0x90] sm:$0xff]
    %v358 = vld [vmem:[%s338 + $0x98] sm:$0xff]
    %v359 = vld [vmem:[%s338 + $0xa0] sm:$0xff]
    %v360 = vld [vmem:[%s338 + $0xa8] sm:$0xff]
    %v361 = vld [vmem:[%s338 + $0xb0] sm:$0xff]
    %v362 = vld [vmem:[%s338 + $0xb8] sm:$0xff]
    %v363 = vld [vmem:[%s338 + $0xc0] sm:$0xff]
    %v364 = vld [vmem:[%s338 + $0xc8] sm:$0xff]
    %v365 = vld [vmem:[%s338 + $0xd0] sm:$0xff]
    %v366 = vld [vmem:[%s338 + $0xd8] sm:$0xff]
    %v367 = vld [vmem:[%s338 + $0xe0] sm:$0xff]
    %v368 = vld [vmem:[%s338 + $0xe8] sm:$0xff]
    %v369 = vld [vmem:[%s338 + $0xf0] sm:$0xff]
    %v370 = vld [vmem:[%s338 + $0xf8] sm:$0xff]
    %v371 = vld [vmem:[%s338 + $0x100] sm:$0xff]
    %v372 = vld [vmem:[%s338 + $0x108] sm:$0xff]
    %v373 = vld [vmem:[%s338 + $0x110] sm:$0xff]
    %v374 = vld [vmem:[%s338 + $0x118] sm:$0xff]
    %v375 = vld [vmem:[%s338 + $0x120] sm:$0xff]
    %v376 = vld [vmem:[%s338 + $0x128] sm:$0xff]
    %v377 = vld [vmem:[%s338 + $0x130] sm:$0xff]
    %v378 = vld [vmem:[%s338 + $0x138] sm:$0xff]
    %v379 = vld [vmem:[%s338 + $0x140] sm:$0xff]
    %v380 = vld [vmem:[%s338 + $0x148] sm:$0xff]
    %v381 = vld [vmem:[%s338 + $0x150] sm:$0xff]
    %v382 = vld [vmem:[%s338 + $0x158] sm:$0xff]
    %v383 = vld [vmem:[%s338 + $0x160] sm:$0xff]
    %v384 = vld [vmem:[%s338 + $0x168] sm:$0xff]
    %v385 = vld [vmem:[%s338 + $0x170] sm:$0xff]
    %v386 = vld [vmem:[%s338 + $0x178] sm:$0xff]
    %v387 = vld [vmem:[%s338 + $0x180] sm:$0xff]
    %v388 = vld [vmem:[%s338 + $0x188] sm:$0xff]
    %v439 = vunpack.c.l.b16 %v339
    %v440 = vunpack.c.h.b16 %v339
    %v441 = vunpack.c.l.b16 %v340
    %v442 = vunpack.c.h.b16 %v340
    %v443 = vunpack.c.l.b16 %v341
    %v444 = vunpack.c.h.b16 %v341
    %v445 = vunpack.c.l.b16 %v342
    %v446 = vunpack.c.h.b16 %v342
    %v447 = vunpack.c.l.b16 %v343
    %v448 = vunpack.c.h.b16 %v343
    %v449 = vunpack.c.l.b16 %v344
    %v450 = vunpack.c.h.b16 %v344
    %v451 = vunpack.c.l.b16 %v345
    %v452 = vunpack.c.h.b16 %v345
    %v453 = vunpack.c.l.b16 %v346
    %v454 = vunpack.c.h.b16 %v346
    %v455 = vunpack.c.l.b16 %v347
    %v456 = vunpack.c.h.b16 %v347
    %v457 = vunpack.c.l.b16 %v348
    %v458 = vunpack.c.h.b16 %v348
    %v459 = vunpack.c.l.b16 %v349
    %v460 = vunpack.c.h.b16 %v349
    %v461 = vunpack.c.l.b16 %v350
    %v462 = vunpack.c.h.b16 %v350
    %v463 = vunpack.c.l.b16 %v351
    %v464 = vunpack.c.h.b16 %v351
    %v465 = vunpack.c.l.b16 %v352
    %v466 = vunpack.c.h.b16 %v352
    %v467 = vunpack.c.l.b16 %v353
    %v468 = vunpack.c.h.b16 %v353
    %v469 = vunpack.c.l.b16 %v354
    %v470 = vunpack.c.h.b16 %v354
    %v471 = vunpack.c.l.b16 %v355
    %v472 = vunpack.c.h.b16 %v355
    %v473 = vunpack.c.l.b16 %v356
    %v474 = vunpack.c.h.b16 %v356
    %v475 = vunpack.c.l.b16 %v357
    %v476 = vunpack.c.h.b16 %v357
    %v477 = vunpack.c.l.b16 %v358
    %v478 = vunpack.c.h.b16 %v358
    %v479 = vunpack.c.l.b16 %v359
    %v480 = vunpack.c.h.b16 %v359
    %v481 = vunpack.c.l.b16 %v360
    %v482 = vunpack.c.h.b16 %v360
    %v483 = vunpack.c.l.b16 %v361
    %v484 = vunpack.c.h.b16 %v361
    %v485 = vunpack.c.l.b16 %v362
    %v486 = vunpack.c.h.b16 %v362
    %v487 = vunpack.c.l.b16 %v363
    %v488 = vunpack.c.h.b16 %v363
    %v489 = vunpack.c.l.b16 %v364
    %v490 = vunpack.c.h.b16 %v364
    %v491 = vunpack.c.l.b16 %v365
    %v492 = vunpack.c.h.b16 %v365
    %v493 = vunpack.c.l.b16 %v366
    %v494 = vunpack.c.h.b16 %v366
    %v495 = vunpack.c.l.b16 %v367
    %v496 = vunpack.c.h.b16 %v367
    %v497 = vunpack.c.l.b16 %v368
    %v498 = vunpack.c.h.b16 %v368
    %v499 = vunpack.c.l.b16 %v369
    %v500 = vunpack.c.h.b16 %v369
    %v501 = vunpack.c.l.b16 %v370
    %v502 = vunpack.c.h.b16 %v370
    %v503 = vunpack.c.l.b16 %v371
    %v504 = vunpack.c.h.b16 %v371
    %v505 = vunpack.c.l.b16 %v372
    %v506 = vunpack.c.h.b16 %v372
    %v507 = vunpack.c.l.b16 %v373
    %v508 = vunpack.c.h.b16 %v373
    %v509 = vunpack.c.l.b16 %v374
    %v510 = vunpack.c.h.b16 %v374
    %v511 = vunpack.c.l.b16 %v375
    %v512 = vunpack.c.h.b16 %v375
    %v513 = vunpack.c.l.b16 %v376
    %v514 = vunpack.c.h.b16 %v376
    %v515 = vunpack.c.l.b16 %v377
    %v516 = vunpack.c.h.b16 %v377
    %v517 = vunpack.c.l.b16 %v378
    %v518 = vunpack.c.h.b16 %v378
    %v519 = vunpack.c.l.b16 %v379
    %v520 = vunpack.c.h.b16 %v379
    %v521 = vunpack.c.l.b16 %v380
    %v522 = vunpack.c.h.b16 %v380
    %v523 = vunpack.c.l.b16 %v381
    %v524 = vunpack.c.h.b16 %v381
    %v525 = vunpack.c.l.b16 %v382
    %v526 = vunpack.c.h.b16 %v382
    %v527 = vunpack.c.l.b16 %v383
    %v528 = vunpack.c.h.b16 %v383
    %v529 = vunpack.c.l.b16 %v384
    %v530 = vunpack.c.h.b16 %v384
    %v531 = vunpack.c.l.b16 %v385
    %v532 = vunpack.c.h.b16 %v385
    %v533 = vunpack.c.l.b16 %v386
    %v534 = vunpack.c.h.b16 %v386
    %v535 = vunpack.c.l.b16 %v387
    %v536 = vunpack.c.h.b16 %v387
    %v537 = vunpack.c.l.b16 %v388
    %v538 = vunpack.c.h.b16 %v388
    %v539 = vpack.c.b16 %v441, %v439
    %v540 = vpack.c.b16 %v442, %v440
    %v541 = vpack.c.b16 %v445, %v443
    %v542 = vpack.c.b16 %v446, %v444
    %v543 = vpack.c.b16 %v449, %v447
    %v544 = vpack.c.b16 %v450, %v448
    %v545 = vpack.c.b16 %v453, %v451
    %v546 = vpack.c.b16 %v454, %v452
    %v547 = vpack.c.b16 %v457, %v455
    %v548 = vpack.c.b16 %v458, %v456
    %v549 = vpack.c.b16 %v461, %v459
    %v550 = vpack.c.b16 %v462, %v460
    %v551 = vpack.c.b16 %v465, %v463
    %v552 = vpack.c.b16 %v466, %v464
    %v553 = vpack.c.b16 %v469, %v467
    %v554 = vpack.c.b16 %v470, %v468
    %v555 = vpack.c.b16 %v473, %v471
    %v556 = vpack.c.b16 %v474, %v472
    %v557 = vpack.c.b16 %v477, %v475
    %v558 = vpack.c.b16 %v478, %v476
    %v559 = vpack.c.b16 %v481, %v479
    %v560 = vpack.c.b16 %v482, %v480
    %v561 = vpack.c.b16 %v485, %v483
    %v562 = vpack.c.b16 %v486, %v484
    %v563 = vpack.c.b16 %v489, %v487
    %v564 = vpack.c.b16 %v490, %v488
    %v565 = vpack.c.b16 %v493, %v491
    %v566 = vpack.c.b16 %v494, %v492
    %v567 = vpack.c.b16 %v497, %v495
    %v568 = vpack.c.b16 %v498, %v496
    %v569 = vpack.c.b16 %v501, %v499
    %v570 = vpack.c.b16 %v502, %v500
    %v571 = vpack.c.b16 %v505, %v503
    %v572 = vpack.c.b16 %v506, %v504
    %v573 = vpack.c.b16 %v509, %v507
    %v574 = vpack.c.b16 %v510, %v508
    %v575 = vpack.c.b16 %v513, %v511
    %v576 = vpack.c.b16 %v514, %v512
    %v577 = vpack.c.b16 %v517, %v515
    %v578 = vpack.c.b16 %v518, %v516
    %v579 = vpack.c.b16 %v521, %v519
    %v580 = vpack.c.b16 %v522, %v520
    %v581 = vpack.c.b16 %v525, %v523
    %v582 = vpack.c.b16 %v526, %v524
    %v583 = vpack.c.b16 %v529, %v527
    %v584 = vpack.c.b16 %v530, %v528
    %v585 = vpack.c.b16 %v533, %v531
    %v586 = vpack.c.b16 %v534, %v532
    %v587 = vpack.c.b16 %v537, %v535
    %v588 = vpack.c.b16 %v538, %v536
    %v640 = vsel %vm75, %v337, 0
    %642 = vmatprep.subr.bf16.mxu0 %v540
    %643 = vmatpush1.bf16.msra.mxu0 %v539
    %644 = vmatprep.subr.bf16.mxu0 %v542
    %645 = vmatpush1.bf16.msra.mxu0 %v541
    %646 = vmatprep.subr.bf16.mxu0 %v544
    %647 = vmatpush1.bf16.msra.mxu0 %v543
    %648 = vmatprep.subr.bf16.mxu0 %v546
    %649 = vmatpush1.bf16.msra.mxu0 %v545
    %650 = vmatprep.subr.bf16.mxu0 %v548
    %651 = vmatpush1.bf16.msra.mxu0 %v547
    %652 = vmatprep.subr.bf16.mxu0 %v550
    %653 = vmatpush1.bf16.msra.mxu0 %v549
    %654 = vmatprep.subr.bf16.mxu0 %v552
    %655 = vmatpush1.bf16.msra.mxu0 %v551
    %656 = vmatprep.subr.bf16.mxu0 %v554
    %657 = vmatpush1.bf16.msra.mxu0 %v553
    %658 = vmatprep.subr.bf16.mxu0 %v556
    %659 = vmatpush1.bf16.msra.mxu0 %v555
    %660 = vmatprep.subr.bf16.mxu0 %v558
    %661 = vmatpush1.bf16.msra.mxu0 %v557
    %662 = vmatprep.subr.bf16.mxu0 %v560
    %663 = vmatpush1.bf16.msra.mxu0 %v559
    %664 = vmatprep.subr.bf16.mxu0 %v562
    %665 = vmatpush1.bf16.msra.mxu0 %v561
    %666 = vmatprep.subr.bf16.mxu0 %v564
    %667 = vmatpush1.bf16.msra.mxu0 %v563
    %668 = vmatprep.subr.bf16.mxu0 %v566
    %669 = vmatpush1.bf16.msra.mxu0 %v565
    %670 = vmatprep.subr.bf16.mxu0 %v568
    %671 = vmatpush1.bf16.msra.mxu0 %v567
    %672 = vmatprep.subr.bf16.mxu0 %v570
    %673 = vmatpush1.bf16.msra.mxu0 %v569
    %674 = vmatprep.mubr.bf16.mxu0 %v335
    %675 = vmatmul.mubr.bf16.gmra.mrb[0].mxu0 %v334
    %v676 = vpop.f32.mrb[0].mxu0
    %v677 = vadd.f32 0.0, %v676
    %v678 = vpop.f32.mrb[0].mxu0
    %v679 = vadd.f32 0.0, %v678
    %v680 = vpop.f32.mrb[0].mxu0
    %v681 = vadd.f32 0.0, %v680
    %v682 = vpop.f32.mrb[0].mxu0
    %v683 = vadd.f32 0.0, %v682
    %684 = vdwg.mxu0
    %685 = vmatprep.subr.bf16.mxu0 %v572
    %686 = vmatpush1.bf16.msra.mxu0 %v571
    %687 = vmatprep.subr.bf16.mxu0 %v574
    %688 = vmatpush1.bf16.msra.mxu0 %v573
    %689 = vmatprep.subr.bf16.mxu0 %v576
    %690 = vmatpush1.bf16.msra.mxu0 %v575
    %691 = vmatprep.subr.bf16.mxu0 %v578
    %692 = vmatpush1.bf16.msra.mxu0 %v577
    %693 = vmatprep.subr.bf16.mxu0 %v580
    %694 = vmatpush1.bf16.msra.mxu0 %v579
    %695 = vmatprep.subr.bf16.mxu0 %v582
    %696 = vmatpush1.bf16.msra.mxu0 %v581
    %697 = vmatprep.subr.bf16.mxu0 %v584
    %698 = vmatpush1.bf16.msra.mxu0 %v583
    %699 = vmatprep.subr.bf16.mxu0 %v586
    %700 = vmatpush1.bf16.msra.mxu0 %v585
    %701 = vmatprep.subr.bf16.mxu0 %v588
    %702 = vmatpush1.bf16.msra.mxu0 %v587
    %703 = vmatprep.subr.bf16.mxu0 0
    %704 = vmatpush1.bf16.msra.mxu0 0
    %705 = vmatprep.subr.bf16.mxu0 0
    %706 = vmatpush1.bf16.msra.mxu0 0
    %707 = vmatprep.subr.bf16.mxu0 0
    %708 = vmatpush1.bf16.msra.mxu0 0
    %709 = vmatprep.subr.bf16.mxu0 0
    %710 = vmatpush1.bf16.msra.mxu0 0
    %711 = vmatprep.subr.bf16.mxu0 0
    %712 = vmatpush1.bf16.msra.mxu0 0
    %713 = vmatprep.subr.bf16.mxu0 0
    %714 = vmatpush1.bf16.msra.mxu0 0
    %715 = vmatprep.subr.bf16.mxu0 0
    %716 = vmatpush1.bf16.msra.mxu0 0
    %717 = vmatprep.mubr.bf16.mxu0 %v640
    %718 = vmatmul.mubr.bf16.gmra.mrb[0].mxu0 %v336
    %v719 = vpop.f32.mrb[0].mxu0
    %v720 = vadd.f32 %v677, %v719
    %v721 = vpop.f32.mrb[0].mxu0
    %v722 = vadd.f32 %v679, %v721
    %v723 = vpop.f32.mrb[0].mxu0
    %v724 = vadd.f32 %v681, %v723
    %v725 = vpop.f32.mrb[0].mxu0
    %v726 = vadd.f32 %v683, %v725
    %727 = vdwg.mxu0
    %v778 = vunpack.c.l.b16 %v219
    %v779 = vunpack.c.h.b16 %v219
    %v780 = vunpack.c.l.b16 %v220
    %v781 = vunpack.c.h.b16 %v220
    %v782 = vunpack.c.l.b16 %v221
    %v783 = vunpack.c.h.b16 %v221
    %v784 = vunpack.c.l.b16 %v222
    %v785 = vunpack.c.h.b16 %v222
    %v786 = vunpack.c.l.b16 %v223
    %v787 = vunpack.c.h.b16 %v223
    %v788 = vunpack.c.l.b16 %v224
    %v789 = vunpack.c.h.b16 %v224
    %v790 = vunpack.c.l.b16 %v225
    %v791 = vunpack.c.h.b16 %v225
    %v792 = vunpack.c.l.b16 %v226
    %v793 = vunpack.c.h.b16 %v226
    %v794 = vunpack.c.l.b16 %v227
    %v795 = vunpack.c.h.b16 %v227
    %v796 = vunpack.c.l.b16 %v228
    %v797 = vunpack.c.h.b16 %v228
    %v798 = vunpack.c.l.b16 %v229
    %v799 = vunpack.c.h.b16 %v229
    %v800 = vunpack.c.l.b16 %v230
    %v801 = vunpack.c.h.b16 %v230
    %v802 = vunpack.c.l.b16 %v231
    %v803 = vunpack.c.h.b16 %v231
    %v804 = vunpack.c.l.b16 %v232
    %v805 = vunpack.c.h.b16 %v232
    %v806 = vunpack.c.l.b16 %v233
    %v807 = vunpack.c.h.b16 %v233
    %v808 = vunpack.c.l.b16 %v234
    %v809 = vunpack.c.h.b16 %v234
    %v810 = vunpack.c.l.b16 %v235
    %v811 = vunpack.c.h.b16 %v235
    %v812 = vunpack.c.l.b16 %v236
    %v813 = vunpack.c.h.b16 %v236
    %v814 = vunpack.c.l.b16 %v237
    %v815 = vunpack.c.h.b16 %v237
    %v816 = vunpack.c.l.b16 %v238
    %v817 = vunpack.c.h.b16 %v238
    %v818 = vunpack.c.l.b16 %v239
    %v819 = vunpack.c.h.b16 %v239
    %v820 = vunpack.c.l.b16 %v240
    %v821 = vunpack.c.h.b16 %v240
    %v822 = vunpack.c.l.b16 %v241
    %v823 = vunpack.c.h.b16 %v241
    %v824 = vunpack.c.l.b16 %v242
    %v825 = vunpack.c.h.b16 %v242
    %v826 = vunpack.c.l.b16 %v243
    %v827 = vunpack.c.h.b16 %v243
    %v828 = vunpack.c.l.b16 %v244
    %v829 = vunpack.c.h.b16 %v244
    %v830 = vunpack.c.l.b16 %v245
    %v831 = vunpack.c.h.b16 %v245
    %v832 = vunpack.c.l.b16 %v246
    %v833 = vunpack.c.h.b16 %v246
    %v834 = vunpack.c.l.b16 %v247
    %v835 = vunpack.c.h.b16 %v247
    %v836 = vunpack.c.l.b16 %v248
    %v837 = vunpack.c.h.b16 %v248
    %v838 = vunpack.c.l.b16 %v249
    %v839 = vunpack.c.h.b16 %v249
    %v840 = vunpack.c.l.b16 %v250
    %v841 = vunpack.c.h.b16 %v250
    %v842 = vunpack.c.l.b16 %v251
    %v843 = vunpack.c.h.b16 %v251
    %v844 = vunpack.c.l.b16 %v252
    %v845 = vunpack.c.h.b16 %v252
    %v846 = vunpack.c.l.b16 %v253
    %v847 = vunpack.c.h.b16 %v253
    %v848 = vunpack.c.l.b16 %v254
    %v849 = vunpack.c.h.b16 %v254
    %v850 = vunpack.c.l.b16 %v255
    %v851 = vunpack.c.h.b16 %v255
    %v852 = vunpack.c.l.b16 %v256
    %v853 = vunpack.c.h.b16 %v256
    %v854 = vunpack.c.l.b16 %v257
    %v855 = vunpack.c.h.b16 %v257
    %v856 = vunpack.c.l.b16 %v258
    %v857 = vunpack.c.h.b16 %v258
    %v858 = vunpack.c.l.b16 %v259
    %v859 = vunpack.c.h.b16 %v259
    %v860 = vunpack.c.l.b16 %v260
    %v861 = vunpack.c.h.b16 %v260
    %v862 = vunpack.c.l.b16 %v261
    %v863 = vunpack.c.h.b16 %v261
    %v864 = vunpack.c.l.b16 %v262
    %v865 = vunpack.c.h.b16 %v262
    %v866 = vunpack.c.l.b16 %v263
    %v867 = vunpack.c.h.b16 %v263
    %v868 = vunpack.c.l.b16 %v264
    %v869 = vunpack.c.h.b16 %v264
    %v870 = vunpack.c.l.b16 %v265
    %v871 = vunpack.c.h.b16 %v265
    %v872 = vunpack.c.l.b16 %v266
    %v873 = vunpack.c.h.b16 %v266
    %v874 = vunpack.c.l.b16 %v267
    %v875 = vunpack.c.h.b16 %v267
    %v876 = vunpack.c.l.b16 %v268
    %v877 = vunpack.c.h.b16 %v268
    %v878 = vpack.c.b16 %v780, %v778
    %v879 = vpack.c.b16 %v781, %v779
    %v880 = vpack.c.b16 %v784, %v782
    %v881 = vpack.c.b16 %v785, %v783
    %v882 = vpack.c.b16 %v788, %v786
    %v883 = vpack.c.b16 %v789, %v787
    %v884 = vpack.c.b16 %v792, %v790
    %v885 = vpack.c.b16 %v793, %v791
    %v886 = vpack.c.b16 %v796, %v794
    %v887 = vpack.c.b16 %v797, %v795
    %v888 = vpack.c.b16 %v800, %v798
    %v889 = vpack.c.b16 %v801, %v799
    %v890 = vpack.c.b16 %v804, %v802
    %v891 = vpack.c.b16 %v805, %v803
    %v892 = vpack.c.b16 %v808, %v806
    %v893 = vpack.c.b16 %v809, %v807
    %v894 = vpack.c.b16 %v812, %v810
    %v895 = vpack.c.b16 %v813, %v811
    %v896 = vpack.c.b16 %v816, %v814
    %v897 = vpack.c.b16 %v817, %v815
    %v898 = vpack.c.b16 %v820, %v818
    %v899 = vpack.c.b16 %v821, %v819
    %v900 = vpack.c.b16 %v824, %v822
    %v901 = vpack.c.b16 %v825, %v823
    %v902 = vpack.c.b16 %v828, %v826
    %v903 = vpack.c.b16 %v829, %v827
    %v904 = vpack.c.b16 %v832, %v830
    %v905 = vpack.c.b16 %v833, %v831
    %v906 = vpack.c.b16 %v836, %v834
    %v907 = vpack.c.b16 %v837, %v835
    %v908 = vpack.c.b16 %v840, %v838
    %v909 = vpack.c.b16 %v841, %v839
    %v910 = vpack.c.b16 %v844, %v842
    %v911 = vpack.c.b16 %v845, %v843
    %v912 = vpack.c.b16 %v848, %v846
    %v913 = vpack.c.b16 %v849, %v847
    %v914 = vpack.c.b16 %v852, %v850
    %v915 = vpack.c.b16 %v853, %v851
    %v916 = vpack.c.b16 %v856, %v854
    %v917 = vpack.c.b16 %v857, %v855
    %v918 = vpack.c.b16 %v860, %v858
    %v919 = vpack.c.b16 %v861, %v859
    %v920 = vpack.c.b16 %v864, %v862
    %v921 = vpack.c.b16 %v865, %v863
    %v922 = vpack.c.b16 %v868, %v866
    %v923 = vpack.c.b16 %v869, %v867
    %v924 = vpack.c.b16 %v872, %v870
    %v925 = vpack.c.b16 %v873, %v871
    %v926 = vpack.c.b16 %v876, %v874
    %v927 = vpack.c.b16 %v877, %v875
    %v979 = vsel %vm75, %v218, 0
    %981 = vmatprep.subr.bf16.mxu0 %v879
    %982 = vmatpush1.bf16.msra.mxu0 %v878
    %983 = vmatprep.subr.bf16.mxu0 %v881
    %984 = vmatpush1.bf16.msra.mxu0 %v880
    %985 = vmatprep.subr.bf16.mxu0 %v883
    %986 = vmatpush1.bf16.msra.mxu0 %v882
    %987 = vmatprep.subr.bf16.mxu0 %v885
    %988 = vmatpush1.bf16.msra.mxu0 %v884
    %989 = vmatprep.subr.bf16.mxu0 %v887
    %990 = vmatpush1.bf16.msra.mxu0 %v886
    %991 = vmatprep.subr.bf16.mxu0 %v889
    %992 = vmatpush1.bf16.msra.mxu0 %v888
    %993 = vmatprep.subr.bf16.mxu0 %v891
    %994 = vmatpush1.bf16.msra.mxu0 %v890
    %995 = vmatprep.subr.bf16.mxu0 %v893
    %996 = vmatpush1.bf16.msra.mxu0 %v892
    %997 = vmatprep.subr.bf16.mxu0 %v895
    %998 = vmatpush1.bf16.msra.mxu0 %v894
    %999 = vmatprep.subr.bf16.mxu0 %v897
    %1000 = vmatpush1.bf16.msra.mxu0 %v896
    %1001 = vmatprep.subr.bf16.mxu0 %v899
    %1002 = vmatpush1.bf16.msra.mxu0 %v898
    %1003 = vmatprep.subr.bf16.mxu0 %v901
    %1004 = vmatpush1.bf16.msra.mxu0 %v900
    %1005 = vmatprep.subr.bf16.mxu0 %v903
    %1006 = vmatpush1.bf16.msra.mxu0 %v902
    %1007 = vmatprep.subr.bf16.mxu0 %v905
    %1008 = vmatpush1.bf16.msra.mxu0 %v904
    %1009 = vmatprep.subr.bf16.mxu0 %v907
    %1010 = vmatpush1.bf16.msra.mxu0 %v906
    %1011 = vmatprep.subr.bf16.mxu0 %v909
    %1012 = vmatpush1.bf16.msra.mxu0 %v908
    %1013 = vmatprep.mubr.bf16.mxu0 %v216
    %1014 = vmatmul.mubr.bf16.gmra.mrb[0].mxu0 %v215
    %v1015 = vpop.f32.mrb[0].mxu0
    %v1016 = vadd.f32 %v720, %v1015
    %v1017 = vpop.f32.mrb[0].mxu0
    %v1018 = vadd.f32 %v722, %v1017
    %v1019 = vpop.f32.mrb[0].mxu0
    %v1020 = vadd.f32 %v724, %v1019
    %v1021 = vpop.f32.mrb[0].mxu0
    %v1022 = vadd.f32 %v726, %v1021
    %1023 = vdwg.mxu0
    %1024 = vmatprep.subr.bf16.mxu0 %v911
    %1025 = vmatpush1.bf16.msra.mxu0 %v910
    %1026 = vmatprep.subr.bf16.mxu0 %v913
    %1027 = vmatpush1.bf16.msra.mxu0 %v912
    %1028 = vmatprep.subr.bf16.mxu0 %v915
    %1029 = vmatpush1.bf16.msra.mxu0 %v914
    %1030 = vmatprep.subr.bf16.mxu0 %v917
    %1031 = vmatpush1.bf16.msra.mxu0 %v916
    %1032 = vmatprep.subr.bf16.mxu0 %v919
    %1033 = vmatpush1.bf16.msra.mxu0 %v918
    %1034 = vmatprep.subr.bf16.mxu0 %v921
    %1035 = vmatpush1.bf16.msra.mxu0 %v920
    %1036 = vmatprep.subr.bf16.mxu0 %v923
    %1037 = vmatpush1.bf16.msra.mxu0 %v922
    %1038 = vmatprep.subr.bf16.mxu0 %v925
    %1039 = vmatpush1.bf16.msra.mxu0 %v924
    %1040 = vmatprep.subr.bf16.mxu0 %v927
    %1041 = vmatpush1.bf16.msra.mxu0 %v926
    %1042 = vmatprep.subr.bf16.mxu0 0
    %1043 = vmatpush1.bf16.msra.mxu0 0
    %1044 = vmatprep.subr.bf16.mxu0 0
    %1045 = vmatpush1.bf16.msra.mxu0 0
    %1046 = vmatprep.subr.bf16.mxu0 0
    %1047 = vmatpush1.bf16.msra.mxu0 0
    %1048 = vmatprep.subr.bf16.mxu0 0
    %1049 = vmatpush1.bf16.msra.mxu0 0
    %1050 = vmatprep.subr.bf16.mxu0 0
    %1051 = vmatpush1.bf16.msra.mxu0 0
    %1052 = vmatprep.subr.bf16.mxu0 0
    %1053 = vmatpush1.bf16.msra.mxu0 0
    %1054 = vmatprep.subr.bf16.mxu0 0
    %1055 = vmatpush1.bf16.msra.mxu0 0
    %1056 = vmatprep.mubr.bf16.mxu0 %v979
    %1057 = vmatmul.mubr.bf16.gmra.mrb[0].mxu0 %v217
    %v1058 = vpop.f32.mrb[0].mxu0
    %v1059 = vadd.f32 %v1016, %v1058
    %v1060 = vpop.f32.mrb[0].mxu0
    %v1061 = vadd.f32 %v1018, %v1060
    %v1062 = vpop.f32.mrb[0].mxu0
    %v1063 = vadd.f32 %v1020, %v1062
    %v1064 = vpop.f32.mrb[0].mxu0
    %v1065 = vadd.f32 %v1022, %v1064
    %1066 = vdwg.mxu0
    %v1067 = vld [vmem:[#allocation2] sm:$0xfc]
    %v1068 = vld [vmem:[#allocation2 + $0x8] sm:$0xfc]
    %v1069 = vld [vmem:[#allocation2 + $0x10] sm:$0xfc]
    %v1070 = vld [vmem:[#allocation2 + $0x18] sm:$0xfc]
    %v1071 = vld [vmem:[#allocation2 + $0x20] sm:$0x3]
    %v1072 = vld [vmem:[#allocation2 + $0x28] sm:$0x3]
    %v1073 = vld [vmem:[#allocation2 + $0x30] sm:$0x3]
    %v1074 = vld [vmem:[#allocation2 + $0x38] sm:$0x3]
    %v1075 = vld [vmem:[#allocation2 + $0x40] sm:$0xfc]
    %v1076 = vld [vmem:[#allocation2 + $0x48] sm:$0xfc]
    %v1077 = vld [vmem:[#allocation2 + $0x50] sm:$0xfc]
    %v1078 = vld [vmem:[#allocation2 + $0x58] sm:$0xfc]
    %v1079 = vld [vmem:[#allocation2 + $0x60] sm:$0x3]
    %v1080 = vld [vmem:[#allocation2 + $0x68] sm:$0x3]
    %v1081 = vld [vmem:[#allocation2 + $0x70] sm:$0x3]
    %v1082 = vld [vmem:[#allocation2 + $0x78] sm:$0x3]
    %vm1099 = vcmask 1045504
    %v1100 = vrot.slane %v1067, 2
    %v1101 = vrot.slane %v1071, 2
    %v1102 = vsel %vm1099, %v1100, %v1101
    %v1103 = vrot.slane %v1068, 2
    %v1104 = vrot.slane %v1072, 2
    %v1105 = vsel %vm1099, %v1103, %v1104
    %v1106 = vrot.slane %v1069, 2
    %v1107 = vrot.slane %v1073, 2
    %v1108 = vsel %vm1099, %v1106, %v1107
    %v1109 = vrot.slane %v1070, 2
    %v1110 = vrot.slane %v1074, 2
    %v1111 = vsel %vm1099, %v1109, %v1110
    %v1112 = vrot.slane %v1075, 2
    %v1113 = vrot.slane %v1079, 2
    %v1114 = vsel %vm1099, %v1112, %v1113
    %v1115 = vrot.slane %v1076, 2
    %v1116 = vrot.slane %v1080, 2
    %v1117 = vsel %vm1099, %v1115, %v1116
    %v1118 = vrot.slane %v1077, 2
    %v1119 = vrot.slane %v1081, 2
    %v1120 = vsel %vm1099, %v1118, %v1119
    %v1121 = vrot.slane %v1078, 2
    %v1122 = vrot.slane %v1082, 2
    %v1123 = vsel %vm1099, %v1121, %v1122
    %v1132 = vpack.c.bf16 %v1114, %v1102
    %v1133 = vpack.c.bf16 %v1117, %v1105
    %v1134 = vpack.c.bf16 %v1120, %v1108
    %v1135 = vpack.c.bf16 %v1123, %v1111
    %s1136 = scalar_lea.vmem [#allocation3], 800
    %v1137 = vld [vmem:[%s1136] sm:$0xff]
    %v1138 = vld [vmem:[%s1136 + $0x8] sm:$0xff]
    %v1139 = vld [vmem:[%s1136 + $0x10] sm:$0xff]
    %v1140 = vld [vmem:[%s1136 + $0x18] sm:$0xff]
    %v1141 = vld [vmem:[%s1136 + $0x20] sm:$0xff]
    %v1142 = vld [vmem:[%s1136 + $0x28] sm:$0xff]
    %v1143 = vld [vmem:[%s1136 + $0x30] sm:$0xff]
    %v1144 = vld [vmem:[%s1136 + $0x38] sm:$0xff]
    %v1145 = vld [vmem:[%s1136 + $0x40] sm:$0xff]
    %v1146 = vld [vmem:[%s1136 + $0x48] sm:$0xff]
    %v1147 = vld [vmem:[%s1136 + $0x50] sm:$0xff]
    %v1148 = vld [vmem:[%s1136 + $0x58] sm:$0xff]
    %v1149 = vld [vmem:[%s1136 + $0x60] sm:$0xff]
    %v1150 = vld [vmem:[%s1136 + $0x68] sm:$0xff]
    %v1151 = vld [vmem:[%s1136 + $0x70] sm:$0xff]
    %v1152 = vld [vmem:[%s1136 + $0x78] sm:$0xff]
    %v1153 = vld [vmem:[%s1136 + $0x80] sm:$0xff]
    %v1154 = vld [vmem:[%s1136 + $0x88] sm:$0xff]
    %v1155 = vld [vmem:[%s1136 + $0x90] sm:$0xff]
    %v1156 = vld [vmem:[%s1136 + $0x98] sm:$0xff]
    %v1157 = vld [vmem:[%s1136 + $0xa0] sm:$0xff]
    %v1158 = vld [vmem:[%s1136 + $0xa8] sm:$0xff]
    %v1159 = vld [vmem:[%s1136 + $0xb0] sm:$0xff]
    %v1160 = vld [vmem:[%s1136 + $0xb8] sm:$0xff]
    %v1161 = vld [vmem:[%s1136 + $0xc0] sm:$0xff]
    %v1162 = vld [vmem:[%s1136 + $0xc8] sm:$0xff]
    %v1163 = vld [vmem:[%s1136 + $0xd0] sm:$0xff]
    %v1164 = vld [vmem:[%s1136 + $0xd8] sm:$0xff]
    %v1165 = vld [vmem:[%s1136 + $0xe0] sm:$0xff]
    %v1166 = vld [vmem:[%s1136 + $0xe8] sm:$0xff]
    %v1167 = vld [vmem:[%s1136 + $0xf0] sm:$0xff]
    %v1168 = vld [vmem:[%s1136 + $0xf8] sm:$0xff]
    %v1169 = vld [vmem:[%s1136 + $0x100] sm:$0xff]
    %v1170 = vld [vmem:[%s1136 + $0x108] sm:$0xff]
    %v1171 = vld [vmem:[%s1136 + $0x110] sm:$0xff]
    %v1172 = vld [vmem:[%s1136 + $0x118] sm:$0xff]
    %v1173 = vld [vmem:[%s1136 + $0x120] sm:$0xff]
    %v1174 = vld [vmem:[%s1136 + $0x128] sm:$0xff]
    %v1175 = vld [vmem:[%s1136 + $0x130] sm:$0xff]
    %v1176 = vld [vmem:[%s1136 + $0x138] sm:$0xff]
    %v1177 = vld [vmem:[%s1136 + $0x140] sm:$0xff]
    %v1178 = vld [vmem:[%s1136 + $0x148] sm:$0xff]
    %v1179 = vld [vmem:[%s1136 + $0x150] sm:$0xff]
    %v1180 = vld [vmem:[%s1136 + $0x158] sm:$0xff]
    %v1181 = vld [vmem:[%s1136 + $0x160] sm:$0xff]
    %v1182 = vld [vmem:[%s1136 + $0x168] sm:$0xff]
    %v1183 = vld [vmem:[%s1136 + $0x170] sm:$0xff]
    %v1184 = vld [vmem:[%s1136 + $0x178] sm:$0xff]
    %v1185 = vld [vmem:[%s1136 + $0x180] sm:$0xff]
    %v1186 = vld [vmem:[%s1136 + $0x188] sm:$0xff]
    %v1237 = vunpack.c.l.b16 %v1137
    %v1238 = vunpack.c.h.b16 %v1137
    %v1239 = vunpack.c.l.b16 %v1138
    %v1240 = vunpack.c.h.b16 %v1138
    %v1241 = vunpack.c.l.b16 %v1139
    %v1242 = vunpack.c.h.b16 %v1139
    %v1243 = vunpack.c.l.b16 %v1140
    %v1244 = vunpack.c.h.b16 %v1140
    %v1245 = vunpack.c.l.b16 %v1141
    %v1246 = vunpack.c.h.b16 %v1141
    %v1247 = vunpack.c.l.b16 %v1142
    %v1248 = vunpack.c.h.b16 %v1142
    %v1249 = vunpack.c.l.b16 %v1143
    %v1250 = vunpack.c.h.b16 %v1143
    %v1251 = vunpack.c.l.b16 %v1144
    %v1252 = vunpack.c.h.b16 %v1144
    %v1253 = vunpack.c.l.b16 %v1145
    %v1254 = vunpack.c.h.b16 %v1145
    %v1255 = vunpack.c.l.b16 %v1146
    %v1256 = vunpack.c.h.b16 %v1146
    %v1257 = vunpack.c.l.b16 %v1147
    %v1258 = vunpack.c.h.b16 %v1147
    %v1259 = vunpack.c.l.b16 %v1148
    %v1260 = vunpack.c.h.b16 %v1148
    %v1261 = vunpack.c.l.b16 %v1149
    %v1262 = vunpack.c.h.b16 %v1149
    %v1263 = vunpack.c.l.b16 %v1150
    %v1264 = vunpack.c.h.b16 %v1150
    %v1265 = vunpack.c.l.b16 %v1151
    %v1266 = vunpack.c.h.b16 %v1151
    %v1267 = vunpack.c.l.b16 %v1152
    %v1268 = vunpack.c.h.b16 %v1152
    %v1269 = vunpack.c.l.b16 %v1153
    %v1270 = vunpack.c.h.b16 %v1153
    %v1271 = vunpack.c.l.b16 %v1154
    %v1272 = vunpack.c.h.b16 %v1154
    %v1273 = vunpack.c.l.b16 %v1155
    %v1274 = vunpack.c.h.b16 %v1155
    %v1275 = vunpack.c.l.b16 %v1156
    %v1276 = vunpack.c.h.b16 %v1156
    %v1277 = vunpack.c.l.b16 %v1157
    %v1278 = vunpack.c.h.b16 %v1157
    %v1279 = vunpack.c.l.b16 %v1158
    %v1280 = vunpack.c.h.b16 %v1158
    %v1281 = vunpack.c.l.b16 %v1159
    %v1282 = vunpack.c.h.b16 %v1159
    %v1283 = vunpack.c.l.b16 %v1160
    %v1284 = vunpack.c.h.b16 %v1160
    %v1285 = vunpack.c.l.b16 %v1161
    %v1286 = vunpack.c.h.b16 %v1161
    %v1287 = vunpack.c.l.b16 %v1162
    %v1288 = vunpack.c.h.b16 %v1162
    %v1289 = vunpack.c.l.b16 %v1163
    %v1290 = vunpack.c.h.b16 %v1163
    %v1291 = vunpack.c.l.b16 %v1164
    %v1292 = vunpack.c.h.b16 %v1164
    %v1293 = vunpack.c.l.b16 %v1165
    %v1294 = vunpack.c.h.b16 %v1165
    %v1295 = vunpack.c.l.b16 %v1166
    %v1296 = vunpack.c.h.b16 %v1166
    %v1297 = vunpack.c.l.b16 %v1167
    %v1298 = vunpack.c.h.b16 %v1167
    %v1299 = vunpack.c.l.b16 %v1168
    %v1300 = vunpack.c.h.b16 %v1168
    %v1301 = vunpack.c.l.b16 %v1169
    %v1302 = vunpack.c.h.b16 %v1169
    %v1303 = vunpack.c.l.b16 %v1170
    %v1304 = vunpack.c.h.b16 %v1170
    %v1305 = vunpack.c.l.b16 %v1171
    %v1306 = vunpack.c.h.b16 %v1171
    %v1307 = vunpack.c.l.b16 %v1172
    %v1308 = vunpack.c.h.b16 %v1172
    %v1309 = vunpack.c.l.b16 %v1173
    %v1310 = vunpack.c.h.b16 %v1173
    %v1311 = vunpack.c.l.b16 %v1174
    %v1312 = vunpack.c.h.b16 %v1174
    %v1313 = vunpack.c.l.b16 %v1175
    %v1314 = vunpack.c.h.b16 %v1175
    %v1315 = vunpack.c.l.b16 %v1176
    %v1316 = vunpack.c.h.b16 %v1176
    %v1317 = vunpack.c.l.b16 %v1177
    %v1318 = vunpack.c.h.b16 %v1177
    %v1319 = vunpack.c.l.b16 %v1178
    %v1320 = vunpack.c.h.b16 %v1178
    %v1321 = vunpack.c.l.b16 %v1179
    %v1322 = vunpack.c.h.b16 %v1179
    %v1323 = vunpack.c.l.b16 %v1180
    %v1324 = vunpack.c.h.b16 %v1180
    %v1325 = vunpack.c.l.b16 %v1181
    %v1326 = vunpack.c.h.b16 %v1181
    %v1327 = vunpack.c.l.b16 %v1182
    %v1328 = vunpack.c.h.b16 %v1182
    %v1329 = vunpack.c.l.b16 %v1183
    %v1330 = vunpack.c.h.b16 %v1183
    %v1331 = vunpack.c.l.b16 %v1184
    %v1332 = vunpack.c.h.b16 %v1184
    %v1333 = vunpack.c.l.b16 %v1185
    %v1334 = vunpack.c.h.b16 %v1185
    %v1335 = vunpack.c.l.b16 %v1186
    %v1336 = vunpack.c.h.b16 %v1186
    %v1337 = vpack.c.b16 %v1239, %v1237
    %v1338 = vpack.c.b16 %v1240, %v1238
    %v1339 = vpack.c.b16 %v1243, %v1241
    %v1340 = vpack.c.b16 %v1244, %v1242
    %v1341 = vpack.c.b16 %v1247, %v1245
    %v1342 = vpack.c.b16 %v1248, %v1246
    %v1343 = vpack.c.b16 %v1251, %v1249
    %v1344 = vpack.c.b16 %v1252, %v1250
    %v1345 = vpack.c.b16 %v1255, %v1253
    %v1346 = vpack.c.b16 %v1256, %v1254
    %v1347 = vpack.c.b16 %v1259, %v1257
    %v1348 = vpack.c.b16 %v1260, %v1258
    %v1349 = vpack.c.b16 %v1263, %v1261
    %v1350 = vpack.c.b16 %v1264, %v1262
    %v1351 = vpack.c.b16 %v1267, %v1265
    %v1352 = vpack.c.b16 %v1268, %v1266
    %v1353 = vpack.c.b16 %v1271, %v1269
    %v1354 = vpack.c.b16 %v1272, %v1270
    %v1355 = vpack.c.b16 %v1275, %v1273
    %v1356 = vpack.c.b16 %v1276, %v1274
    %v1357 = vpack.c.b16 %v1279, %v1277
    %v1358 = vpack.c.b16 %v1280, %v1278
    %v1359 = vpack.c.b16 %v1283, %v1281
    %v1360 = vpack.c.b16 %v1284, %v1282
    %v1361 = vpack.c.b16 %v1287, %v1285
    %v1362 = vpack.c.b16 %v1288, %v1286
    %v1363 = vpack.c.b16 %v1291, %v1289
    %v1364 = vpack.c.b16 %v1292, %v1290
    %v1365 = vpack.c.b16 %v1295, %v1293
    %v1366 = vpack.c.b16 %v1296, %v1294
    %v1367 = vpack.c.b16 %v1299, %v1297
    %v1368 = vpack.c.b16 %v1300, %v1298
    %v1369 = vpack.c.b16 %v1303, %v1301
    %v1370 = vpack.c.b16 %v1304, %v1302
    %v1371 = vpack.c.b16 %v1307, %v1305
    %v1372 = vpack.c.b16 %v1308, %v1306
    %v1373 = vpack.c.b16 %v1311, %v1309
    %v1374 = vpack.c.b16 %v1312, %v1310
    %v1375 = vpack.c.b16 %v1315, %v1313
    %v1376 = vpack.c.b16 %v1316, %v1314
    %v1377 = vpack.c.b16 %v1319, %v1317
    %v1378 = vpack.c.b16 %v1320, %v1318
    %v1379 = vpack.c.b16 %v1323, %v1321
    %v1380 = vpack.c.b16 %v1324, %v1322
    %v1381 = vpack.c.b16 %v1327, %v1325
    %v1382 = vpack.c.b16 %v1328, %v1326
    %v1383 = vpack.c.b16 %v1331, %v1329
    %v1384 = vpack.c.b16 %v1332, %v1330
    %v1385 = vpack.c.b16 %v1335, %v1333
    %v1386 = vpack.c.b16 %v1336, %v1334
    %v1438 = vsel %vm75, %v1135, 0
    %1440 = vmatprep.subr.bf16.mxu0 %v1338
    %1441 = vmatpush1.bf16.msra.mxu0 %v1337
    %1442 = vmatprep.subr.bf16.mxu0 %v1340
    %1443 = vmatpush1.bf16.msra.mxu0 %v1339
    %1444 = vmatprep.subr.bf16.mxu0 %v1342
    %1445 = vmatpush1.bf16.msra.mxu0 %v1341
    %1446 = vmatprep.subr.bf16.mxu0 %v1344
    %1447 = vmatpush1.bf16.msra.mxu0 %v1343
    %1448 = vmatprep.subr.bf16.mxu0 %v1346
    %1449 = vmatpush1.bf16.msra.mxu0 %v1345
    %1450 = vmatprep.subr.bf16.mxu0 %v1348
    %1451 = vmatpush1.bf16.msra.mxu0 %v1347
    %1452 = vmatprep.subr.bf16.mxu0 %v1350
    %1453 = vmatpush1.bf16.msra.mxu0 %v1349
    %1454 = vmatprep.subr.bf16.mxu0 %v1352
    %1455 = vmatpush1.bf16.msra.mxu0 %v1351
    %1456 = vmatprep.subr.bf16.mxu0 %v1354
    %1457 = vmatpush1.bf16.msra.mxu0 %v1353
    %1458 = vmatprep.subr.bf16.mxu0 %v1356
    %1459 = vmatpush1.bf16.msra.mxu0 %v1355
    %1460 = vmatprep.subr.bf16.mxu0 %v1358
    %1461 = vmatpush1.bf16.msra.mxu0 %v1357
    %1462 = vmatprep.subr.bf16.mxu0 %v1360
    %1463 = vmatpush1.bf16.msra.mxu0 %v1359
    %1464 = vmatprep.subr.bf16.mxu0 %v1362
    %1465 = vmatpush1.bf16.msra.mxu0 %v1361
    %1466 = vmatprep.subr.bf16.mxu0 %v1364
    %1467 = vmatpush1.bf16.msra.mxu0 %v1363
    %1468 = vmatprep.subr.bf16.mxu0 %v1366
    %1469 = vmatpush1.bf16.msra.mxu0 %v1365
    %1470 = vmatprep.subr.bf16.mxu0 %v1368
    %1471 = vmatpush1.bf16.msra.mxu0 %v1367
    %1472 = vmatprep.mubr.bf16.mxu0 %v1133
    %1473 = vmatmul.mubr.bf16.gmra.mrb[0].mxu0 %v1132
    %v1474 = vpop.f32.mrb[0].mxu0
    %v1475 = vadd.f32 0.0, %v1474
    %v1476 = vpop.f32.mrb[0].mxu0
    %v1477 = vadd.f32 0.0, %v1476
    %v1478 = vpop.f32.mrb[0].mxu0
    %v1479 = vadd.f32 0.0, %v1478
    %v1480 = vpop.f32.mrb[0].mxu0
    %v1481 = vadd.f32 0.0, %v1480
    %1482 = vdwg.mxu0
    %1483 = vmatprep.subr.bf16.mxu0 %v1370
    %1484 = vmatpush1.bf16.msra.mxu0 %v1369
    %1485 = vmatprep.subr.bf16.mxu0 %v1372
    %1486 = vmatpush1.bf16.msra.mxu0 %v1371
    %1487 = vmatprep.subr.bf16.mxu0 %v1374
    %1488 = vmatpush1.bf16.msra.mxu0 %v1373
    %1489 = vmatprep.subr.bf16.mxu0 %v1376
    %1490 = vmatpush1.bf16.msra.mxu0 %v1375
    %1491 = vmatprep.subr.bf16.mxu0 %v1378
    %1492 = vmatpush1.bf16.msra.mxu0 %v1377
    %1493 = vmatprep.subr.bf16.mxu0 %v1380
    %1494 = vmatpush1.bf16.msra.mxu0 %v1379
    %1495 = vmatprep.subr.bf16.mxu0 %v1382
    %1496 = vmatpush1.bf16.msra.mxu0 %v1381
    %1497 = vmatprep.subr.bf16.mxu0 %v1384
    %1498 = vmatpush1.bf16.msra.mxu0 %v1383
    %1499 = vmatprep.subr.bf16.mxu0 %v1386
    %1500 = vmatpush1.bf16.msra.mxu0 %v1385
    %1501 = vmatprep.subr.bf16.mxu0 0
    %1502 = vmatpush1.bf16.msra.mxu0 0
    %1503 = vmatprep.subr.bf16.mxu0 0
    %1504 = vmatpush1.bf16.msra.mxu0 0
    %1505 = vmatprep.subr.bf16.mxu0 0
    %1506 = vmatpush1.bf16.msra.mxu0 0
    %1507 = vmatprep.subr.bf16.mxu0 0
    %1508 = vmatpush1.bf16.msra.mxu0 0
    %1509 = vmatprep.subr.bf16.mxu0 0
    %1510 = vmatpush1.bf16.msra.mxu0 0
    %1511 = vmatprep.subr.bf16.mxu0 0
    %1512 = vmatpush1.bf16.msra.mxu0 0
    %1513 = vmatprep.subr.bf16.mxu0 0
    %1514 = vmatpush1.bf16.msra.mxu0 0
    %1515 = vmatprep.mubr.bf16.mxu0 %v1438
    %1516 = vmatmul.mubr.bf16.gmra.mrb[0].mxu0 %v1134
    %v1517 = vpop.f32.mrb[0].mxu0
    %v1518 = vadd.f32 %v1475, %v1517
    %v1519 = vpop.f32.mrb[0].mxu0
    %v1520 = vadd.f32 %v1477, %v1519
    %v1521 = vpop.f32.mrb[0].mxu0
    %v1522 = vadd.f32 %v1479, %v1521
    %v1523 = vpop.f32.mrb[0].mxu0
    %v1524 = vadd.f32 %v1481, %v1523
    %1525 = vdwg.mxu0
    %v1526 = vadd.f32 %v1059, %v1518
    %v1527 = vadd.f32 %v1061, %v1520
    %v1528 = vadd.f32 %v1063, %v1522
    %v1529 = vadd.f32 %v1065, %v1524
    %v1531 = vlaneseq
    %v1532 = vshrl.u32 %v1531, 7
    %v1533 = vsub.s32 0, %v1532
    %v1534 = vrot.slane %v206, %v1533
    %v1535 = vlaneseq
    %v1536 = vshrl.u32 %v1535, 7
    %v1537 = vsub.s32 1, %v1536
    %v1538 = vrot.slane %v206, %v1537
    %v1541 = vadd.f32 %v1526, %v1534
    %v1542 = vadd.f32 %v1527, %v1538
    %v1543 = vadd.f32 %v1528, %v1534
    %v1544 = vadd.f32 %v1529, %v1538
    %v1545 = vld [vmem:[%s3] sm:$0x3]
    %v1546 = vld [vmem:[%s4] sm:$0x3]
    %v1547 = vadd.f32 %v1541, %v1543
    %v1548 = vrot.slane %v1547, 4
    %v1549 = vadd.f32 %v1547, %v1548
    %v1550 = vrot.slane %v1549, 2
    %v1551 = vadd.f32 %v1549, %v1550
    %v1552 = vrot.slane %v1551, 1
    %v1553 = vadd.f32 %v1551, %v1552
    %v1554 = vadd.f32 %v1542, %v1544
    %v1555 = vrot.slane %v1554, 4
    %v1556 = vadd.f32 %v1554, %v1555
    %v1557 = vrot.slane %v1556, 2
    %v1558 = vadd.f32 %v1556, %v1557
    %v1559 = vrot.slane %v1558, 1
    %v1560 = vadd.f32 %v1558, %v1559
    %v1561 = vmul.f32 %v1541, %v1541
    %v1562 = vmul.f32 %v1542, %v1542
    %v1563 = vmul.f32 %v1543, %v1543
    %v1564 = vmul.f32 %v1544, %v1544
    %v1565 = vadd.f32 %v1561, %v1563
    %v1566 = vrot.slane %v1565, 4
    %v1567 = vadd.f32 %v1565, %v1566
    %v1568 = vrot.slane %v1567, 2
    %v1569 = vadd.f32 %v1567, %v1568
    %v1570 = vrot.slane %v1569, 1
    %v1571 = vadd.f32 %v1569, %v1570
    %v1572 = vadd.f32 %v1562, %v1564
    %v1573 = vrot.slane %v1572, 4
    %v1574 = vadd.f32 %v1572, %v1573
    %v1575 = vrot.slane %v1574, 2
    %v1576 = vadd.f32 %v1574, %v1575
    %v1577 = vrot.slane %v1576, 1
    %v1578 = vadd.f32 %v1576, %v1577
    %v1579 = vld [vmem:[%s10] sm:$0xff]
    %v1580 = vld [vmem:[%s10 + $0x8] sm:$0xff]
    %v1581 = vld [vmem:[%s10 + $0x10] sm:$0xff]
    %v1582 = vld [vmem:[%s10 + $0x18] sm:$0xff]
    %v1583 = vld [vmem:[%s10 + $0x20] sm:$0xff]
    %v1584 = vld [vmem:[%s10 + $0x28] sm:$0xff]
    %v1585 = vld [vmem:[%s10 + $0x30] sm:$0xff]
    %v1586 = vld [vmem:[%s10 + $0x38] sm:$0xff]
    %v1587 = vld [vmem:[%s10 + $0x40] sm:$0xff]
    %v1588 = vld [vmem:[%s10 + $0x48] sm:$0xff]
    %v1589 = vld [vmem:[%s10 + $0x50] sm:$0xff]
    %v1590 = vld [vmem:[%s10 + $0x58] sm:$0xff]
    %v1591 = vld [vmem:[%s10 + $0x60] sm:$0xff]
    %v1592 = vld [vmem:[%s10 + $0x68] sm:$0xff]
    %v1593 = vld [vmem:[%s10 + $0x70] sm:$0xff]
    %v1594 = vld [vmem:[%s10 + $0x78] sm:$0xff]
    %v1595 = vld [vmem:[%s10 + $0x80] sm:$0xff]
    %v1596 = vld [vmem:[%s10 + $0x88] sm:$0xff]
    %v1597 = vld [vmem:[%s10 + $0x90] sm:$0xff]
    %v1598 = vld [vmem:[%s10 + $0x98] sm:$0xff]
    %v1599 = vld [vmem:[%s10 + $0xa0] sm:$0xff]
    %v1600 = vld [vmem:[%s10 + $0xa8] sm:$0xff]
    %v1601 = vld [vmem:[%s10 + $0xb0] sm:$0xff]
    %v1602 = vld [vmem:[%s10 + $0xb8] sm:$0xff]
    %v1603 = vld [vmem:[%s10 + $0xc0] sm:$0xff]
    %v1604 = vld [vmem:[%s10 + $0xc8] sm:$0xff]
    %v1605 = vld [vmem:[%s10 + $0xd0] sm:$0xff]
    %v1606 = vld [vmem:[%s10 + $0xd8] sm:$0xff]
    %v1607 = vld [vmem:[%s10 + $0xe0] sm:$0xff]
    %v1608 = vld [vmem:[%s10 + $0xe8] sm:$0xff]
    %v1609 = vld [vmem:[%s10 + $0xf0] sm:$0xff]
    %v1610 = vld [vmem:[%s10 + $0xf8] sm:$0xff]
    %1611 = vmatprep.subr.mxu0 0.0
    %1612 = vmatpush1.msra.mxu0 %v1579
    %1613 = vmatprep.subr.mxu0 0.0
    %1614 = vmatpush1.msra.mxu0 %v1580
    %1615 = vmatprep.subr.mxu0 0.0
    %1616 = vmatpush1.msra.mxu0 %v1581
    %1617 = vmatprep.subr.mxu0 0.0
    %1618 = vmatpush1.msra.mxu0 %v1582
    %1619 = vmatprep.subr.mxu0 0.0
    %1620 = vmatpush1.msra.mxu0 %v1583
    %1621 = vmatprep.subr.mxu0 0.0
    %1622 = vmatpush1.msra.mxu0 %v1584
    %1623 = vmatprep.subr.mxu0 0.0
    %1624 = vmatpush1.msra.mxu0 %v1585
    %1625 = vmatprep.subr.mxu0 0.0
    %1626 = vmatpush1.msra.mxu0 %v1586
    %1627 = vmatprep.subr.mxu0 0.0
    %1628 = vmatpush1.msra.mxu0 %v1587
    %1629 = vmatprep.subr.mxu0 0.0
    %1630 = vmatpush1.msra.mxu0 %v1588
    %1631 = vmatprep.subr.mxu0 0.0
    %1632 = vmatpush1.msra.mxu0 %v1589
    %1633 = vmatprep.subr.mxu0 0.0
    %1634 = vmatpush1.msra.mxu0 %v1590
    %1635 = vmatprep.subr.mxu0 0.0
    %1636 = vmatpush1.msra.mxu0 %v1591
    %1637 = vmatprep.subr.mxu0 0.0
    %1638 = vmatpush1.msra.mxu0 %v1592
    %1639 = vmatprep.subr.mxu0 0.0
    %1640 = vmatpush1.msra.mxu0 %v1593
    %1641 = vmatprep.subr.mxu0 0.0
    %1642 = vmatpush1.msra.mxu0 %v1594
    %1643 = vmatprep.subr.mxu0 0.0
    %1644 = vmatpush1.msra.mxu0 %v1595
    %1645 = vmatprep.subr.mxu0 0.0
    %1646 = vmatpush1.msra.mxu0 %v1596
    %1647 = vmatprep.subr.mxu0 0.0
    %1648 = vmatpush1.msra.mxu0 %v1597
    %1649 = vmatprep.subr.mxu0 0.0
    %1650 = vmatpush1.msra.mxu0 %v1598
    %1651 = vmatprep.subr.mxu0 0.0
    %1652 = vmatpush1.msra.mxu0 %v1599
    %1653 = vmatprep.subr.mxu0 0.0
    %1654 = vmatpush1.msra.mxu0 %v1600
    %1655 = vmatprep.subr.mxu0 0.0
    %1656 = vmatpush1.msra.mxu0 %v1601
    %1657 = vmatprep.subr.mxu0 0.0
    %1658 = vmatpush1.msra.mxu0 %v1602
    %1659 = vmatprep.subr.mxu0 0.0
    %1660 = vmatpush1.msra.mxu0 %v1603
    %1661 = vmatprep.subr.mxu0 0.0
    %1662 = vmatpush1.msra.mxu0 %v1604
    %1663 = vmatprep.subr.mxu0 0.0
    %1664 = vmatpush1.msra.mxu0 %v1605
    %1665 = vmatprep.subr.mxu0 0.0
    %1666 = vmatpush1.msra.mxu0 %v1606
    %1667 = vmatprep.subr.mxu0 0.0
    %1668 = vmatpush1.msra.mxu0 %v1607
    %1669 = vmatprep.subr.mxu0 0.0
    %1670 = vmatpush1.msra.mxu0 %v1608
    %1671 = vmatprep.subr.mxu0 0.0
    %1672 = vmatpush1.msra.mxu0 %v1609
    %1673 = vmatprep.subr.mxu0 0.0
    %1674 = vmatpush1.msra.mxu0 %v1610
    %1675 = vmatprep.mubr.f32.mxu0 %v1560
    %1676 = vmatmul.mubr.f32.gmra.mrb[0].mxu0 %v1553
    %v1677 = vpop.f32.mrb[0].mxu0
    %v1678 = vadd.f32 0.0, %v1677
    %v1679 = vpop.f32.mrb[0].mxu0
    %1680 = vdwg.mxu0
    %1681 = vmatprep.subr.mxu0 0.0
    %1682 = vmatpush1.msra.mxu0 %v1579
    %1683 = vmatprep.subr.mxu0 0.0
    %1684 = vmatpush1.msra.mxu0 %v1580
    %1685 = vmatprep.subr.mxu0 0.0
    %1686 = vmatpush1.msra.mxu0 %v1581
    %1687 = vmatprep.subr.mxu0 0.0
    %1688 = vmatpush1.msra.mxu0 %v1582
    %1689 = vmatprep.subr.mxu0 0.0
    %1690 = vmatpush1.msra.mxu0 %v1583
    %1691 = vmatprep.subr.mxu0 0.0
    %1692 = vmatpush1.msra.mxu0 %v1584
    %1693 = vmatprep.subr.mxu0 0.0
    %1694 = vmatpush1.msra.mxu0 %v1585
    %1695 = vmatprep.subr.mxu0 0.0
    %1696 = vmatpush1.msra.mxu0 %v1586
    %1697 = vmatprep.subr.mxu0 0.0
    %1698 = vmatpush1.msra.mxu0 %v1587
    %1699 = vmatprep.subr.mxu0 0.0
    %1700 = vmatpush1.msra.mxu0 %v1588
    %1701 = vmatprep.subr.mxu0 0.0
    %1702 = vmatpush1.msra.mxu0 %v1589
    %1703 = vmatprep.subr.mxu0 0.0
    %1704 = vmatpush1.msra.mxu0 %v1590
    %1705 = vmatprep.subr.mxu0 0.0
    %1706 = vmatpush1.msra.mxu0 %v1591
    %1707 = vmatprep.subr.mxu0 0.0
    %1708 = vmatpush1.msra.mxu0 %v1592
    %1709 = vmatprep.subr.mxu0 0.0
    %1710 = vmatpush1.msra.mxu0 %v1593
    %1711 = vmatprep.subr.mxu0 0.0
    %1712 = vmatpush1.msra.mxu0 %v1594
    %1713 = vmatprep.subr.mxu0 0.0
    %1714 = vmatpush1.msra.mxu0 %v1595
    %1715 = vmatprep.subr.mxu0 0.0
    %1716 = vmatpush1.msra.mxu0 %v1596
    %1717 = vmatprep.subr.mxu0 0.0
    %1718 = vmatpush1.msra.mxu0 %v1597
    %1719 = vmatprep.subr.mxu0 0.0
    %1720 = vmatpush1.msra.mxu0 %v1598
    %1721 = vmatprep.subr.mxu0 0.0
    %1722 = vmatpush1.msra.mxu0 %v1599
    %1723 = vmatprep.subr.mxu0 0.0
    %1724 = vmatpush1.msra.mxu0 %v1600
    %1725 = vmatprep.subr.mxu0 0.0
    %1726 = vmatpush1.msra.mxu0 %v1601
    %1727 = vmatprep.subr.mxu0 0.0
    %1728 = vmatpush1.msra.mxu0 %v1602
    %1729 = vmatprep.subr.mxu0 0.0
    %1730 = vmatpush1.msra.mxu0 %v1603
    %1731 = vmatprep.subr.mxu0 0.0
    %1732 = vmatpush1.msra.mxu0 %v1604
    %1733 = vmatprep.subr.mxu0 0.0
    %1734 = vmatpush1.msra.mxu0 %v1605
    %1735 = vmatprep.subr.mxu0 0.0
    %1736 = vmatpush1.msra.mxu0 %v1606
    %1737 = vmatprep.subr.mxu0 0.0
    %1738 = vmatpush1.msra.mxu0 %v1607
    %1739 = vmatprep.subr.mxu0 0.0
    %1740 = vmatpush1.msra.mxu0 %v1608
    %1741 = vmatprep.subr.mxu0 0.0
    %1742 = vmatpush1.msra.mxu0 %v1609
    %1743 = vmatprep.subr.mxu0 0.0
    %1744 = vmatpush1.msra.mxu0 %v1610
    %1745 = vmatprep.mubr.f32.mxu0 %v1578
    %1746 = vmatmul.mubr.f32.gmra.mrb[0].mxu0 %v1571
    %v1747 = vpop.f32.mrb[0].mxu0
    %v1748 = vadd.f32 0.0, %v1747
    %v1749 = vpop.f32.mrb[0].mxu0
    %1750 = vdwg.mxu0
    %v1751 = vmul.f32 %v1678, 0.0009765625
    %v1752 = vmul.f32 %v1748, 0.0009765625
    %v1753 = vmul.f32 %v1751, %v1751
    %v1754 = vsub.f32 %v1752, %v1753
    %v1755 = vadd.f32 %v1754, 1e-05
    %v1756 = vrsqrt.pop %v1755
    %v1757 = vld [vmem:[%s9] sm:$0xff]
    %v1759 = vcombine.high %v1757, %v1757
    %vm1760 = vcmask 31744
    %v1762 = vsel %vm1760, %v1751, 0
    %vm1764 = vcmask 1043456
    %v1765 = vsel %vm1764, %v1757, 0
    %v1767 = vsel %vm1764, %v1759, 0
    %1769 = vmatprep.subr.mxu0 %v1767
    %1770 = vmatpush1.msra.mxu0 %v1765
    %1771 = vmatprep.subr.mxu0 0.0
    %1772 = vmatpush1.msra.mxu0 0.0
    %1773 = vmatprep.subr.mxu0 0.0
    %1774 = vmatpush1.msra.mxu0 0.0
    %1775 = vmatprep.subr.mxu0 0.0
    %1776 = vmatpush1.msra.mxu0 0.0
    %1777 = vmatprep.subr.mxu0 0.0
    %1778 = vmatpush1.msra.mxu0 0.0
    %1779 = vmatprep.subr.mxu0 0.0
    %1780 = vmatpush1.msra.mxu0 0.0
    %1781 = vmatprep.subr.mxu0 0.0
    %1782 = vmatpush1.msra.mxu0 0.0
    %1783 = vmatprep.subr.mxu0 0.0
    %1784 = vmatpush1.msra.mxu0 0.0
    %1785 = vmatprep.subr.mxu0 0.0
    %1786 = vmatpush1.msra.mxu0 0.0
    %1787 = vmatprep.subr.mxu0 0.0
    %1788 = vmatpush1.msra.mxu0 0.0
    %1789 = vmatprep.subr.mxu0 0.0
    %1790 = vmatpush1.msra.mxu0 0.0
    %1791 = vmatprep.subr.mxu0 0.0
    %1792 = vmatpush1.msra.mxu0 0.0
    %1793 = vmatprep.subr.mxu0 0.0
    %1794 = vmatpush1.msra.mxu0 0.0
    %1795 = vmatprep.subr.mxu0 0.0
    %1796 = vmatpush1.msra.mxu0 0.0
    %1797 = vmatprep.subr.mxu0 0.0
    %1798 = vmatpush1.msra.mxu0 0.0
    %1799 = vmatprep.subr.mxu0 0.0
    %1800 = vmatpush1.msra.mxu0 0.0
    %1801 = vmatprep.subr.mxu0 0.0
    %1802 = vmatpush1.msra.mxu0 0.0
    %1803 = vmatprep.subr.mxu0 0.0
    %1804 = vmatpush1.msra.mxu0 0.0
    %1805 = vmatprep.subr.mxu0 0.0
    %1806 = vmatpush1.msra.mxu0 0.0
    %1807 = vmatprep.subr.mxu0 0.0
    %1808 = vmatpush1.msra.mxu0 0.0
    %1809 = vmatprep.subr.mxu0 0.0
    %1810 = vmatpush1.msra.mxu0 0.0
    %1811 = vmatprep.subr.mxu0 0.0
    %1812 = vmatpush1.msra.mxu0 0.0
    %1813 = vmatprep.subr.mxu0 0.0
    %1814 = vmatpush1.msra.mxu0 0.0
    %1815 = vmatprep.subr.mxu0 0.0
    %1816 = vmatpush1.msra.mxu0 0.0
    %1817 = vmatprep.subr.mxu0 0.0
    %1818 = vmatpush1.msra.mxu0 0.0
    %1819 = vmatprep.subr.mxu0 0.0
    %1820 = vmatpush1.msra.mxu0 0.0
    %1821 = vmatprep.subr.mxu0 0.0
    %1822 = vmatpush1.msra.mxu0 0.0
    %1823 = vmatprep.subr.mxu0 0.0
    %1824 = vmatpush1.msra.mxu0 0.0
    %1825 = vmatprep.subr.mxu0 0.0
    %1826 = vmatpush1.msra.mxu0 0.0
    %1827 = vmatprep.subr.mxu0 0.0
    %1828 = vmatpush1.msra.mxu0 0.0
    %1829 = vmatprep.subr.mxu0 0.0
    %1830 = vmatpush1.msra.mxu0 0.0
    %1831 = vmatprep.subr.mxu0 0.0
    %1832 = vmatpush1.msra.mxu0 0.0
    %1833 = vmatprep.mubr.f32.mxu0 0.0
    %1834 = vmatmul.mubr.f32.gmra.mrb[0].mxu0 %v1762
    %v1835 = vpop.f32.mrb[0].mxu0
    %v1836 = vadd.f32 0.0, %v1835
    %v1837 = vpop.f32.mrb[0].mxu0
    %v1838 = vadd.f32 0.0, %v1837
    %1839 = vdwg.mxu0
    %v1841 = vsel %vm1760, %v1756, 0
    %1843 = vmatprep.subr.mxu0 %v1767
    %1844 = vmatpush1.msra.mxu0 %v1765
    %1845 = vmatprep.subr.mxu0 0.0
    %1846 = vmatpush1.msra.mxu0 0.0
    %1847 = vmatprep.subr.mxu0 0.0
    %1848 = vmatpush1.msra.mxu0 0.0
    %1849 = vmatprep.subr.mxu0 0.0
    %1850 = vmatpush1.msra.mxu0 0.0
    %1851 = vmatprep.subr.mxu0 0.0
    %1852 = vmatpush1.msra.mxu0 0.0
    %1853 = vmatprep.subr.mxu0 0.0
    %1854 = vmatpush1.msra.mxu0 0.0
    %1855 = vmatprep.subr.mxu0 0.0
    %1856 = vmatpush1.msra.mxu0 0.0
    %1857 = vmatprep.subr.mxu0 0.0
    %1858 = vmatpush1.msra.mxu0 0.0
    %1859 = vmatprep.subr.mxu0 0.0
    %1860 = vmatpush1.msra.mxu0 0.0
    %1861 = vmatprep.subr.mxu0 0.0
    %1862 = vmatpush1.msra.mxu0 0.0
    %1863 = vmatprep.subr.mxu0 0.0
    %1864 = vmatpush1.msra.mxu0 0.0
    %1865 = vmatprep.subr.mxu0 0.0
    %1866 = vmatpush1.msra.mxu0 0.0
    %1867 = vmatprep.subr.mxu0 0.0
    %1868 = vmatpush1.msra.mxu0 0.0
    %1869 = vmatprep.subr.mxu0 0.0
    %1870 = vmatpush1.msra.mxu0 0.0
    %1871 = vmatprep.subr.mxu0 0.0
    %1872 = vmatpush1.msra.mxu0 0.0
    %1873 = vmatprep.subr.mxu0 0.0
    %1874 = vmatpush1.msra.mxu0 0.0
    %1875 = vmatprep.subr.mxu0 0.0
    %1876 = vmatpush1.msra.mxu0 0.0
    %1877 = vmatprep.subr.mxu0 0.0
    %1878 = vmatpush1.msra.mxu0 0.0
    %1879 = vmatprep.subr.mxu0 0.0
    %1880 = vmatpush1.msra.mxu0 0.0
    %1881 = vmatprep.subr.mxu0 0.0
    %1882 = vmatpush1.msra.mxu0 0.0
    %1883 = vmatprep.subr.mxu0 0.0
    %1884 = vmatpush1.msra.mxu0 0.0
    %1885 = vmatprep.subr.mxu0 0.0
    %1886 = vmatpush1.msra.mxu0 0.0
    %1887 = vmatprep.subr.mxu0 0.0
    %1888 = vmatpush1.msra.mxu0 0.0
    %1889 = vmatprep.subr.mxu0 0.0
    %1890 = vmatpush1.msra.mxu0 0.0
    %1891 = vmatprep.subr.mxu0 0.0
    %1892 = vmatpush1.msra.mxu0 0.0
    %1893 = vmatprep.subr.mxu0 0.0
    %1894 = vmatpush1.msra.mxu0 0.0
    %1895 = vmatprep.subr.mxu0 0.0
    %1896 = vmatpush1.msra.mxu0 0.0
    %1897 = vmatprep.subr.mxu0 0.0
    %1898 = vmatpush1.msra.mxu0 0.0
    %1899 = vmatprep.subr.mxu0 0.0
    %1900 = vmatpush1.msra.mxu0 0.0
    %1901 = vmatprep.subr.mxu0 0.0
    %1902 = vmatpush1.msra.mxu0 0.0
    %1903 = vmatprep.subr.mxu0 0.0
    %1904 = vmatpush1.msra.mxu0 0.0
    %1905 = vmatprep.subr.mxu0 0.0
    %1906 = vmatpush1.msra.mxu0 0.0
    %1907 = vmatprep.mubr.f32.mxu0 0.0
    %1908 = vmatmul.mubr.f32.gmra.mrb[0].mxu0 %v1841
    %v1909 = vpop.f32.mrb[0].mxu0
    %v1910 = vadd.f32 0.0, %v1909
    %v1911 = vpop.f32.mrb[0].mxu0
    %v1912 = vadd.f32 0.0, %v1911
    %1913 = vdwg.mxu0
    %v1914 = vlaneseq
    %v1915 = vshrl.u32 %v1914, 7
    %v1916 = vsub.s32 0, %v1915
    %v1917 = vrot.slane %v1836, %v1916
    %v1918 = vlaneseq
    %v1919 = vshrl.u32 %v1918, 7
    %v1920 = vsub.s32 0, %v1919
    %v1921 = vrot.slane %v1838, %v1920
    %v1922 = vsub.f32 %v1541, %v1917
    %v1923 = vsub.f32 %v1542, %v1921
    %v1924 = vsub.f32 %v1543, %v1917
    %v1925 = vsub.f32 %v1544, %v1921
    %v1927 = vlaneseq
    %v1928 = vshrl.u32 %v1927, 7
    %v1929 = vsub.s32 0, %v1928
    %v1930 = vrot.slane %v1545, %v1929
    %v1931 = vlaneseq
    %v1932 = vshrl.u32 %v1931, 7
    %v1933 = vsub.s32 1, %v1932
    %v1934 = vrot.slane %v1545, %v1933
    %v1937 = vmul.f32 %v1910, %v1930
    %v1938 = vmul.f32 %v1912, %v1934
    %v1939 = vlaneseq
    %v1940 = vshrl.u32 %v1939, 7
    %v1941 = vsub.s32 0, %v1940
    %v1942 = vrot.slane %v1937, %v1941
    %v1943 = vlaneseq
    %v1944 = vshrl.u32 %v1943, 7
    %v1945 = vsub.s32 0, %v1944
    %v1946 = vrot.slane %v1938, %v1945
    %v1947 = vmul.f32 %v1922, %v1942
    %v1948 = vmul.f32 %v1923, %v1946
    %v1949 = vmul.f32 %v1924, %v1942
    %v1950 = vmul.f32 %v1925, %v1946
    %v1952 = vlaneseq
    %v1953 = vshrl.u32 %v1952, 7
    %v1954 = vsub.s32 0, %v1953
    %v1955 = vrot.slane %v1546, %v1954
    %v1956 = vlaneseq
    %v1957 = vshrl.u32 %v1956, 7
    %v1958 = vsub.s32 1, %v1957
    %v1959 = vrot.slane %v1546, %v1958
    %v1962 = vadd.f32 %v1947, %v1955
    %v1963 = vadd.f32 %v1948, %v1959
    %v1964 = vadd.f32 %v1949, %v1955
    %v1965 = vadd.f32 %v1950, %v1959
    %v1966 = vmax.f32 %v1962, 0.0
    %v1967 = vmax.f32 %v1963, 0.0
    %v1968 = vmax.f32 %v1964, 0.0
    %v1969 = vmax.f32 %v1965, 0.0
    %v1972 = vrot.slane %v1966, 7
    %v1973 = vrot.slane %v1968, 7
    %1974 = vrot.lane.b32.xlu0 %v1972, 44
    %v1975 = vpop.permute.xlu0 %1974
    %1976 = vrot.lane.b32.xlu0 %v1973, 44
    %v1977 = vpop.permute.xlu0 %1976
    %1980 = vst.msk [vmem:[#allocation2] sm:$0xfe] %vm100, %v1975
    %1981 = vst.msk [vmem:[#allocation2 + $0x20] sm:$0x1] %vm102, %v1975
    %1982 = vst.msk [vmem:[#allocation2 + $0x40] sm:$0xfe] %vm100, %v1977
    %1983 = vst.msk [vmem:[#allocation2 + $0x60] sm:$0x1] %vm102, %v1977
    %1984 = vrot.lane.b32.xlu0 %v1972, 52
    %v1985 = vpop.permute.xlu0 %1984
    %1986 = vrot.lane.b32.xlu0 %v1973, 52
    %v1987 = vpop.permute.xlu0 %1986
    %1990 = vst.msk [vmem:[#allocation2] sm:$0xfe] %vm112, %v1985
    %1991 = vst.msk [vmem:[#allocation2 + $0x20] sm:$0x1] %vm114, %v1985
    %1992 = vst.msk [vmem:[#allocation2 + $0x40] sm:$0xfe] %vm112, %v1987
    %1993 = vst.msk [vmem:[#allocation2 + $0x60] sm:$0x1] %vm114, %v1987
    %1994 = vrot.lane.b32.xlu0 %v1972, 60
    %v1995 = vpop.permute.xlu0 %1994
    %1996 = vrot.lane.b32.xlu0 %v1973, 60
    %v1997 = vpop.permute.xlu0 %1996
    %2000 = vst.msk [vmem:[#allocation2] sm:$0xfe] %vm124, %v1995
    %2001 = vst.msk [vmem:[#allocation2 + $0x8] sm:$0xfe] %vm126, %v1995
    %2002 = vst.msk [vmem:[#allocation2 + $0x20] sm:$0x1] %vm128, %v1995
    %2003 = vst.msk [vmem:[#allocation2 + $0x28] sm:$0x1] %vm130, %v1995
    %2004 = vst.msk [vmem:[#allocation2 + $0x40] sm:$0xfe] %vm124, %v1997
    %2005 = vst.msk [vmem:[#allocation2 + $0x48] sm:$0xfe] %vm126, %v1997
    %2006 = vst.msk [vmem:[#allocation2 + $0x60] sm:$0x1] %vm128, %v1997
    %2007 = vst.msk [vmem:[#allocation2 + $0x68] sm:$0x1] %vm130, %v1997
    %2008 = vrot.lane.b32.xlu0 %v1972, 68
    %v2009 = vpop.permute.xlu0 %2008
    %2010 = vrot.lane.b32.xlu0 %v1973, 68
    %v2011 = vpop.permute.xlu0 %2010
    %2014 = vst.msk [vmem:[#allocation2 + $0x8] sm:$0xfe] %vm142, %v2009
    %2015 = vst.msk [vmem:[#allocation2 + $0x28] sm:$0x1] %vm144, %v2009
    %2016 = vst.msk [vmem:[#allocation2 + $0x48] sm:$0xfe] %vm142, %v2011
    %2017 = vst.msk [vmem:[#allocation2 + $0x68] sm:$0x1] %vm144, %v2011
    %v2020 = vrot.slane %v1967, 7
    %v2021 = vrot.slane %v1969, 7
    %2022 = vrot.lane.b32.xlu0 %v2020, 76
    %v2023 = vpop.permute.xlu0 %2022
    %2024 = vrot.lane.b32.xlu0 %v2021, 76
    %v2025 = vpop.permute.xlu0 %2024
    %2028 = vst.msk [vmem:[#allocation2 + $0x8] sm:$0xfe] %vm158, %v2023
    %2029 = vst.msk [vmem:[#allocation2 + $0x28] sm:$0x1] %vm160, %v2023
    %2030 = vst.msk [vmem:[#allocation2 + $0x48] sm:$0xfe] %vm158, %v2025
    %2031 = vst.msk [vmem:[#allocation2 + $0x68] sm:$0x1] %vm160, %v2025
    %2032 = vrot.lane.b32.xlu0 %v2020, 84
    %v2033 = vpop.permute.xlu0 %2032
    %2034 = vrot.lane.b32.xlu0 %v2021, 84
    %v2035 = vpop.permute.xlu0 %2034
    %2038 = vst.msk [vmem:[#allocation2 + $0x8] sm:$0xfe] %vm170, %v2033
    %2039 = vst.msk [vmem:[#allocation2 + $0x10] sm:$0xfe] %vm172, %v2033
    %2040 = vst.msk [vmem:[#allocation2 + $0x28] sm:$0x1] %vm174, %v2033
    %2041 = vst.msk [vmem:[#allocation2 + $0x30] sm:$0x1] %vm176, %v2033
    %2042 = vst.msk [vmem:[#allocation2 + $0x48] sm:$0xfe] %vm170, %v2035
    %2043 = vst.msk [vmem:[#allocation2 + $0x50] sm:$0xfe] %vm172, %v2035
    %2044 = vst.msk [vmem:[#allocation2 + $0x68] sm:$0x1] %vm174, %v2035
    %2045 = vst.msk [vmem:[#allocation2 + $0x70] sm:$0x1] %vm176, %v2035
    %2046 = vrot.lane.b32.xlu0 %v2020, 92
    %v2047 = vpop.permute.xlu0 %2046
    %2048 = vrot.lane.b32.xlu0 %v2021, 92
    %v2049 = vpop.permute.xlu0 %2048
    %2052 = vst.msk [vmem:[#allocation2 + $0x10] sm:$0xfe] %vm188, %v2047
    %2053 = vst.msk [vmem:[#allocation2 + $0x30] sm:$0x1] %vm190, %v2047
    %2054 = vst.msk [vmem:[#allocation2 + $0x50] sm:$0xfe] %vm188, %v2049
    %2055 = vst.msk [vmem:[#allocation2 + $0x70] sm:$0x1] %vm190, %v2049
    %2056 = vrot.lane.b32.xlu0 %v2020, 100
    %v2057 = vpop.permute.xlu0 %2056
    %2058 = vrot.lane.b32.xlu0 %v2021, 100
    %v2059 = vpop.permute.xlu0 %2058
    %2062 = vst.msk [vmem:[#allocation2 + $0x10] sm:$0xfe] %vm200, %v2057
    %2063 = vst.msk [vmem:[#allocation2 + $0x30] sm:$0x1] %vm202, %v2057
    %2064 = vst.msk [vmem:[#allocation2 + $0x50] sm:$0xfe] %vm200, %v2059
    %2065 = vst.msk [vmem:[#allocation2 + $0x70] sm:$0x1] %vm202, %v2059
    %v2066 = vld [vmem:[%s6] sm:$0x3]
    %v2067 = vld [vmem:[#allocation2] sm:$0xff]
    %v2068 = vld [vmem:[#allocation2 + $0x8] sm:$0xff]
    %v2069 = vld [vmem:[#allocation2 + $0x10] sm:$0xff]
    %v2070 = vld [vmem:[#allocation2 + $0x18] sm:$0xff]
    %v2071 = vld [vmem:[#allocation2 + $0x40] sm:$0xff]
    %v2072 = vld [vmem:[#allocation2 + $0x48] sm:$0xff]
    %v2073 = vld [vmem:[#allocation2 + $0x50] sm:$0xff]
    %v2074 = vld [vmem:[#allocation2 + $0x58] sm:$0xff]
    %v2075 = vpack.c.bf16 %v2071, %v2067
    %v2076 = vpack.c.bf16 %v2072, %v2068
    %v2077 = vpack.c.bf16 %v2073, %v2069
    %v2078 = vpack.c.bf16 %v2074, %v2070
    %v2079 = vld [vmem:[#allocation6] sm:$0xff]
    %v2080 = vld [vmem:[#allocation6 + $0x8] sm:$0xff]
    %v2081 = vld [vmem:[#allocation6 + $0x10] sm:$0xff]
    %v2082 = vld [vmem:[#allocation6 + $0x18] sm:$0xff]
    %v2083 = vld [vmem:[#allocation6 + $0x20] sm:$0xff]
    %v2084 = vld [vmem:[#allocation6 + $0x28] sm:$0xff]
    %v2085 = vld [vmem:[#allocation6 + $0x30] sm:$0xff]
    %v2086 = vld [vmem:[#allocation6 + $0x38] sm:$0xff]
    %v2087 = vld [vmem:[#allocation6 + $0x40] sm:$0xff]
    %v2088 = vld [vmem:[#allocation6 + $0x48] sm:$0xff]
    %v2089 = vld [vmem:[#allocation6 + $0x50] sm:$0xff]
    %v2090 = vld [vmem:[#allocation6 + $0x58] sm:$0xff]
    %v2091 = vld [vmem:[#allocation6 + $0x60] sm:$0xff]
    %v2092 = vld [vmem:[#allocation6 + $0x68] sm:$0xff]
    %v2093 = vld [vmem:[#allocation6 + $0x70] sm:$0xff]
    %v2094 = vld [vmem:[#allocation6 + $0x78] sm:$0xff]
    %v2095 = vld [vmem:[#allocation6 + $0x80] sm:$0xff]
    %v2096 = vld [vmem:[#allocation6 + $0x88] sm:$0xff]
    %v2097 = vld [vmem:[#allocation6 + $0x90] sm:$0xff]
    %v2098 = vld [vmem:[#allocation6 + $0x98] sm:$0xff]
    %v2099 = vld [vmem:[#allocation6 + $0xa0] sm:$0xff]
    %v2100 = vld [vmem:[#allocation6 + $0xa8] sm:$0xff]
    %v2101 = vld [vmem:[#allocation6 + $0xb0] sm:$0xff]
    %v2102 = vld [vmem:[#allocation6 + $0xb8] sm:$0xff]
    %v2103 = vld [vmem:[#allocation6 + $0xc0] sm:$0xff]
    %v2104 = vld [vmem:[#allocation6 + $0xc8] sm:$0xff]
    %v2105 = vld [vmem:[#allocation6 + $0xd0] sm:$0xff]
    %v2106 = vld [vmem:[#allocation6 + $0xd8] sm:$0xff]
    %v2107 = vld [vmem:[#allocation6 + $0xe0] sm:$0xff]
    %v2108 = vld [vmem:[#allocation6 + $0xe8] sm:$0xff]
    %v2109 = vld [vmem:[#allocation6 + $0xf0] sm:$0xff]
    %v2110 = vld [vmem:[#allocation6 + $0xf8] sm:$0xff]
    %v2111 = vld [vmem:[#allocation6 + $0x100] sm:$0xff]
    %v2112 = vld [vmem:[#allocation6 + $0x108] sm:$0xff]
    %v2113 = vld [vmem:[#allocation6 + $0x110] sm:$0xff]
    %v2114 = vld [vmem:[#allocation6 + $0x118] sm:$0xff]
    %v2115 = vld [vmem:[#allocation6 + $0x120] sm:$0xff]
    %v2116 = vld [vmem:[#allocation6 + $0x128] sm:$0xff]
    %v2117 = vld [vmem:[#allocation6 + $0x130] sm:$0xff]
    %v2118 = vld [vmem:[#allocation6 + $0x138] sm:$0xff]
    %v2119 = vld [vmem:[#allocation6 + $0x140] sm:$0xff]
    %v2120 = vld [vmem:[#allocation6 + $0x148] sm:$0xff]
    %v2121 = vld [vmem:[#allocation6 + $0x150] sm:$0xff]
    %v2122 = vld [vmem:[#allocation6 + $0x158] sm:$0xff]
    %v2123 = vld [vmem:[#allocation6 + $0x160] sm:$0xff]
    %v2124 = vld [vmem:[#allocation6 + $0x168] sm:$0xff]
    %v2125 = vld [vmem:[#allocation6 + $0x170] sm:$0xff]
    %v2126 = vld [vmem:[#allocation6 + $0x178] sm:$0xff]
    %v2127 = vld [vmem:[#allocation6 + $0x180] sm:$0xff]
    %v2128 = vld [vmem:[#allocation6 + $0x188] sm:$0xff]
    %v2129 = vld [vmem:[#allocation2] sm:$0xfe]
    %v2130 = vld [vmem:[#allocation2 + $0x8] sm:$0xfe]
    %v2131 = vld [vmem:[#allocation2 + $0x10] sm:$0xfe]
    %v2132 = vld [vmem:[#allocation2 + $0x18] sm:$0xfe]
    %v2133 = vld [vmem:[#allocation2 + $0x20] sm:$0x1]
    %v2134 = vld [vmem:[#allocation2 + $0x28] sm:$0x1]
    %v2135 = vld [vmem:[#allocation2 + $0x30] sm:$0x1]
    %v2136 = vld [vmem:[#allocation2 + $0x38] sm:$0x1]
    %v2137 = vld [vmem:[#allocation2 + $0x40] sm:$0xfe]
    %v2138 = vld [vmem:[#allocation2 + $0x48] sm:$0xfe]
    %v2139 = vld [vmem:[#allocation2 + $0x50] sm:$0xfe]
    %v2140 = vld [vmem:[#allocation2 + $0x58] sm:$0xfe]
    %v2141 = vld [vmem:[#allocation2 + $0x60] sm:$0x1]
    %v2142 = vld [vmem:[#allocation2 + $0x68] sm:$0x1]
    %v2143 = vld [vmem:[#allocation2 + $0x70] sm:$0x1]
    %v2144 = vld [vmem:[#allocation2 + $0x78] sm:$0x1]
    %v2161 = vrot.slane %v2129, 1
    %v2162 = vrot.slane %v2133, 1
    %v2163 = vsel %vm301, %v2161, %v2162
    %v2164 = vrot.slane %v2130, 1
    %v2165 = vrot.slane %v2134, 1
    %v2166 = vsel %vm301, %v2164, %v2165
    %v2167 = vrot.slane %v2131, 1
    %v2168 = vrot.slane %v2135, 1
    %v2169 = vsel %vm301, %v2167, %v2168
    %v2170 = vrot.slane %v2132, 1
    %v2171 = vrot.slane %v2136, 1
    %v2172 = vsel %vm301, %v2170, %v2171
    %v2173 = vrot.slane %v2137, 1
    %v2174 = vrot.slane %v2141, 1
    %v2175 = vsel %vm301, %v2173, %v2174
    %v2176 = vrot.slane %v2138, 1
    %v2177 = vrot.slane %v2142, 1
    %v2178 = vsel %vm301, %v2176, %v2177
    %v2179 = vrot.slane %v2139, 1
    %v2180 = vrot.slane %v2143, 1
    %v2181 = vsel %vm301, %v2179, %v2180
    %v2182 = vrot.slane %v2140, 1
    %v2183 = vrot.slane %v2144, 1
    %v2184 = vsel %vm301, %v2182, %v2183
    %v2193 = vpack.c.bf16 %v2175, %v2163
    %v2194 = vpack.c.bf16 %v2178, %v2166
    %v2195 = vpack.c.bf16 %v2181, %v2169
    %v2196 = vpack.c.bf16 %v2184, %v2172
    %s2197 = scalar_lea.vmem [#allocation6], 400
    %v2198 = vld [vmem:[%s2197] sm:$0xff]
    %v2199 = vld [vmem:[%s2197 + $0x8] sm:$0xff]
    %v2200 = vld [vmem:[%s2197 + $0x10] sm:$0xff]
    %v2201 = vld [vmem:[%s2197 + $0x18] sm:$0xff]
    %v2202 = vld [vmem:[%s2197 + $0x20] sm:$0xff]
    %v2203 = vld [vmem:[%s2197 + $0x28] sm:$0xff]
    %v2204 = vld [vmem:[%s2197 + $0x30] sm:$0xff]
    %v2205 = vld [vmem:[%s2197 + $0x38] sm:$0xff]
    %v2206 = vld [vmem:[%s2197 + $0x40] sm:$0xff]
    %v2207 = vld [vmem:[%s2197 + $0x48] sm:$0xff]
    %v2208 = vld [vmem:[%s2197 + $0x50] sm:$0xff]
    %v2209 = vld [vmem:[%s2197 + $0x58] sm:$0xff]
    %v2210 = vld [vmem:[%s2197 + $0x60] sm:$0xff]
    %v2211 = vld [vmem:[%s2197 + $0x68] sm:$0xff]
    %v2212 = vld [vmem:[%s2197 + $0x70] sm:$0xff]
    %v2213 = vld [vmem:[%s2197 + $0x78] sm:$0xff]
    %v2214 = vld [vmem:[%s2197 + $0x80] sm:$0xff]
    %v2215 = vld [vmem:[%s2197 + $0x88] sm:$0xff]
    %v2216 = vld [vmem:[%s2197 + $0x90] sm:$0xff]
    %v2217 = vld [vmem:[%s2197 + $0x98] sm:$0xff]
    %v2218 = vld [vmem:[%s2197 + $0xa0] sm:$0xff]
    %v2219 = vld [vmem:[%s2197 + $0xa8] sm:$0xff]
    %v2220 = vld [vmem:[%s2197 + $0xb0] sm:$0xff]
    %v2221 = vld [vmem:[%s2197 + $0xb8] sm:$0xff]
    %v2222 = vld [vmem:[%s2197 + $0xc0] sm:$0xff]
    %v2223 = vld [vmem:[%s2197 + $0xc8] sm:$0xff]
    %v2224 = vld [vmem:[%s2197 + $0xd0] sm:$0xff]
    %v2225 = vld [vmem:[%s2197 + $0xd8] sm:$0xff]
    %v2226 = vld [vmem:[%s2197 + $0xe0] sm:$0xff]
    %v2227 = vld [vmem:[%s2197 + $0xe8] sm:$0xff]
    %v2228 = vld [vmem:[%s2197 + $0xf0] sm:$0xff]
    %v2229 = vld [vmem:[%s2197 + $0xf8] sm:$0xff]
    %v2230 = vld [vmem:[%s2197 + $0x100] sm:$0xff]
    %v2231 = vld [vmem:[%s2197 + $0x108] sm:$0xff]
    %v2232 = vld [vmem:[%s2197 + $0x110] sm:$0xff]
    %v2233 = vld [vmem:[%s2197 + $0x118] sm:$0xff]
    %v2234 = vld [vmem:[%s2197 + $0x120] sm:$0xff]
    %v2235 = vld [vmem:[%s2197 + $0x128] sm:$0xff]
    %v2236 = vld [vmem:[%s2197 + $0x130] sm:$0xff]
    %v2237 = vld [vmem:[%s2197 + $0x138] sm:$0xff]
    %v2238 = vld [vmem:[%s2197 + $0x140] sm:$0xff]
    %v2239 = vld [vmem:[%s2197 + $0x148] sm:$0xff]
    %v2240 = vld [vmem:[%s2197 + $0x150] sm:$0xff]
    %v2241 = vld [vmem:[%s2197 + $0x158] sm:$0xff]
    %v2242 = vld [vmem:[%s2197 + $0x160] sm:$0xff]
    %v2243 = vld [vmem:[%s2197 + $0x168] sm:$0xff]
    %v2244 = vld [vmem:[%s2197 + $0x170] sm:$0xff]
    %v2245 = vld [vmem:[%s2197 + $0x178] sm:$0xff]
    %v2246 = vld [vmem:[%s2197 + $0x180] sm:$0xff]
    %v2247 = vld [vmem:[%s2197 + $0x188] sm:$0xff]
    %v2298 = vunpack.c.l.b16 %v2198
    %v2299 = vunpack.c.h.b16 %v2198
    %v2300 = vunpack.c.l.b16 %v2199
    %v2301 = vunpack.c.h.b16 %v2199
    %v2302 = vunpack.c.l.b16 %v2200
    %v2303 = vunpack.c.h.b16 %v2200
    %v2304 = vunpack.c.l.b16 %v2201
    %v2305 = vunpack.c.h.b16 %v2201
    %v2306 = vunpack.c.l.b16 %v2202
    %v2307 = vunpack.c.h.b16 %v2202
    %v2308 = vunpack.c.l.b16 %v2203
    %v2309 = vunpack.c.h.b16 %v2203
    %v2310 = vunpack.c.l.b16 %v2204
    %v2311 = vunpack.c.h.b16 %v2204
    %v2312 = vunpack.c.l.b16 %v2205
    %v2313 = vunpack.c.h.b16 %v2205
    %v2314 = vunpack.c.l.b16 %v2206
    %v2315 = vunpack.c.h.b16 %v2206
    %v2316 = vunpack.c.l.b16 %v2207
    %v2317 = vunpack.c.h.b16 %v2207
    %v2318 = vunpack.c.l.b16 %v2208
    %v2319 = vunpack.c.h.b16 %v2208
    %v2320 = vunpack.c.l.b16 %v2209
    %v2321 = vunpack.c.h.b16 %v2209
    %v2322 = vunpack.c.l.b16 %v2210
    %v2323 = vunpack.c.h.b16 %v2210
    %v2324 = vunpack.c.l.b16 %v2211
    %v2325 = vunpack.c.h.b16 %v2211
    %v2326 = vunpack.c.l.b16 %v2212
    %v2327 = vunpack.c.h.b16 %v2212
    %v2328 = vunpack.c.l.b16 %v2213
    %v2329 = vunpack.c.h.b16 %v2213
    %v2330 = vunpack.c.l.b16 %v2214
    %v2331 = vunpack.c.h.b16 %v2214
    %v2332 = vunpack.c.l.b16 %v2215
    %v2333 = vunpack.c.h.b16 %v2215
    %v2334 = vunpack.c.l.b16 %v2216
    %v2335 = vunpack.c.h.b16 %v2216
    %v2336 = vunpack.c.l.b16 %v2217
    %v2337 = vunpack.c.h.b16 %v2217
    %v2338 = vunpack.c.l.b16 %v2218
    %v2339 = vunpack.c.h.b16 %v2218
    %v2340 = vunpack.c.l.b16 %v2219
    %v2341 = vunpack.c.h.b16 %v2219
    %v2342 = vunpack.c.l.b16 %v2220
    %v2343 = vunpack.c.h.b16 %v2220
    %v2344 = vunpack.c.l.b16 %v2221
    %v2345 = vunpack.c.h.b16 %v2221
    %v2346 = vunpack.c.l.b16 %v2222
    %v2347 = vunpack.c.h.b16 %v2222
    %v2348 = vunpack.c.l.b16 %v2223
    %v2349 = vunpack.c.h.b16 %v2223
    %v2350 = vunpack.c.l.b16 %v2224
    %v2351 = vunpack.c.h.b16 %v2224
    %v2352 = vunpack.c.l.b16 %v2225
    %v2353 = vunpack.c.h.b16 %v2225
    %v2354 = vunpack.c.l.b16 %v2226
    %v2355 = vunpack.c.h.b16 %v2226
    %v2356 = vunpack.c.l.b16 %v2227
    %v2357 = vunpack.c.h.b16 %v2227
    %v2358 = vunpack.c.l.b16 %v2228
    %v2359 = vunpack.c.h.b16 %v2228
    %v2360 = vunpack.c.l.b16 %v2229
    %v2361 = vunpack.c.h.b16 %v2229
    %v2362 = vunpack.c.l.b16 %v2230
    %v2363 = vunpack.c.h.b16 %v2230
    %v2364 = vunpack.c.l.b16 %v2231
    %v2365 = vunpack.c.h.b16 %v2231
    %v2366 = vunpack.c.l.b16 %v2232
    %v2367 = vunpack.c.h.b16 %v2232
    %v2368 = vunpack.c.l.b16 %v2233
    %v2369 = vunpack.c.h.b16 %v2233
    %v2370 = vunpack.c.l.b16 %v2234
    %v2371 = vunpack.c.h.b16 %v2234
    %v2372 = vunpack.c.l.b16 %v2235
    %v2373 = vunpack.c.h.b16 %v2235
    %v2374 = vunpack.c.l.b16 %v2236
    %v2375 = vunpack.c.h.b16 %v2236
    %v2376 = vunpack.c.l.b16 %v2237
    %v2377 = vunpack.c.h.b16 %v2237
    %v2378 = vunpack.c.l.b16 %v2238
    %v2379 = vunpack.c.h.b16 %v2238
    %v2380 = vunpack.c.l.b16 %v2239
    %v2381 = vunpack.c.h.b16 %v2239
    %v2382 = vunpack.c.l.b16 %v2240
    %v2383 = vunpack.c.h.b16 %v2240
    %v2384 = vunpack.c.l.b16 %v2241
    %v2385 = vunpack.c.h.b16 %v2241
    %v2386 = vunpack.c.l.b16 %v2242
    %v2387 = vunpack.c.h.b16 %v2242
    %v2388 = vunpack.c.l.b16 %v2243
    %v2389 = vunpack.c.h.b16 %v2243
    %v2390 = vunpack.c.l.b16 %v2244
    %v2391 = vunpack.c.h.b16 %v2244
    %v2392 = vunpack.c.l.b16 %v2245
    %v2393 = vunpack.c.h.b16 %v2245
    %v2394 = vunpack.c.l.b16 %v2246
    %v2395 = vunpack.c.h.b16 %v2246
    %v2396 = vunpack.c.l.b16 %v2247
    %v2397 = vunpack.c.h.b16 %v2247
    %v2398 = vpack.c.b16 %v2300, %v2298
    %v2399 = vpack.c.b16 %v2301, %v2299
    %v2400 = vpack.c.b16 %v2304, %v2302
    %v2401 = vpack.c.b16 %v2305, %v2303
    %v2402 = vpack.c.b16 %v2308, %v2306
    %v2403 = vpack.c.b16 %v2309, %v2307
    %v2404 = vpack.c.b16 %v2312, %v2310
    %v2405 = vpack.c.b16 %v2313, %v2311
    %v2406 = vpack.c.b16 %v2316, %v2314
    %v2407 = vpack.c.b16 %v2317, %v2315
    %v2408 = vpack.c.b16 %v2320, %v2318
    %v2409 = vpack.c.b16 %v2321, %v2319
    %v2410 = vpack.c.b16 %v2324, %v2322
    %v2411 = vpack.c.b16 %v2325, %v2323
    %v2412 = vpack.c.b16 %v2328, %v2326
    %v2413 = vpack.c.b16 %v2329, %v2327
    %v2414 = vpack.c.b16 %v2332, %v2330
    %v2415 = vpack.c.b16 %v2333, %v2331
    %v2416 = vpack.c.b16 %v2336, %v2334
    %v2417 = vpack.c.b16 %v2337, %v2335
    %v2418 = vpack.c.b16 %v2340, %v2338
    %v2419 = vpack.c.b16 %v2341, %v2339
    %v2420 = vpack.c.b16 %v2344, %v2342
    %v2421 = vpack.c.b16 %v2345, %v2343
    %v2422 = vpack.c.b16 %v2348, %v2346
    %v2423 = vpack.c.b16 %v2349, %v2347
    %v2424 = vpack.c.b16 %v2352, %v2350
    %v2425 = vpack.c.b16 %v2353, %v2351
    %v2426 = vpack.c.b16 %v2356, %v2354
    %v2427 = vpack.c.b16 %v2357, %v2355
    %v2428 = vpack.c.b16 %v2360, %v2358
    %v2429 = vpack.c.b16 %v2361, %v2359
    %v2430 = vpack.c.b16 %v2364, %v2362
    %v2431 = vpack.c.b16 %v2365, %v2363
    %v2432 = vpack.c.b16 %v2368, %v2366
    %v2433 = vpack.c.b16 %v2369, %v2367
    %v2434 = vpack.c.b16 %v2372, %v2370
    %v2435 = vpack.c.b16 %v2373, %v2371
    %v2436 = vpack.c.b16 %v2376, %v2374
    %v2437 = vpack.c.b16 %v2377, %v2375
    %v2438 = vpack.c.b16 %v2380, %v2378
    %v2439 = vpack.c.b16 %v2381, %v2379
    %v2440 = vpack.c.b16 %v2384, %v2382
    %v2441 = vpack.c.b16 %v2385, %v2383
    %v2442 = vpack.c.b16 %v2388, %v2386
    %v2443 = vpack.c.b16 %v2389, %v2387
    %v2444 = vpack.c.b16 %v2392, %v2390
    %v2445 = vpack.c.b16 %v2393, %v2391
    %v2446 = vpack.c.b16 %v2396, %v2394
    %v2447 = vpack.c.b16 %v2397, %v2395
    %v2499 = vsel %vm75, %v2196, 0
    %2501 = vmatprep.subr.bf16.mxu0 %v2399
    %2502 = vmatpush1.bf16.msra.mxu0 %v2398
    %2503 = vmatprep.subr.bf16.mxu0 %v2401
    %2504 = vmatpush1.bf16.msra.mxu0 %v2400
    %2505 = vmatprep.subr.bf16.mxu0 %v2403
    %2506 = vmatpush1.bf16.msra.mxu0 %v2402
    %2507 = vmatprep.subr.bf16.mxu0 %v2405
    %2508 = vmatpush1.bf16.msra.mxu0 %v2404
    %2509 = vmatprep.subr.bf16.mxu0 %v2407
    %2510 = vmatpush1.bf16.msra.mxu0 %v2406
    %2511 = vmatprep.subr.bf16.mxu0 %v2409
    %2512 = vmatpush1.bf16.msra.mxu0 %v2408
    %2513 = vmatprep.subr.bf16.mxu0 %v2411
    %2514 = vmatpush1.bf16.msra.mxu0 %v2410
    %2515 = vmatprep.subr.bf16.mxu0 %v2413
    %2516 = vmatpush1.bf16.msra.mxu0 %v2412
    %2517 = vmatprep.subr.bf16.mxu0 %v2415
    %2518 = vmatpush1.bf16.msra.mxu0 %v2414
    %2519 = vmatprep.subr.bf16.mxu0 %v2417
    %2520 = vmatpush1.bf16.msra.mxu0 %v2416
    %2521 = vmatprep.subr.bf16.mxu0 %v2419
    %2522 = vmatpush1.bf16.msra.mxu0 %v2418
    %2523 = vmatprep.subr.bf16.mxu0 %v2421
    %2524 = vmatpush1.bf16.msra.mxu0 %v2420
    %2525 = vmatprep.subr.bf16.mxu0 %v2423
    %2526 = vmatpush1.bf16.msra.mxu0 %v2422
    %2527 = vmatprep.subr.bf16.mxu0 %v2425
    %2528 = vmatpush1.bf16.msra.mxu0 %v2424
    %2529 = vmatprep.subr.bf16.mxu0 %v2427
    %2530 = vmatpush1.bf16.msra.mxu0 %v2426
    %2531 = vmatprep.subr.bf16.mxu0 %v2429
    %2532 = vmatpush1.bf16.msra.mxu0 %v2428
    %2533 = vmatprep.mubr.bf16.mxu0 %v2194
    %2534 = vmatmul.mubr.bf16.gmra.mrb[0].mxu0 %v2193
    %v2535 = vpop.f32.mrb[0].mxu0
    %v2536 = vadd.f32 0.0, %v2535
    %v2537 = vpop.f32.mrb[0].mxu0
    %v2538 = vadd.f32 0.0, %v2537
    %v2539 = vpop.f32.mrb[0].mxu0
    %v2540 = vadd.f32 0.0, %v2539
    %v2541 = vpop.f32.mrb[0].mxu0
    %v2542 = vadd.f32 0.0, %v2541
    %2543 = vdwg.mxu0
    %2544 = vmatprep.subr.bf16.mxu0 %v2431
    %2545 = vmatpush1.bf16.msra.mxu0 %v2430
    %2546 = vmatprep.subr.bf16.mxu0 %v2433
    %2547 = vmatpush1.bf16.msra.mxu0 %v2432
    %2548 = vmatprep.subr.bf16.mxu0 %v2435
    %2549 = vmatpush1.bf16.msra.mxu0 %v2434
    %2550 = vmatprep.subr.bf16.mxu0 %v2437
    %2551 = vmatpush1.bf16.msra.mxu0 %v2436
    %2552 = vmatprep.subr.bf16.mxu0 %v2439
    %2553 = vmatpush1.bf16.msra.mxu0 %v2438
    %2554 = vmatprep.subr.bf16.mxu0 %v2441
    %2555 = vmatpush1.bf16.msra.mxu0 %v2440
    %2556 = vmatprep.subr.bf16.mxu0 %v2443
    %2557 = vmatpush1.bf16.msra.mxu0 %v2442
    %2558 = vmatprep.subr.bf16.mxu0 %v2445
    %2559 = vmatpush1.bf16.msra.mxu0 %v2444
    %2560 = vmatprep.subr.bf16.mxu0 %v2447
    %2561 = vmatpush1.bf16.msra.mxu0 %v2446
    %2562 = vmatprep.subr.bf16.mxu0 0
    %2563 = vmatpush1.bf16.msra.mxu0 0
    %2564 = vmatprep.subr.bf16.mxu0 0
    %2565 = vmatpush1.bf16.msra.mxu0 0
    %2566 = vmatprep.subr.bf16.mxu0 0
    %2567 = vmatpush1.bf16.msra.mxu0 0
    %2568 = vmatprep.subr.bf16.mxu0 0
    %2569 = vmatpush1.bf16.msra.mxu0 0
    %2570 = vmatprep.subr.bf16.mxu0 0
    %2571 = vmatpush1.bf16.msra.mxu0 0
    %2572 = vmatprep.subr.bf16.mxu0 0
    %2573 = vmatpush1.bf16.msra.mxu0 0
    %2574 = vmatprep.subr.bf16.mxu0 0
    %2575 = vmatpush1.bf16.msra.mxu0 0
    %2576 = vmatprep.mubr.bf16.mxu0 %v2499
    %2577 = vmatmul.mubr.bf16.gmra.mrb[0].mxu0 %v2195
    %v2578 = vpop.f32.mrb[0].mxu0
    %v2579 = vadd.f32 %v2536, %v2578
    %v2580 = vpop.f32.mrb[0].mxu0
    %v2581 = vadd.f32 %v2538, %v2580
    %v2582 = vpop.f32.mrb[0].mxu0
    %v2583 = vadd.f32 %v2540, %v2582
    %v2584 = vpop.f32.mrb[0].mxu0
    %v2585 = vadd.f32 %v2542, %v2584
    %2586 = vdwg.mxu0
    %v2637 = vunpack.c.l.b16 %v2079
    %v2638 = vunpack.c.h.b16 %v2079
    %v2639 = vunpack.c.l.b16 %v2080
    %v2640 = vunpack.c.h.b16 %v2080
    %v2641 = vunpack.c.l.b16 %v2081
    %v2642 = vunpack.c.h.b16 %v2081
    %v2643 = vunpack.c.l.b16 %v2082
    %v2644 = vunpack.c.h.b16 %v2082
    %v2645 = vunpack.c.l.b16 %v2083
    %v2646 = vunpack.c.h.b16 %v2083
    %v2647 = vunpack.c.l.b16 %v2084
    %v2648 = vunpack.c.h.b16 %v2084
    %v2649 = vunpack.c.l.b16 %v2085
    %v2650 = vunpack.c.h.b16 %v2085
    %v2651 = vunpack.c.l.b16 %v2086
    %v2652 = vunpack.c.h.b16 %v2086
    %v2653 = vunpack.c.l.b16 %v2087
    %v2654 = vunpack.c.h.b16 %v2087
    %v2655 = vunpack.c.l.b16 %v2088
    %v2656 = vunpack.c.h.b16 %v2088
    %v2657 = vunpack.c.l.b16 %v2089
    %v2658 = vunpack.c.h.b16 %v2089
    %v2659 = vunpack.c.l.b16 %v2090
    %v2660 = vunpack.c.h.b16 %v2090
    %v2661 = vunpack.c.l.b16 %v2091
    %v2662 = vunpack.c.h.b16 %v2091
    %v2663 = vunpack.c.l.b16 %v2092
    %v2664 = vunpack.c.h.b16 %v2092
    %v2665 = vunpack.c.l.b16 %v2093
    %v2666 = vunpack.c.h.b16 %v2093
    %v2667 = vunpack.c.l.b16 %v2094
    %v2668 = vunpack.c.h.b16 %v2094
    %v2669 = vunpack.c.l.b16 %v2095
    %v2670 = vunpack.c.h.b16 %v2095
    %v2671 = vunpack.c.l.b16 %v2096
    %v2672 = vunpack.c.h.b16 %v2096
    %v2673 = vunpack.c.l.b16 %v2097
    %v2674 = vunpack.c.h.b16 %v2097
    %v2675 = vunpack.c.l.b16 %v2098
    %v2676 = vunpack.c.h.b16 %v2098
    %v2677 = vunpack.c.l.b16 %v2099
    %v2678 = vunpack.c.h.b16 %v2099
    %v2679 = vunpack.c.l.b16 %v2100
    %v2680 = vunpack.c.h.b16 %v2100
    %v2681 = vunpack.c.l.b16 %v2101
    %v2682 = vunpack.c.h.b16 %v2101
    %v2683 = vunpack.c.l.b16 %v2102
    %v2684 = vunpack.c.h.b16 %v2102
    %v2685 = vunpack.c.l.b16 %v2103
    %v2686 = vunpack.c.h.b16 %v2103
    %v2687 = vunpack.c.l.b16 %v2104
    %v2688 = vunpack.c.h.b16 %v2104
    %v2689 = vunpack.c.l.b16 %v2105
    %v2690 = vunpack.c.h.b16 %v2105
    %v2691 = vunpack.c.l.b16 %v2106
    %v2692 = vunpack.c.h.b16 %v2106
    %v2693 = vunpack.c.l.b16 %v2107
    %v2694 = vunpack.c.h.b16 %v2107
    %v2695 = vunpack.c.l.b16 %v2108
    %v2696 = vunpack.c.h.b16 %v2108
    %v2697 = vunpack.c.l.b16 %v2109
    %v2698 = vunpack.c.h.b16 %v2109
    %v2699 = vunpack.c.l.b16 %v2110
    %v2700 = vunpack.c.h.b16 %v2110
    %v2701 = vunpack.c.l.b16 %v2111
    %v2702 = vunpack.c.h.b16 %v2111
    %v2703 = vunpack.c.l.b16 %v2112
    %v2704 = vunpack.c.h.b16 %v2112
    %v2705 = vunpack.c.l.b16 %v2113
    %v2706 = vunpack.c.h.b16 %v2113
    %v2707 = vunpack.c.l.b16 %v2114
    %v2708 = vunpack.c.h.b16 %v2114
    %v2709 = vunpack.c.l.b16 %v2115
    %v2710 = vunpack.c.h.b16 %v2115
    %v2711 = vunpack.c.l.b16 %v2116
    %v2712 = vunpack.c.h.b16 %v2116
    %v2713 = vunpack.c.l.b16 %v2117
    %v2714 = vunpack.c.h.b16 %v2117
    %v2715 = vunpack.c.l.b16 %v2118
    %v2716 = vunpack.c.h.b16 %v2118
    %v2717 = vunpack.c.l.b16 %v2119
    %v2718 = vunpack.c.h.b16 %v2119
    %v2719 = vunpack.c.l.b16 %v2120
    %v2720 = vunpack.c.h.b16 %v2120
    %v2721 = vunpack.c.l.b16 %v2121
    %v2722 = vunpack.c.h.b16 %v2121
    %v2723 = vunpack.c.l.b16 %v2122
    %v2724 = vunpack.c.h.b16 %v2122
    %v2725 = vunpack.c.l.b16 %v2123
    %v2726 = vunpack.c.h.b16 %v2123
    %v2727 = vunpack.c.l.b16 %v2124
    %v2728 = vunpack.c.h.b16 %v2124
    %v2729 = vunpack.c.l.b16 %v2125
    %v2730 = vunpack.c.h.b16 %v2125
    %v2731 = vunpack.c.l.b16 %v2126
    %v2732 = vunpack.c.h.b16 %v2126
    %v2733 = vunpack.c.l.b16 %v2127
    %v2734 = vunpack.c.h.b16 %v2127
    %v2735 = vunpack.c.l.b16 %v2128
    %v2736 = vunpack.c.h.b16 %v2128
    %v2737 = vpack.c.b16 %v2639, %v2637
    %v2738 = vpack.c.b16 %v2640, %v2638
    %v2739 = vpack.c.b16 %v2643, %v2641
    %v2740 = vpack.c.b16 %v2644, %v2642
    %v2741 = vpack.c.b16 %v2647, %v2645
    %v2742 = vpack.c.b16 %v2648, %v2646
    %v2743 = vpack.c.b16 %v2651, %v2649
    %v2744 = vpack.c.b16 %v2652, %v2650
    %v2745 = vpack.c.b16 %v2655, %v2653
    %v2746 = vpack.c.b16 %v2656, %v2654
    %v2747 = vpack.c.b16 %v2659, %v2657
    %v2748 = vpack.c.b16 %v2660, %v2658
    %v2749 = vpack.c.b16 %v2663, %v2661
    %v2750 = vpack.c.b16 %v2664, %v2662
    %v2751 = vpack.c.b16 %v2667, %v2665
    %v2752 = vpack.c.b16 %v2668, %v2666
    %v2753 = vpack.c.b16 %v2671, %v2669
    %v2754 = vpack.c.b16 %v2672, %v2670
    %v2755 = vpack.c.b16 %v2675, %v2673
    %v2756 = vpack.c.b16 %v2676, %v2674
    %v2757 = vpack.c.b16 %v2679, %v2677
    %v2758 = vpack.c.b16 %v2680, %v2678
    %v2759 = vpack.c.b16 %v2683, %v2681
    %v2760 = vpack.c.b16 %v2684, %v2682
    %v2761 = vpack.c.b16 %v2687, %v2685
    %v2762 = vpack.c.b16 %v2688, %v2686
    %v2763 = vpack.c.b16 %v2691, %v2689
    %v2764 = vpack.c.b16 %v2692, %v2690
    %v2765 = vpack.c.b16 %v2695, %v2693
    %v2766 = vpack.c.b16 %v2696, %v2694
    %v2767 = vpack.c.b16 %v2699, %v2697
    %v2768 = vpack.c.b16 %v2700, %v2698
    %v2769 = vpack.c.b16 %v2703, %v2701
    %v2770 = vpack.c.b16 %v2704, %v2702
    %v2771 = vpack.c.b16 %v2707, %v2705
    %v2772 = vpack.c.b16 %v2708, %v2706
    %v2773 = vpack.c.b16 %v2711, %v2709
    %v2774 = vpack.c.b16 %v2712, %v2710
    %v2775 = vpack.c.b16 %v2715, %v2713
    %v2776 = vpack.c.b16 %v2716, %v2714
    %v2777 = vpack.c.b16 %v2719, %v2717
    %v2778 = vpack.c.b16 %v2720, %v2718
    %v2779 = vpack.c.b16 %v2723, %v2721
    %v2780 = vpack.c.b16 %v2724, %v2722
    %v2781 = vpack.c.b16 %v2727, %v2725
    %v2782 = vpack.c.b16 %v2728, %v2726
    %v2783 = vpack.c.b16 %v2731, %v2729
    %v2784 = vpack.c.b16 %v2732, %v2730
    %v2785 = vpack.c.b16 %v2735, %v2733
    %v2786 = vpack.c.b16 %v2736, %v2734
    %v2838 = vsel %vm75, %v2078, 0
    %2840 = vmatprep.subr.bf16.mxu0 %v2738
    %2841 = vmatpush1.bf16.msra.mxu0 %v2737
    %2842 = vmatprep.subr.bf16.mxu0 %v2740
    %2843 = vmatpush1.bf16.msra.mxu0 %v2739
    %2844 = vmatprep.subr.bf16.mxu0 %v2742
    %2845 = vmatpush1.bf16.msra.mxu0 %v2741
    %2846 = vmatprep.subr.bf16.mxu0 %v2744
    %2847 = vmatpush1.bf16.msra.mxu0 %v2743
    %2848 = vmatprep.subr.bf16.mxu0 %v2746
    %2849 = vmatpush1.bf16.msra.mxu0 %v2745
    %2850 = vmatprep.subr.bf16.mxu0 %v2748
    %2851 = vmatpush1.bf16.msra.mxu0 %v2747
    %2852 = vmatprep.subr.bf16.mxu0 %v2750
    %2853 = vmatpush1.bf16.msra.mxu0 %v2749
    %2854 = vmatprep.subr.bf16.mxu0 %v2752
    %2855 = vmatpush1.bf16.msra.mxu0 %v2751
    %2856 = vmatprep.subr.bf16.mxu0 %v2754
    %2857 = vmatpush1.bf16.msra.mxu0 %v2753
    %2858 = vmatprep.subr.bf16.mxu0 %v2756
    %2859 = vmatpush1.bf16.msra.mxu0 %v2755
    %2860 = vmatprep.subr.bf16.mxu0 %v2758
    %2861 = vmatpush1.bf16.msra.mxu0 %v2757
    %2862 = vmatprep.subr.bf16.mxu0 %v2760
    %2863 = vmatpush1.bf16.msra.mxu0 %v2759
    %2864 = vmatprep.subr.bf16.mxu0 %v2762
    %2865 = vmatpush1.bf16.msra.mxu0 %v2761
    %2866 = vmatprep.subr.bf16.mxu0 %v2764
    %2867 = vmatpush1.bf16.msra.mxu0 %v2763
    %2868 = vmatprep.subr.bf16.mxu0 %v2766
    %2869 = vmatpush1.bf16.msra.mxu0 %v2765
    %2870 = vmatprep.subr.bf16.mxu0 %v2768
    %2871 = vmatpush1.bf16.msra.mxu0 %v2767
    %2872 = vmatprep.mubr.bf16.mxu0 %v2076
    %2873 = vmatmul.mubr.bf16.gmra.mrb[0].mxu0 %v2075
    %v2874 = vpop.f32.mrb[0].mxu0
    %v2875 = vadd.f32 %v2579, %v2874
    %v2876 = vpop.f32.mrb[0].mxu0
    %v2877 = vadd.f32 %v2581, %v2876
    %v2878 = vpop.f32.mrb[0].mxu0
    %v2879 = vadd.f32 %v2583, %v2878
    %v2880 = vpop.f32.mrb[0].mxu0
    %v2881 = vadd.f32 %v2585, %v2880
    %2882 = vdwg.mxu0
    %2883 = vmatprep.subr.bf16.mxu0 %v2770
    %2884 = vmatpush1.bf16.msra.mxu0 %v2769
    %2885 = vmatprep.subr.bf16.mxu0 %v2772
    %2886 = vmatpush1.bf16.msra.mxu0 %v2771
    %2887 = vmatprep.subr.bf16.mxu0 %v2774
    %2888 = vmatpush1.bf16.msra.mxu0 %v2773
    %2889 = vmatprep.subr.bf16.mxu0 %v2776
    %2890 = vmatpush1.bf16.msra.mxu0 %v2775
    %2891 = vmatprep.subr.bf16.mxu0 %v2778
    %2892 = vmatpush1.bf16.msra.mxu0 %v2777
    %2893 = vmatprep.subr.bf16.mxu0 %v2780
    %2894 = vmatpush1.bf16.msra.mxu0 %v2779
    %2895 = vmatprep.subr.bf16.mxu0 %v2782
    %2896 = vmatpush1.bf16.msra.mxu0 %v2781
    %2897 = vmatprep.subr.bf16.mxu0 %v2784
    %2898 = vmatpush1.bf16.msra.mxu0 %v2783
    %2899 = vmatprep.subr.bf16.mxu0 %v2786
    %2900 = vmatpush1.bf16.msra.mxu0 %v2785
    %2901 = vmatprep.subr.bf16.mxu0 0
    %2902 = vmatpush1.bf16.msra.mxu0 0
    %2903 = vmatprep.subr.bf16.mxu0 0
    %2904 = vmatpush1.bf16.msra.mxu0 0
    %2905 = vmatprep.subr.bf16.mxu0 0
    %2906 = vmatpush1.bf16.msra.mxu0 0
    %2907 = vmatprep.subr.bf16.mxu0 0
    %2908 = vmatpush1.bf16.msra.mxu0 0
    %2909 = vmatprep.subr.bf16.mxu0 0
    %2910 = vmatpush1.bf16.msra.mxu0 0
    %2911 = vmatprep.subr.bf16.mxu0 0
    %2912 = vmatpush1.bf16.msra.mxu0 0
    %2913 = vmatprep.subr.bf16.mxu0 0
    %2914 = vmatpush1.bf16.msra.mxu0 0
    %2915 = vmatprep.mubr.bf16.mxu0 %v2838
    %2916 = vmatmul.mubr.bf16.gmra.mrb[0].mxu0 %v2077
    %v2917 = vpop.f32.mrb[0].mxu0
    %v2918 = vadd.f32 %v2875, %v2917
    %v2919 = vpop.f32.mrb[0].mxu0
    %v2920 = vadd.f32 %v2877, %v2919
    %v2921 = vpop.f32.mrb[0].mxu0
    %v2922 = vadd.f32 %v2879, %v2921
    %v2923 = vpop.f32.mrb[0].mxu0
    %v2924 = vadd.f32 %v2881, %v2923
    %2925 = vdwg.mxu0
    %v2926 = vld [vmem:[#allocation2] sm:$0xfc]
    %v2927 = vld [vmem:[#allocation2 + $0x8] sm:$0xfc]
    %v2928 = vld [vmem:[#allocation2 + $0x10] sm:$0xfc]
    %v2929 = vld [vmem:[#allocation2 + $0x18] sm:$0xfc]
    %v2930 = vld [vmem:[#allocation2 + $0x20] sm:$0x3]
    %v2931 = vld [vmem:[#allocation2 + $0x28] sm:$0x3]
    %v2932 = vld [vmem:[#allocation2 + $0x30] sm:$0x3]
    %v2933 = vld [vmem:[#allocation2 + $0x38] sm:$0x3]
    %v2934 = vld [vmem:[#allocation2 + $0x40] sm:$0xfc]
    %v2935 = vld [vmem:[#allocation2 + $0x48] sm:$0xfc]
    %v2936 = vld [vmem:[#allocation2 + $0x50] sm:$0xfc]
    %v2937 = vld [vmem:[#allocation2 + $0x58] sm:$0xfc]
    %v2938 = vld [vmem:[#allocation2 + $0x60] sm:$0x3]
    %v2939 = vld [vmem:[#allocation2 + $0x68] sm:$0x3]
    %v2940 = vld [vmem:[#allocation2 + $0x70] sm:$0x3]
    %v2941 = vld [vmem:[#allocation2 + $0x78] sm:$0x3]
    %v2958 = vrot.slane %v2926, 2
    %v2959 = vrot.slane %v2930, 2
    %v2960 = vsel %vm1099, %v2958, %v2959
    %v2961 = vrot.slane %v2927, 2
    %v2962 = vrot.slane %v2931, 2
    %v2963 = vsel %vm1099, %v2961, %v2962
    %v2964 = vrot.slane %v2928, 2
    %v2965 = vrot.slane %v2932, 2
    %v2966 = vsel %vm1099, %v2964, %v2965
    %v2967 = vrot.slane %v2929, 2
    %v2968 = vrot.slane %v2933, 2
    %v2969 = vsel %vm1099, %v2967, %v2968
    %v2970 = vrot.slane %v2934, 2
    %v2971 = vrot.slane %v2938, 2
    %v2972 = vsel %vm1099, %v2970, %v2971
    %v2973 = vrot.slane %v2935, 2
    %v2974 = vrot.slane %v2939, 2
    %v2975 = vsel %vm1099, %v2973, %v2974
    %v2976 = vrot.slane %v2936, 2
    %v2977 = vrot.slane %v2940, 2
    %v2978 = vsel %vm1099, %v2976, %v2977
    %v2979 = vrot.slane %v2937, 2
    %v2980 = vrot.slane %v2941, 2
    %v2981 = vsel %vm1099, %v2979, %v2980
    %v2990 = vpack.c.bf16 %v2972, %v2960
    %v2991 = vpack.c.bf16 %v2975, %v2963
    %v2992 = vpack.c.bf16 %v2978, %v2966
    %v2993 = vpack.c.bf16 %v2981, %v2969
    %s2994 = scalar_lea.vmem [#allocation6], 800
    %v2995 = vld [vmem:[%s2994] sm:$0xff]
    %v2996 = vld [vmem:[%s2994 + $0x8] sm:$0xff]
    %v2997 = vld [vmem:[%s2994 + $0x10] sm:$0xff]
    %v2998 = vld [vmem:[%s2994 + $0x18] sm:$0xff]
    %v2999 = vld [vmem:[%s2994 + $0x20] sm:$0xff]
    %v3000 = vld [vmem:[%s2994 + $0x28] sm:$0xff]
    %v3001 = vld [vmem:[%s2994 + $0x30] sm:$0xff]
    %v3002 = vld [vmem:[%s2994 + $0x38] sm:$0xff]
    %v3003 = vld [vmem:[%s2994 + $0x40] sm:$0xff]
    %v3004 = vld [vmem:[%s2994 + $0x48] sm:$0xff]
    %v3005 = vld [vmem:[%s2994 + $0x50] sm:$0xff]
    %v3006 = vld [vmem:[%s2994 + $0x58] sm:$0xff]
    %v3007 = vld [vmem:[%s2994 + $0x60] sm:$0xff]
    %v3008 = vld [vmem:[%s2994 + $0x68] sm:$0xff]
    %v3009 = vld [vmem:[%s2994 + $0x70] sm:$0xff]
    %v3010 = vld [vmem:[%s2994 + $0x78] sm:$0xff]
    %v3011 = vld [vmem:[%s2994 + $0x80] sm:$0xff]
    %v3012 = vld [vmem:[%s2994 + $0x88] sm:$0xff]
    %v3013 = vld [vmem:[%s2994 + $0x90] sm:$0xff]
    %v3014 = vld [vmem:[%s2994 + $0x98] sm:$0xff]
    %v3015 = vld [vmem:[%s2994 + $0xa0] sm:$0xff]
    %v3016 = vld [vmem:[%s2994 + $0xa8] sm:$0xff]
    %v3017 = vld [vmem:[%s2994 + $0xb0] sm:$0xff]
    %v3018 = vld [vmem:[%s2994 + $0xb8] sm:$0xff]
    %v3019 = vld [vmem:[%s2994 + $0xc0] sm:$0xff]
    %v3020 = vld [vmem:[%s2994 + $0xc8] sm:$0xff]
    %v3021 = vld [vmem:[%s2994 + $0xd0] sm:$0xff]
    %v3022 = vld [vmem:[%s2994 + $0xd8] sm:$0xff]
    %v3023 = vld [vmem:[%s2994 + $0xe0] sm:$0xff]
    %v3024 = vld [vmem:[%s2994 + $0xe8] sm:$0xff]
    %v3025 = vld [vmem:[%s2994 + $0xf0] sm:$0xff]
    %v3026 = vld [vmem:[%s2994 + $0xf8] sm:$0xff]
    %v3027 = vld [vmem:[%s2994 + $0x100] sm:$0xff]
    %v3028 = vld [vmem:[%s2994 + $0x108] sm:$0xff]
    %v3029 = vld [vmem:[%s2994 + $0x110] sm:$0xff]
    %v3030 = vld [vmem:[%s2994 + $0x118] sm:$0xff]
    %v3031 = vld [vmem:[%s2994 + $0x120] sm:$0xff]
    %v3032 = vld [vmem:[%s2994 + $0x128] sm:$0xff]
    %v3033 = vld [vmem:[%s2994 + $0x130] sm:$0xff]
    %v3034 = vld [vmem:[%s2994 + $0x138] sm:$0xff]
    %v3035 = vld [vmem:[%s2994 + $0x140] sm:$0xff]
    %v3036 = vld [vmem:[%s2994 + $0x148] sm:$0xff]
    %v3037 = vld [vmem:[%s2994 + $0x150] sm:$0xff]
    %v3038 = vld [vmem:[%s2994 + $0x158] sm:$0xff]
    %v3039 = vld [vmem:[%s2994 + $0x160] sm:$0xff]
    %v3040 = vld [vmem:[%s2994 + $0x168] sm:$0xff]
    %v3041 = vld [vmem:[%s2994 + $0x170] sm:$0xff]
    %v3042 = vld [vmem:[%s2994 + $0x178] sm:$0xff]
    %v3043 = vld [vmem:[%s2994 + $0x180] sm:$0xff]
    %v3044 = vld [vmem:[%s2994 + $0x188] sm:$0xff]
    %v3095 = vunpack.c.l.b16 %v2995
    %v3096 = vunpack.c.h.b16 %v2995
    %v3097 = vunpack.c.l.b16 %v2996
    %v3098 = vunpack.c.h.b16 %v2996
    %v3099 = vunpack.c.l.b16 %v2997
    %v3100 = vunpack.c.h.b16 %v2997
    %v3101 = vunpack.c.l.b16 %v2998
    %v3102 = vunpack.c.h.b16 %v2998
    %v3103 = vunpack.c.l.b16 %v2999
    %v3104 = vunpack.c.h.b16 %v2999
    %v3105 = vunpack.c.l.b16 %v3000
    %v3106 = vunpack.c.h.b16 %v3000
    %v3107 = vunpack.c.l.b16 %v3001
    %v3108 = vunpack.c.h.b16 %v3001
    %v3109 = vunpack.c.l.b16 %v3002
    %v3110 = vunpack.c.h.b16 %v3002
    %v3111 = vunpack.c.l.b16 %v3003
    %v3112 = vunpack.c.h.b16 %v3003
    %v3113 = vunpack.c.l.b16 %v3004
    %v3114 = vunpack.c.h.b16 %v3004
    %v3115 = vunpack.c.l.b16 %v3005
    %v3116 = vunpack.c.h.b16 %v3005
    %v3117 = vunpack.c.l.b16 %v3006
    %v3118 = vunpack.c.h.b16 %v3006
    %v3119 = vunpack.c.l.b16 %v3007
    %v3120 = vunpack.c.h.b16 %v3007
    %v3121 = vunpack.c.l.b16 %v3008
    %v3122 = vunpack.c.h.b16 %v3008
    %v3123 = vunpack.c.l.b16 %v3009
    %v3124 = vunpack.c.h.b16 %v3009
    %v3125 = vunpack.c.l.b16 %v3010
    %v3126 = vunpack.c.h.b16 %v3010
    %v3127 = vunpack.c.l.b16 %v3011
    %v3128 = vunpack.c.h.b16 %v3011
    %v3129 = vunpack.c.l.b16 %v3012
    %v3130 = vunpack.c.h.b16 %v3012
    %v3131 = vunpack.c.l.b16 %v3013
    %v3132 = vunpack.c.h.b16 %v3013
    %v3133 = vunpack.c.l.b16 %v3014
    %v3134 = vunpack.c.h.b16 %v3014
    %v3135 = vunpack.c.l.b16 %v3015
    %v3136 = vunpack.c.h.b16 %v3015
    %v3137 = vunpack.c.l.b16 %v3016
    %v3138 = vunpack.c.h.b16 %v3016
    %v3139 = vunpack.c.l.b16 %v3017
    %v3140 = vunpack.c.h.b16 %v3017
    %v3141 = vunpack.c.l.b16 %v3018
    %v3142 = vunpack.c.h.b16 %v3018
    %v3143 = vunpack.c.l.b16 %v3019
    %v3144 = vunpack.c.h.b16 %v3019
    %v3145 = vunpack.c.l.b16 %v3020
    %v3146 = vunpack.c.h.b16 %v3020
    %v3147 = vunpack.c.l.b16 %v3021
    %v3148 = vunpack.c.h.b16 %v3021
    %v3149 = vunpack.c.l.b16 %v3022
    %v3150 = vunpack.c.h.b16 %v3022
    %v3151 = vunpack.c.l.b16 %v3023
    %v3152 = vunpack.c.h.b16 %v3023
    %v3153 = vunpack.c.l.b16 %v3024
    %v3154 = vunpack.c.h.b16 %v3024
    %v3155 = vunpack.c.l.b16 %v3025
    %v3156 = vunpack.c.h.b16 %v3025
    %v3157 = vunpack.c.l.b16 %v3026
    %v3158 = vunpack.c.h.b16 %v3026
    %v3159 = vunpack.c.l.b16 %v3027
    %v3160 = vunpack.c.h.b16 %v3027
    %v3161 = vunpack.c.l.b16 %v3028
    %v3162 = vunpack.c.h.b16 %v3028
    %v3163 = vunpack.c.l.b16 %v3029
    %v3164 = vunpack.c.h.b16 %v3029
    %v3165 = vunpack.c.l.b16 %v3030
    %v3166 = vunpack.c.h.b16 %v3030
    %v3167 = vunpack.c.l.b16 %v3031
    %v3168 = vunpack.c.h.b16 %v3031
    %v3169 = vunpack.c.l.b16 %v3032
    %v3170 = vunpack.c.h.b16 %v3032
    %v3171 = vunpack.c.l.b16 %v3033
    %v3172 = vunpack.c.h.b16 %v3033
    %v3173 = vunpack.c.l.b16 %v3034
    %v3174 = vunpack.c.h.b16 %v3034
    %v3175 = vunpack.c.l.b16 %v3035
    %v3176 = vunpack.c.h.b16 %v3035
    %v3177 = vunpack.c.l.b16 %v3036
    %v3178 = vunpack.c.h.b16 %v3036
    %v3179 = vunpack.c.l.b16 %v3037
    %v3180 = vunpack.c.h.b16 %v3037
    %v3181 = vunpack.c.l.b16 %v3038
    %v3182 = vunpack.c.h.b16 %v3038
    %v3183 = vunpack.c.l.b16 %v3039
    %v3184 = vunpack.c.h.b16 %v3039
    %v3185 = vunpack.c.l.b16 %v3040
    %v3186 = vunpack.c.h.b16 %v3040
    %v3187 = vunpack.c.l.b16 %v3041
    %v3188 = vunpack.c.h.b16 %v3041
    %v3189 = vunpack.c.l.b16 %v3042
    %v3190 = vunpack.c.h.b16 %v3042
    %v3191 = vunpack.c.l.b16 %v3043
    %v3192 = vunpack.c.h.b16 %v3043
    %v3193 = vunpack.c.l.b16 %v3044
    %v3194 = vunpack.c.h.b16 %v3044
    %v3195 = vpack.c.b16 %v3097, %v3095
    %v3196 = vpack.c.b16 %v3098, %v3096
    %v3197 = vpack.c.b16 %v3101, %v3099
    %v3198 = vpack.c.b16 %v3102, %v3100
    %v3199 = vpack.c.b16 %v3105, %v3103
    %v3200 = vpack.c.b16 %v3106, %v3104
    %v3201 = vpack.c.b16 %v3109, %v3107
    %v3202 = vpack.c.b16 %v3110, %v3108
    %v3203 = vpack.c.b16 %v3113, %v3111
    %v3204 = vpack.c.b16 %v3114, %v3112
    %v3205 = vpack.c.b16 %v3117, %v3115
    %v3206 = vpack.c.b16 %v3118, %v3116
    %v3207 = vpack.c.b16 %v3121, %v3119
    %v3208 = vpack.c.b16 %v3122, %v3120
    %v3209 = vpack.c.b16 %v3125, %v3123
    %v3210 = vpack.c.b16 %v3126, %v3124
    %v3211 = vpack.c.b16 %v3129, %v3127
    %v3212 = vpack.c.b16 %v3130, %v3128
    %v3213 = vpack.c.b16 %v3133, %v3131
    %v3214 = vpack.c.b16 %v3134, %v3132
    %v3215 = vpack.c.b16 %v3137, %v3135
    %v3216 = vpack.c.b16 %v3138, %v3136
    %v3217 = vpack.c.b16 %v3141, %v3139
    %v3218 = vpack.c.b16 %v3142, %v3140
    %v3219 = vpack.c.b16 %v3145, %v3143
    %v3220 = vpack.c.b16 %v3146, %v3144
    %v3221 = vpack.c.b16 %v3149, %v3147
    %v3222 = vpack.c.b16 %v3150, %v3148
    %v3223 = vpack.c.b16 %v3153, %v3151
    %v3224 = vpack.c.b16 %v3154, %v3152
    %v3225 = vpack.c.b16 %v3157, %v3155
    %v3226 = vpack.c.b16 %v3158, %v3156
    %v3227 = vpack.c.b16 %v3161, %v3159
    %v3228 = vpack.c.b16 %v3162, %v3160
    %v3229 = vpack.c.b16 %v3165, %v3163
    %v3230 = vpack.c.b16 %v3166, %v3164
    %v3231 = vpack.c.b16 %v3169, %v3167
    %v3232 = vpack.c.b16 %v3170, %v3168
    %v3233 = vpack.c.b16 %v3173, %v3171
    %v3234 = vpack.c.b16 %v3174, %v3172
    %v3235 = vpack.c.b16 %v3177, %v3175
    %v3236 = vpack.c.b16 %v3178, %v3176
    %v3237 = vpack.c.b16 %v3181, %v3179
    %v3238 = vpack.c.b16 %v3182, %v3180
    %v3239 = vpack.c.b16 %v3185, %v3183
    %v3240 = vpack.c.b16 %v3186, %v3184
    %v3241 = vpack.c.b16 %v3189, %v3187
    %v3242 = vpack.c.b16 %v3190, %v3188
    %v3243 = vpack.c.b16 %v3193, %v3191
    %v3244 = vpack.c.b16 %v3194, %v3192
    %v3296 = vsel %vm75, %v2993, 0
    %3298 = vmatprep.subr.bf16.mxu0 %v3196
    %3299 = vmatpush1.bf16.msra.mxu0 %v3195
    %3300 = vmatprep.subr.bf16.mxu0 %v3198
    %3301 = vmatpush1.bf16.msra.mxu0 %v3197
    %3302 = vmatprep.subr.bf16.mxu0 %v3200
    %3303 = vmatpush1.bf16.msra.mxu0 %v3199
    %3304 = vmatprep.subr.bf16.mxu0 %v3202
    %3305 = vmatpush1.bf16.msra.mxu0 %v3201
    %3306 = vmatprep.subr.bf16.mxu0 %v3204
    %3307 = vmatpush1.bf16.msra.mxu0 %v3203
    %3308 = vmatprep.subr.bf16.mxu0 %v3206
    %3309 = vmatpush1.bf16.msra.mxu0 %v3205
    %3310 = vmatprep.subr.bf16.mxu0 %v3208
    %3311 = vmatpush1.bf16.msra.mxu0 %v3207
    %3312 = vmatprep.subr.bf16.mxu0 %v3210
    %3313 = vmatpush1.bf16.msra.mxu0 %v3209
    %3314 = vmatprep.subr.bf16.mxu0 %v3212
    %3315 = vmatpush1.bf16.msra.mxu0 %v3211
    %3316 = vmatprep.subr.bf16.mxu0 %v3214
    %3317 = vmatpush1.bf16.msra.mxu0 %v3213
    %3318 = vmatprep.subr.bf16.mxu0 %v3216
    %3319 = vmatpush1.bf16.msra.mxu0 %v3215
    %3320 = vmatprep.subr.bf16.mxu0 %v3218
    %3321 = vmatpush1.bf16.msra.mxu0 %v3217
    %3322 = vmatprep.subr.bf16.mxu0 %v3220
    %3323 = vmatpush1.bf16.msra.mxu0 %v3219
    %3324 = vmatprep.subr.bf16.mxu0 %v3222
    %3325 = vmatpush1.bf16.msra.mxu0 %v3221
    %3326 = vmatprep.subr.bf16.mxu0 %v3224
    %3327 = vmatpush1.bf16.msra.mxu0 %v3223
    %3328 = vmatprep.subr.bf16.mxu0 %v3226
    %3329 = vmatpush1.bf16.msra.mxu0 %v3225
    %3330 = vmatprep.mubr.bf16.mxu0 %v2991
    %3331 = vmatmul.mubr.bf16.gmra.mrb[0].mxu0 %v2990
    %v3332 = vpop.f32.mrb[0].mxu0
    %v3333 = vadd.f32 0.0, %v3332
    %v3334 = vpop.f32.mrb[0].mxu0
    %v3335 = vadd.f32 0.0, %v3334
    %v3336 = vpop.f32.mrb[0].mxu0
    %v3337 = vadd.f32 0.0, %v3336
    %v3338 = vpop.f32.mrb[0].mxu0
    %v3339 = vadd.f32 0.0, %v3338
    %3340 = vdwg.mxu0
    %3341 = vmatprep.subr.bf16.mxu0 %v3228
    %3342 = vmatpush1.bf16.msra.mxu0 %v3227
    %3343 = vmatprep.subr.bf16.mxu0 %v3230
    %3344 = vmatpush1.bf16.msra.mxu0 %v3229
    %3345 = vmatprep.subr.bf16.mxu0 %v3232
    %3346 = vmatpush1.bf16.msra.mxu0 %v3231
    %3347 = vmatprep.subr.bf16.mxu0 %v3234
    %3348 = vmatpush1.bf16.msra.mxu0 %v3233
    %3349 = vmatprep.subr.bf16.mxu0 %v3236
    %3350 = vmatpush1.bf16.msra.mxu0 %v3235
    %3351 = vmatprep.subr.bf16.mxu0 %v3238
    %3352 = vmatpush1.bf16.msra.mxu0 %v3237
    %3353 = vmatprep.subr.bf16.mxu0 %v3240
    %3354 = vmatpush1.bf16.msra.mxu0 %v3239
    %3355 = vmatprep.subr.bf16.mxu0 %v3242
    %3356 = vmatpush1.bf16.msra.mxu0 %v3241
    %3357 = vmatprep.subr.bf16.mxu0 %v3244
    %3358 = vmatpush1.bf16.msra.mxu0 %v3243
    %3359 = vmatprep.subr.bf16.mxu0 0
    %3360 = vmatpush1.bf16.msra.mxu0 0
    %3361 = vmatprep.subr.bf16.mxu0 0
    %3362 = vmatpush1.bf16.msra.mxu0 0
    %3363 = vmatprep.subr.bf16.mxu0 0
    %3364 = vmatpush1.bf16.msra.mxu0 0
    %3365 = vmatprep.subr.bf16.mxu0 0
    %3366 = vmatpush1.bf16.msra.mxu0 0
    %3367 = vmatprep.subr.bf16.mxu0 0
    %3368 = vmatpush1.bf16.msra.mxu0 0
    %3369 = vmatprep.subr.bf16.mxu0 0
    %3370 = vmatpush1.bf16.msra.mxu0 0
    %3371 = vmatprep.subr.bf16.mxu0 0
    %3372 = vmatpush1.bf16.msra.mxu0 0
    %3373 = vmatprep.mubr.bf16.mxu0 %v3296
    %3374 = vmatmul.mubr.bf16.gmra.mrb[0].mxu0 %v2992
    %v3375 = vpop.f32.mrb[0].mxu0
    %v3376 = vadd.f32 %v3333, %v3375
    %v3377 = vpop.f32.mrb[0].mxu0
    %v3378 = vadd.f32 %v3335, %v3377
    %v3379 = vpop.f32.mrb[0].mxu0
    %v3380 = vadd.f32 %v3337, %v3379
    %v3381 = vpop.f32.mrb[0].mxu0
    %v3382 = vadd.f32 %v3339, %v3381
    %3383 = vdwg.mxu0
    %v3384 = vadd.f32 %v2918, %v3376
    %v3385 = vadd.f32 %v2920, %v3378
    %v3386 = vadd.f32 %v2922, %v3380
    %v3387 = vadd.f32 %v2924, %v3382
    %v3389 = vlaneseq
    %v3390 = vshrl.u32 %v3389, 7
    %v3391 = vsub.s32 0, %v3390
    %v3392 = vrot.slane %v2066, %v3391
    %v3393 = vlaneseq
    %v3394 = vshrl.u32 %v3393, 7
    %v3395 = vsub.s32 1, %v3394
    %v3396 = vrot.slane %v2066, %v3395
    %v3399 = vadd.f32 %v3384, %v3392
    %v3400 = vadd.f32 %v3385, %v3396
    %v3401 = vadd.f32 %v3386, %v3392
    %v3402 = vadd.f32 %v3387, %v3396
    %v3403 = vld [vmem:[%s7] sm:$0x3]
    %v3404 = vld [vmem:[%s8] sm:$0x3]
    %v3405 = vadd.f32 %v3399, %v3401
    %v3406 = vrot.slane %v3405, 4
    %v3407 = vadd.f32 %v3405, %v3406
    %v3408 = vrot.slane %v3407, 2
    %v3409 = vadd.f32 %v3407, %v3408
    %v3410 = vrot.slane %v3409, 1
    %v3411 = vadd.f32 %v3409, %v3410
    %v3412 = vadd.f32 %v3400, %v3402
    %v3413 = vrot.slane %v3412, 4
    %v3414 = vadd.f32 %v3412, %v3413
    %v3415 = vrot.slane %v3414, 2
    %v3416 = vadd.f32 %v3414, %v3415
    %v3417 = vrot.slane %v3416, 1
    %v3418 = vadd.f32 %v3416, %v3417
    %v3419 = vmul.f32 %v3399, %v3399
    %v3420 = vmul.f32 %v3400, %v3400
    %v3421 = vmul.f32 %v3401, %v3401
    %v3422 = vmul.f32 %v3402, %v3402
    %v3423 = vadd.f32 %v3419, %v3421
    %v3424 = vrot.slane %v3423, 4
    %v3425 = vadd.f32 %v3423, %v3424
    %v3426 = vrot.slane %v3425, 2
    %v3427 = vadd.f32 %v3425, %v3426
    %v3428 = vrot.slane %v3427, 1
    %v3429 = vadd.f32 %v3427, %v3428
    %v3430 = vadd.f32 %v3420, %v3422
    %v3431 = vrot.slane %v3430, 4
    %v3432 = vadd.f32 %v3430, %v3431
    %v3433 = vrot.slane %v3432, 2
    %v3434 = vadd.f32 %v3432, %v3433
    %v3435 = vrot.slane %v3434, 1
    %v3436 = vadd.f32 %v3434, %v3435
    %v3437 = vld [vmem:[%s10] sm:$0xff]
    %v3438 = vld [vmem:[%s10 + $0x8] sm:$0xff]
    %v3439 = vld [vmem:[%s10 + $0x10] sm:$0xff]
    %v3440 = vld [vmem:[%s10 + $0x18] sm:$0xff]
    %v3441 = vld [vmem:[%s10 + $0x20] sm:$0xff]
    %v3442 = vld [vmem:[%s10 + $0x28] sm:$0xff]
    %v3443 = vld [vmem:[%s10 + $0x30] sm:$0xff]
    %v3444 = vld [vmem:[%s10 + $0x38] sm:$0xff]
    %v3445 = vld [vmem:[%s10 + $0x40] sm:$0xff]
    %v3446 = vld [vmem:[%s10 + $0x48] sm:$0xff]
    %v3447 = vld [vmem:[%s10 + $0x50] sm:$0xff]
    %v3448 = vld [vmem:[%s10 + $0x58] sm:$0xff]
    %v3449 = vld [vmem:[%s10 + $0x60] sm:$0xff]
    %v3450 = vld [vmem:[%s10 + $0x68] sm:$0xff]
    %v3451 = vld [vmem:[%s10 + $0x70] sm:$0xff]
    %v3452 = vld [vmem:[%s10 + $0x78] sm:$0xff]
    %v3453 = vld [vmem:[%s10 + $0x80] sm:$0xff]
    %v3454 = vld [vmem:[%s10 + $0x88] sm:$0xff]
    %v3455 = vld [vmem:[%s10 + $0x90] sm:$0xff]
    %v3456 = vld [vmem:[%s10 + $0x98] sm:$0xff]
    %v3457 = vld [vmem:[%s10 + $0xa0] sm:$0xff]
    %v3458 = vld [vmem:[%s10 + $0xa8] sm:$0xff]
    %v3459 = vld [vmem:[%s10 + $0xb0] sm:$0xff]
    %v3460 = vld [vmem:[%s10 + $0xb8] sm:$0xff]
    %v3461 = vld [vmem:[%s10 + $0xc0] sm:$0xff]
    %v3462 = vld [vmem:[%s10 + $0xc8] sm:$0xff]
    %v3463 = vld [vmem:[%s10 + $0xd0] sm:$0xff]
    %v3464 = vld [vmem:[%s10 + $0xd8] sm:$0xff]
    %v3465 = vld [vmem:[%s10 + $0xe0] sm:$0xff]
    %v3466 = vld [vmem:[%s10 + $0xe8] sm:$0xff]
    %v3467 = vld [vmem:[%s10 + $0xf0] sm:$0xff]
    %v3468 = vld [vmem:[%s10 + $0xf8] sm:$0xff]
    %3469 = vmatprep.subr.mxu0 0.0
    %3470 = vmatpush1.msra.mxu0 %v3437
    %3471 = vmatprep.subr.mxu0 0.0
    %3472 = vmatpush1.msra.mxu0 %v3438
    %3473 = vmatprep.subr.mxu0 0.0
    %3474 = vmatpush1.msra.mxu0 %v3439
    %3475 = vmatprep.subr.mxu0 0.0
    %3476 = vmatpush1.msra.mxu0 %v3440
    %3477 = vmatprep.subr.mxu0 0.0
    %3478 = vmatpush1.msra.mxu0 %v3441
    %3479 = vmatprep.subr.mxu0 0.0
    %3480 = vmatpush1.msra.mxu0 %v3442
    %3481 = vmatprep.subr.mxu0 0.0
    %3482 = vmatpush1.msra.mxu0 %v3443
    %3483 = vmatprep.subr.mxu0 0.0
    %3484 = vmatpush1.msra.mxu0 %v3444
    %3485 = vmatprep.subr.mxu0 0.0
    %3486 = vmatpush1.msra.mxu0 %v3445
    %3487 = vmatprep.subr.mxu0 0.0
    %3488 = vmatpush1.msra.mxu0 %v3446
    %3489 = vmatprep.subr.mxu0 0.0
    %3490 = vmatpush1.msra.mxu0 %v3447
    %3491 = vmatprep.subr.mxu0 0.0
    %3492 = vmatpush1.msra.mxu0 %v3448
    %3493 = vmatprep.subr.mxu0 0.0
    %3494 = vmatpush1.msra.mxu0 %v3449
    %3495 = vmatprep.subr.mxu0 0.0
    %3496 = vmatpush1.msra.mxu0 %v3450
    %3497 = vmatprep.subr.mxu0 0.0
    %3498 = vmatpush1.msra.mxu0 %v3451
    %3499 = vmatprep.subr.mxu0 0.0
    %3500 = vmatpush1.msra.mxu0 %v3452
    %3501 = vmatprep.subr.mxu0 0.0
    %3502 = vmatpush1.msra.mxu0 %v3453
    %3503 = vmatprep.subr.mxu0 0.0
    %3504 = vmatpush1.msra.mxu0 %v3454
    %3505 = vmatprep.subr.mxu0 0.0
    %3506 = vmatpush1.msra.mxu0 %v3455
    %3507 = vmatprep.subr.mxu0 0.0
    %3508 = vmatpush1.msra.mxu0 %v3456
    %3509 = vmatprep.subr.mxu0 0.0
    %3510 = vmatpush1.msra.mxu0 %v3457
    %3511 = vmatprep.subr.mxu0 0.0
    %3512 = vmatpush1.msra.mxu0 %v3458
    %3513 = vmatprep.subr.mxu0 0.0
    %3514 = vmatpush1.msra.mxu0 %v3459
    %3515 = vmatprep.subr.mxu0 0.0
    %3516 = vmatpush1.msra.mxu0 %v3460
    %3517 = vmatprep.subr.mxu0 0.0
    %3518 = vmatpush1.msra.mxu0 %v3461
    %3519 = vmatprep.subr.mxu0 0.0
    %3520 = vmatpush1.msra.mxu0 %v3462
    %3521 = vmatprep.subr.mxu0 0.0
    %3522 = vmatpush1.msra.mxu0 %v3463
    %3523 = vmatprep.subr.mxu0 0.0
    %3524 = vmatpush1.msra.mxu0 %v3464
    %3525 = vmatprep.subr.mxu0 0.0
    %3526 = vmatpush1.msra.mxu0 %v3465
    %3527 = vmatprep.subr.mxu0 0.0
    %3528 = vmatpush1.msra.mxu0 %v3466
    %3529 = vmatprep.subr.mxu0 0.0
    %3530 = vmatpush1.msra.mxu0 %v3467
    %3531 = vmatprep.subr.mxu0 0.0
    %3532 = vmatpush1.msra.mxu0 %v3468
    %3533 = vmatprep.mubr.f32.mxu0 %v3418
    %3534 = vmatmul.mubr.f32.gmra.mrb[0].mxu0 %v3411
    %v3535 = vpop.f32.mrb[0].mxu0
    %v3536 = vadd.f32 0.0, %v3535
    %v3537 = vpop.f32.mrb[0].mxu0
    %3538 = vdwg.mxu0
    %3539 = vmatprep.subr.mxu0 0.0
    %3540 = vmatpush1.msra.mxu0 %v3437
    %3541 = vmatprep.subr.mxu0 0.0
    %3542 = vmatpush1.msra.mxu0 %v3438
    %3543 = vmatprep.subr.mxu0 0.0
    %3544 = vmatpush1.msra.mxu0 %v3439
    %3545 = vmatprep.subr.mxu0 0.0
    %3546 = vmatpush1.msra.mxu0 %v3440
    %3547 = vmatprep.subr.mxu0 0.0
    %3548 = vmatpush1.msra.mxu0 %v3441
    %3549 = vmatprep.subr.mxu0 0.0
    %3550 = vmatpush1.msra.mxu0 %v3442
    %3551 = vmatprep.subr.mxu0 0.0
    %3552 = vmatpush1.msra.mxu0 %v3443
    %3553 = vmatprep.subr.mxu0 0.0
    %3554 = vmatpush1.msra.mxu0 %v3444
    %3555 = vmatprep.subr.mxu0 0.0
    %3556 = vmatpush1.msra.mxu0 %v3445
    %3557 = vmatprep.subr.mxu0 0.0
    %3558 = vmatpush1.msra.mxu0 %v3446
    %3559 = vmatprep.subr.mxu0 0.0
    %3560 = vmatpush1.msra.mxu0 %v3447
    %3561 = vmatprep.subr.mxu0 0.0
    %3562 = vmatpush1.msra.mxu0 %v3448
    %3563 = vmatprep.subr.mxu0 0.0
    %3564 = vmatpush1.msra.mxu0 %v3449
    %3565 = vmatprep.subr.mxu0 0.0
    %3566 = vmatpush1.msra.mxu0 %v3450
    %3567 = vmatprep.subr.mxu0 0.0
    %3568 = vmatpush1.msra.mxu0 %v3451
    %3569 = vmatprep.subr.mxu0 0.0
    %3570 = vmatpush1.msra.mxu0 %v3452
    %3571 = vmatprep.subr.mxu0 0.0
    %3572 = vmatpush1.msra.mxu0 %v3453
    %3573 = vmatprep.subr.mxu0 0.0
    %3574 = vmatpush1.msra.mxu0 %v3454
    %3575 = vmatprep.subr.mxu0 0.0
    %3576 = vmatpush1.msra.mxu0 %v3455
    %3577 = vmatprep.subr.mxu0 0.0
    %3578 = vmatpush1.msra.mxu0 %v3456
    %3579 = vmatprep.subr.mxu0 0.0
    %3580 = vmatpush1.msra.mxu0 %v3457
    %3581 = vmatprep.subr.mxu0 0.0
    %3582 = vmatpush1.msra.mxu0 %v3458
    %3583 = vmatprep.subr.mxu0 0.0
    %3584 = vmatpush1.msra.mxu0 %v3459
    %3585 = vmatprep.subr.mxu0 0.0
    %3586 = vmatpush1.msra.mxu0 %v3460
    %3587 = vmatprep.subr.mxu0 0.0
    %3588 = vmatpush1.msra.mxu0 %v3461
    %3589 = vmatprep.subr.mxu0 0.0
    %3590 = vmatpush1.msra.mxu0 %v3462
    %3591 = vmatprep.subr.mxu0 0.0
    %3592 = vmatpush1.msra.mxu0 %v3463
    %3593 = vmatprep.subr.mxu0 0.0
    %3594 = vmatpush1.msra.mxu0 %v3464
    %3595 = vmatprep.subr.mxu0 0.0
    %3596 = vmatpush1.msra.mxu0 %v3465
    %3597 = vmatprep.subr.mxu0 0.0
    %3598 = vmatpush1.msra.mxu0 %v3466
    %3599 = vmatprep.subr.mxu0 0.0
    %3600 = vmatpush1.msra.mxu0 %v3467
    %3601 = vmatprep.subr.mxu0 0.0
    %3602 = vmatpush1.msra.mxu0 %v3468
    %3603 = vmatprep.mubr.f32.mxu0 %v3436
    %3604 = vmatmul.mubr.f32.gmra.mrb[0].mxu0 %v3429
    %v3605 = vpop.f32.mrb[0].mxu0
    %v3606 = vadd.f32 0.0, %v3605
    %v3607 = vpop.f32.mrb[0].mxu0
    %3608 = vdwg.mxu0
    %v3609 = vmul.f32 %v3536, 0.0009765625
    %v3610 = vmul.f32 %v3606, 0.0009765625
    %v3611 = vmul.f32 %v3609, %v3609
    %v3612 = vsub.f32 %v3610, %v3611
    %v3613 = vadd.f32 %v3612, 1e-05
    %v3614 = vrsqrt.pop %v3613
    %v3615 = vld [vmem:[%s9] sm:$0xff]
    %v3617 = vcombine.high %v3615, %v3615
    %v3619 = vsel %vm1760, %v3609, 0
    %v3621 = vsel %vm1764, %v3615, 0
    %v3623 = vsel %vm1764, %v3617, 0
    %3625 = vmatprep.subr.mxu0 %v3623
    %3626 = vmatpush1.msra.mxu0 %v3621
    %3627 = vmatprep.subr.mxu0 0.0
    %3628 = vmatpush1.msra.mxu0 0.0
    %3629 = vmatprep.subr.mxu0 0.0
    %3630 = vmatpush1.msra.mxu0 0.0
    %3631 = vmatprep.subr.mxu0 0.0
    %3632 = vmatpush1.msra.mxu0 0.0
    %3633 = vmatprep.subr.mxu0 0.0
    %3634 = vmatpush1.msra.mxu0 0.0
    %3635 = vmatprep.subr.mxu0 0.0
    %3636 = vmatpush1.msra.mxu0 0.0
    %3637 = vmatprep.subr.mxu0 0.0
    %3638 = vmatpush1.msra.mxu0 0.0
    %3639 = vmatprep.subr.mxu0 0.0
    %3640 = vmatpush1.msra.mxu0 0.0
    %3641 = vmatprep.subr.mxu0 0.0
    %3642 = vmatpush1.msra.mxu0 0.0
    %3643 = vmatprep.subr.mxu0 0.0
    %3644 = vmatpush1.msra.mxu0 0.0
    %3645 = vmatprep.subr.mxu0 0.0
    %3646 = vmatpush1.msra.mxu0 0.0
    %3647 = vmatprep.subr.mxu0 0.0
    %3648 = vmatpush1.msra.mxu0 0.0
    %3649 = vmatprep.subr.mxu0 0.0
    %3650 = vmatpush1.msra.mxu0 0.0
    %3651 = vmatprep.subr.mxu0 0.0
    %3652 = vmatpush1.msra.mxu0 0.0
    %3653 = vmatprep.subr.mxu0 0.0
    %3654 = vmatpush1.msra.mxu0 0.0
    %3655 = vmatprep.subr.mxu0 0.0
    %3656 = vmatpush1.msra.mxu0 0.0
    %3657 = vmatprep.subr.mxu0 0.0
    %3658 = vmatpush1.msra.mxu0 0.0
    %3659 = vmatprep.subr.mxu0 0.0
    %3660 = vmatpush1.msra.mxu0 0.0
    %3661 = vmatprep.subr.mxu0 0.0
    %3662 = vmatpush1.msra.mxu0 0.0
    %3663 = vmatprep.subr.mxu0 0.0
    %3664 = vmatpush1.msra.mxu0 0.0
    %3665 = vmatprep.subr.mxu0 0.0
    %3666 = vmatpush1.msra.mxu0 0.0
    %3667 = vmatprep.subr.mxu0 0.0
    %3668 = vmatpush1.msra.mxu0 0.0
    %3669 = vmatprep.subr.mxu0 0.0
    %3670 = vmatpush1.msra.mxu0 0.0
    %3671 = vmatprep.subr.mxu0 0.0
    %3672 = vmatpush1.msra.mxu0 0.0
    %3673 = vmatprep.subr.mxu0 0.0
    %3674 = vmatpush1.msra.mxu0 0.0
    %3675 = vmatprep.subr.mxu0 0.0
    %3676 = vmatpush1.msra.mxu0 0.0
    %3677 = vmatprep.subr.mxu0 0.0
    %3678 = vmatpush1.msra.mxu0 0.0
    %3679 = vmatprep.subr.mxu0 0.0
    %3680 = vmatpush1.msra.mxu0 0.0
    %3681 = vmatprep.subr.mxu0 0.0
    %3682 = vmatpush1.msra.mxu0 0.0
    %3683 = vmatprep.subr.mxu0 0.0
    %3684 = vmatpush1.msra.mxu0 0.0
    %3685 = vmatprep.subr.mxu0 0.0
    %3686 = vmatpush1.msra.mxu0 0.0
    %3687 = vmatprep.subr.mxu0 0.0
    %3688 = vmatpush1.msra.mxu0 0.0
    %3689 = vmatprep.mubr.f32.mxu0 0.0
    %3690 = vmatmul.mubr.f32.gmra.mrb[0].mxu0 %v3619
    %v3691 = vpop.f32.mrb[0].mxu0
    %v3692 = vadd.f32 0.0, %v3691
    %v3693 = vpop.f32.mrb[0].mxu0
    %v3694 = vadd.f32 0.0, %v3693
    %3695 = vdwg.mxu0
    %v3697 = vsel %vm1760, %v3614, 0
    %3699 = vmatprep.subr.mxu0 %v3623
    %3700 = vmatpush1.msra.mxu0 %v3621
    %3701 = vmatprep.subr.mxu0 0.0
    %3702 = vmatpush1.msra.mxu0 0.0
    %3703 = vmatprep.subr.mxu0 0.0
    %3704 = vmatpush1.msra.mxu0 0.0
    %3705 = vmatprep.subr.mxu0 0.0
    %3706 = vmatpush1.msra.mxu0 0.0
    %3707 = vmatprep.subr.mxu0 0.0
    %3708 = vmatpush1.msra.mxu0 0.0
    %3709 = vmatprep.subr.mxu0 0.0
    %3710 = vmatpush1.msra.mxu0 0.0
    %3711 = vmatprep.subr.mxu0 0.0
    %3712 = vmatpush1.msra.mxu0 0.0
    %3713 = vmatprep.subr.mxu0 0.0
    %3714 = vmatpush1.msra.mxu0 0.0
    %3715 = vmatprep.subr.mxu0 0.0
    %3716 = vmatpush1.msra.mxu0 0.0
    %3717 = vmatprep.subr.mxu0 0.0
    %3718 = vmatpush1.msra.mxu0 0.0
    %3719 = vmatprep.subr.mxu0 0.0
    %3720 = vmatpush1.msra.mxu0 0.0
    %3721 = vmatprep.subr.mxu0 0.0
    %3722 = vmatpush1.msra.mxu0 0.0
    %3723 = vmatprep.subr.mxu0 0.0
    %3724 = vmatpush1.msra.mxu0 0.0
    %3725 = vmatprep.subr.mxu0 0.0
    %3726 = vmatpush1.msra.mxu0 0.0
    %3727 = vmatprep.subr.mxu0 0.0
    %3728 = vmatpush1.msra.mxu0 0.0
    %3729 = vmatprep.subr.mxu0 0.0
    %3730 = vmatpush1.msra.mxu0 0.0
    %3731 = vmatprep.subr.mxu0 0.0
    %3732 = vmatpush1.msra.mxu0 0.0
    %3733 = vmatprep.subr.mxu0 0.0
    %3734 = vmatpush1.msra.mxu0 0.0
    %3735 = vmatprep.subr.mxu0 0.0
    %3736 = vmatpush1.msra.mxu0 0.0
    %3737 = vmatprep.subr.mxu0 0.0
    %3738 = vmatpush1.msra.mxu0 0.0
    %3739 = vmatprep.subr.mxu0 0.0
    %3740 = vmatpush1.msra.mxu0 0.0
    %3741 = vmatprep.subr.mxu0 0.0
    %3742 = vmatpush1.msra.mxu0 0.0
    %3743 = vmatprep.subr.mxu0 0.0
    %3744 = vmatpush1.msra.mxu0 0.0
    %3745 = vmatprep.subr.mxu0 0.0
    %3746 = vmatpush1.msra.mxu0 0.0
    %3747 = vmatprep.subr.mxu0 0.0
    %3748 = vmatpush1.msra.mxu0 0.0
    %3749 = vmatprep.subr.mxu0 0.0
    %3750 = vmatpush1.msra.mxu0 0.0
    %3751 = vmatprep.subr.mxu0 0.0
    %3752 = vmatpush1.msra.mxu0 0.0
    %3753 = vmatprep.subr.mxu0 0.0
    %3754 = vmatpush1.msra.mxu0 0.0
    %3755 = vmatprep.subr.mxu0 0.0
    %3756 = vmatpush1.msra.mxu0 0.0
    %3757 = vmatprep.subr.mxu0 0.0
    %3758 = vmatpush1.msra.mxu0 0.0
    %3759 = vmatprep.subr.mxu0 0.0
    %3760 = vmatpush1.msra.mxu0 0.0
    %3761 = vmatprep.subr.mxu0 0.0
    %3762 = vmatpush1.msra.mxu0 0.0
    %3763 = vmatprep.mubr.f32.mxu0 0.0
    %3764 = vmatmul.mubr.f32.gmra.mrb[0].mxu0 %v3697
    %v3765 = vpop.f32.mrb[0].mxu0
    %v3766 = vadd.f32 0.0, %v3765
    %v3767 = vpop.f32.mrb[0].mxu0
    %v3768 = vadd.f32 0.0, %v3767
    %3769 = vdwg.mxu0
    %v3770 = vlaneseq
    %v3771 = vshrl.u32 %v3770, 7
    %v3772 = vsub.s32 0, %v3771
    %v3773 = vrot.slane %v3692, %v3772
    %v3774 = vlaneseq
    %v3775 = vshrl.u32 %v3774, 7
    %v3776 = vsub.s32 0, %v3775
    %v3777 = vrot.slane %v3694, %v3776
    %v3778 = vsub.f32 %v3399, %v3773
    %v3779 = vsub.f32 %v3400, %v3777
    %v3780 = vsub.f32 %v3401, %v3773
    %v3781 = vsub.f32 %v3402, %v3777
    %v3783 = vlaneseq
    %v3784 = vshrl.u32 %v3783, 7
    %v3785 = vsub.s32 0, %v3784
    %v3786 = vrot.slane %v3403, %v3785
    %v3787 = vlaneseq
    %v3788 = vshrl.u32 %v3787, 7
    %v3789 = vsub.s32 1, %v3788
    %v3790 = vrot.slane %v3403, %v3789
    %v3793 = vmul.f32 %v3766, %v3786
    %v3794 = vmul.f32 %v3768, %v3790
    %v3795 = vlaneseq
    %v3796 = vshrl.u32 %v3795, 7
    %v3797 = vsub.s32 0, %v3796
    %v3798 = vrot.slane %v3793, %v3797
    %v3799 = vlaneseq
    %v3800 = vshrl.u32 %v3799, 7
    %v3801 = vsub.s32 0, %v3800
    %v3802 = vrot.slane %v3794, %v3801
    %v3803 = vmul.f32 %v3778, %v3798
    %v3804 = vmul.f32 %v3779, %v3802
    %v3805 = vmul.f32 %v3780, %v3798
    %v3806 = vmul.f32 %v3781, %v3802
    %v3808 = vlaneseq
    %v3809 = vshrl.u32 %v3808, 7
    %v3810 = vsub.s32 0, %v3809
    %v3811 = vrot.slane %v3404, %v3810
    %v3812 = vlaneseq
    %v3813 = vshrl.u32 %v3812, 7
    %v3814 = vsub.s32 1, %v3813
    %v3815 = vrot.slane %v3404, %v3814
    %v3818 = vadd.f32 %v3803, %v3811
    %v3819 = vadd.f32 %v3804, %v3815
    %v3820 = vadd.f32 %v3805, %v3811
    %v3821 = vadd.f32 %v3806, %v3815
    %v3822 = vadd.f32 %v3818, %v68
    %v3823 = vadd.f32 %v3819, %v69
    %v3824 = vadd.f32 %v3820, %v70
    %v3825 = vadd.f32 %v3821, %v71
    %v3826 = vmax.f32 %v3822, 0.0
    %v3827 = vmax.f32 %v3823, 0.0
    %v3828 = vmax.f32 %v3824, 0.0
    %v3829 = vmax.f32 %v3825, 0.0
    %3830 = vst [vmem:[#allocation8] sm:$0xff] %v3826
    %3831 = vst [vmem:[#allocation8 + $0x8] sm:$0xff] %v3827
    %3832 = vst [vmem:[#allocation8 + $0x10] sm:$0xff] %v3828
    %3833 = vst [vmem:[#allocation8 + $0x18] sm:$0xff] %v3829
    // Predicated region
    $region54: #{tpu_custom_call.1} parent=1 // pred_check
      _
    $region55: #{tpu_custom_call.1} parent=1 // pred_check_branch
      %3835 = sbr.rel (0) target = $region57
    $region56: #{tpu_custom_call.1} parent=1 // pred_region
      %s3837 = ssub.s32 512, 512
      %3838 = vsyncadd [#allocation5], %s3837
      %s3839 = sshll.u32 [#allocation8], 4
      %s3840 = int_to_ptr.vmem [resolvable:$true] %s3839
      %3845 = dma.vmem_to_hbm [thread:$0]  %s3840, 512, %s11, [#allocation5], 256, 256, 16
    $region57: #{tpu_custom_call.1} parent=1 // pred_fallthru
      _
    // Predicated region
    $region58: #{tpu_custom_call.1} parent=1 // pred_check
      _
    $region59: #{tpu_custom_call.1} parent=1 // pred_check_branch
      %3847 = sbr.rel (0) target = $region61
    $region60: #{tpu_custom_call.1} parent=1 // pred_region
      %3848 = dma.done [#allocation5], 512
    $region61: #{tpu_custom_call.1} parent=1 // pred_fallthru
      _
    %3849 = vsyncpa [#allocation4], 1
    %3850 = vsyncpa [#allocation7], 1
    %3851 = vsyncpa [#allocation5], 1

</llo_original>
